<compile_context>
chip_gen: v7x
topology: tpu7x:2x2x1
jax: 0.10.0
libtpu: 0.0.40
codegen_flags: <defaults>
</compile_context>

<pallas_src>
import jax
import jax.numpy as jnp
from jax import lax
from jax.experimental import pallas as pl
from jax.experimental.pallas import tpu as pltpu

EPS = 1e-5


def _fused_relu_conv1x1_bn_kernel(x_ref, w_ref, gamma_ref, beta_ref, o_ref,
                                  xb_ref, xs_ref):
    # x_ref:     (Cin, M)  f32  -- resident across the whole grid (constant index_map)
    # w_ref:     (tC, Cin) bf16 -- Cout tile of the 1x1 conv weight
    # gamma_ref: (tC, 1) f32, beta_ref: (tC, 1) f32
    # o_ref:     (tC, M) f32
    # xb_ref:    (Cin, M) bf16 scratch  -- hoisted relu(x) cast for the MXU
    # xs_ref:    (Cin, 1) f32  scratch  -- hoisted row-sum of relu(x)
    m = x_ref.shape[1]
    inv_m = 1.0 / m

    # Hoist ReLU + bf16 cast + row-sum: x is revisited by every grid step and
    # the *inner* grid axis is "arbitrary" (never split across cores), so
    # program_id(1) == 0 fires before any use of the scratch on every core.
    @pl.when(pl.program_id(1) == 0)
    def _():
        xr = jnp.maximum(x_ref[...], 0.0)                 # ReLU (VPU), f32
        xb_ref[...] = xr.astype(jnp.bfloat16)             # MXU operand
        xs_ref[...] = jnp.sum(xr, axis=1, keepdims=True)  # (Cin, 1)

    wb = w_ref[...]                                        # (tC, Cin) bf16
    # 1x1 conv == matmul: bf16 x bf16 -> f32 accumulation on the MXU.
    y = jnp.dot(wb, xb_ref[...], preferred_element_type=jnp.float32)   # (tC, M)

    # BatchNorm2d (training) batch stats folded into one per-channel affine.
    # s = sum_m y[c, m] computed analytically: sum_m (W @ x)[c, m] = W @ rowsum(x)
    # -> a tiny MXU matvec instead of a per-step cross-lane reduction.
    s = jnp.dot(wb.astype(jnp.float32), xs_ref[...],
                preferred_element_type=jnp.float32)        # (tC, 1)
    ss = jnp.sum(y * y, axis=1, keepdims=True)             # (tC, 1), one lane reduce
    mean = s * inv_m
    var = ss * inv_m - mean * mean                         # biased variance
    a = gamma_ref[...] * lax.rsqrt(var + EPS)
    b = beta_ref[...] - mean * a
    o_ref[...] = y * a + b                                 # single pass over y


def _pick_cout_tile(cout, m, vmem_budget_bytes=8 * 1024 * 1024):
    """Prefer >= 4 grid steps (pipelining + megacore), VMEM-aware output tile."""
    candidates = [t for t in (512, 256, 128, 64, 32, 16, 8) if cout % t == 0]
    if not candidates:
        return cout
    # Double-buffered f32 output tile must stay within a conservative budget
    # (keeps the kernel portable to v7x's smaller VMEM at larger H*W).
    fitting = [t for t in candidates if 2 * t * m * 4 <= vmem_budget_bytes]
    if not fitting:
        fitting = [candidates[-1]]
    for t in fitting:
        if cout // t >= 4:
            return t
    return fitting[-1]


def relu_conv1x1_bn(x_nchw, w_oi, gamma, beta):
    """x_nchw: (N, Cin, H, W) f32; w_oi: (Cout, Cin) f32; gamma/beta: (Cout,) f32."""
    N, Cin, H, W = x_nchw.shape
    Cout = w_oi.shape[0]
    M = N * H * W

    tC = _pick_cout_tile(Cout, M)
    steps = Cout // tC
    outer = 2 if steps % 2 == 0 else 1     # outer axis -> megacore split on v7x
    inner = steps // outer                 # inner axis -> per-core pipeline

    # Channels-major layout; free relabelings for N == 1 (no data movement).
    x_cm = jnp.transpose(x_nchw, (1, 0, 2, 3)).reshape(Cin, M)
    # Conv weight is a model parameter: one-time bf16 cast (MXU-native inputs,
    # f32 accumulation inside the kernel). Halves the per-step weight DMA.
    w_b16 = w_oi.astype(jnp.bfloat16)
    g = gamma.reshape(Cout, 1)
    b = beta.reshape(Cout, 1)

    flops = 2 * M * Cin * Cout + 8 * M * Cout
    bytes_accessed = 4 * Cin * M + 2 * Cout * Cin + 4 * Cout * M + 8 * Cout

    def cout_idx(p, j):
        return (p * inner + j, 0)

    out_cm = pl.pallas_call(
        _fused_relu_conv1x1_bn_kernel,
        out_shape=jax.ShapeDtypeStruct((Cout, M), jnp.float32),
        grid=(outer, inner),
        in_specs=[
            # x stays resident across the grid (constant block index -> fetched once per core).
            pl.BlockSpec((Cin, M), lambda p, j: (0, 0)),
            pl.BlockSpec((tC, Cin), cout_idx),   # bf16 weight tile streams in
            pl.BlockSpec((tC, 1), cout_idx),     # gamma tile
            pl.BlockSpec((tC, 1), cout_idx),     # beta tile
        ],
        out_specs=pl.BlockSpec((tC, M), cout_idx),
        scratch_shapes=[
            pltpu.VMEM((Cin, M), jnp.bfloat16),  # hoisted relu(x) in bf16
            pltpu.VMEM((Cin, 1), jnp.float32),   # hoisted rowsum(relu(x))
        ],
        compiler_params=pltpu.CompilerParams(
            dimension_semantics=("parallel", "arbitrary"),
        ),
        cost_estimate=pl.CostEstimate(
            flops=flops, bytes_accessed=bytes_accessed, transcendentals=Cout),
    )(x_cm, w_b16, g, b)

    # (Cout, N*H*W) -> (N, Cout, H, W); free when N == 1.
    return jnp.transpose(out_cm.reshape(Cout, N, H, W), (1, 0, 2, 3))


def _reference(x_nchw, w_oi, gamma, beta, matmul_dtype=jnp.float32):
    """Plain-JAX reference of the module. matmul_dtype=bf16 mimics the kernel's MXU numerics."""
    N, Cin, H, W = x_nchw.shape
    Cout = w_oi.shape[0]
    xr = jnp.maximum(x_nchw, 0.0)
    xm = jnp.transpose(xr, (0, 2, 3, 1)).reshape(-1, Cin)          # (M, Cin)
    y = jnp.dot(xm.astype(matmul_dtype), w_oi.T.astype(matmul_dtype),
                preferred_element_type=jnp.float32)                # (M, Cout) f32
    mean = jnp.mean(y, axis=0, keepdims=True)
    var = jnp.mean((y - mean) ** 2, axis=0, keepdims=True)         # biased
    yn = (y - mean) * lax.rsqrt(var + EPS) * gamma[None, :] + beta[None, :]
    return jnp.transpose(yn.reshape(N, H, W, Cout), (0, 3, 1, 2))


if __name__ == "__main__":
    # Shapes implied by the module: x227 = randn(1, 256, 28, 28),
    # Conv2d(256 -> 1024, 1x1, bias=False), BatchNorm2d(1024).
    N, Cin, H, W, Cout = 1, 256, 28, 28, 1024

    key = jax.random.PRNGKey(0)
    kx, kw, kg, kb = jax.random.split(key, 4)
    x = jax.random.normal(kx, (N, Cin, H, W), dtype=jnp.float32)
    w = jax.random.normal(kw, (Cout, Cin), dtype=jnp.float32) * 0.05   # (Cout, Cin, 1, 1) squeezed
    gamma = 1.0 + 0.1 * jax.random.normal(kg, (Cout,), dtype=jnp.float32)
    beta = 0.1 * jax.random.normal(kb, (Cout,), dtype=jnp.float32)

    out = jax.block_until_ready(relu_conv1x1_bn(x, w, gamma, beta))
    assert out.shape == (N, Cout, H, W), out.shape

    # 1) Kernel-logic check against a reference that uses the same bf16-input /
    #    f32-accumulate matmul numerics as the MXU path.
    ref_b = _reference(x, w, gamma, beta, matmul_dtype=jnp.bfloat16)
    err_b = float(jnp.max(jnp.abs(out - ref_b)))
    assert jnp.allclose(out, ref_b, atol=1e-2, rtol=1e-2), err_b

    # 2) Module-semantics check against the full-f32 reference; tolerance covers
    #    the bf16 quantization of Cin=256 dot products (BN output ~unit scale).
    ref_f = _reference(x, w, gamma, beta, matmul_dtype=jnp.float32)
    err_f = float(jnp.max(jnp.abs(out - ref_f)))
    assert jnp.allclose(out, ref_f, atol=5e-2, rtol=5e-2), err_f

    print("KERNEL_OK")
</pallas_src>

<mosaic_0001>
module attributes {stable_mosaic.version = 11 : i64} {
  func.func @_fused_relu_conv1x1_bn_kernel(%arg0: i32, %arg1: i32, %arg2: memref<256x784xf32, #tpu.memory_space<vmem>>, %arg3: memref<256x256xbf16, #tpu.memory_space<vmem>>, %arg4: memref<256x1xf32, #tpu.memory_space<vmem>>, %arg5: memref<256x1xf32, #tpu.memory_space<vmem>>, %arg6: memref<256x784xf32, #tpu.memory_space<vmem>>, %arg7: memref<256x784xbf16, #tpu.memory_space<vmem>>, %arg8: memref<256x1xf32, #tpu.memory_space<vmem>>) attributes {dimension_semantics = [#tpu.dimension_semantics<parallel>, #tpu.dimension_semantics<arbitrary>], iteration_bounds = array<i64: 2, 2>, scalar_prefetch = 0 : i64, scratch_operands = 2 : i64, tpu.core_type = #tpu.core_type<tc>, window_params = [{pipeline_mode = #tpu.pipeline_mode<synchronous>, transform_indices = @transform_0, window_bounds = array<i64: 256, 784>}, {transform_indices = @transform_1, window_bounds = array<i64: 256, 256>}, {transform_indices = @transform_2, window_bounds = array<i64: 256, 1>}, {transform_indices = @transform_3, window_bounds = array<i64: 256, 1>}, {transform_indices = @transform_4, window_bounds = array<i64: 256, 784>}]} {
    %c0_i32 = arith.constant 0 : i32
    %0 = arith.cmpi eq, %arg1, %c0_i32 : i32
    %1 = arith.extui %0 : i1 to i32
    %c0_i32_0 = arith.constant 0 : i32
    %2 = arith.cmpi ne, %1, %c0_i32_0 : i32
    scf.if %2 {
      %c0_17 = arith.constant 0 : index
      %c0_18 = arith.constant 0 : index
      %31 = vector.load %arg2[%c0_17, %c0_18] : memref<256x784xf32, #tpu.memory_space<vmem>>, vector<256x784xf32>
      %cst_19 = arith.constant 0.000000e+00 : f32
      %32 = vector.broadcast %cst_19 : f32 to vector<256x784xf32>
      %33 = arith.maximumf %31, %32 : vector<256x784xf32>
      %34 = arith.truncf %33 : vector<256x784xf32> to vector<256x784xbf16>
      %c0_20 = arith.constant 0 : index
      %c0_21 = arith.constant 0 : index
      %35 = vector.load %arg7[%c0_20, %c0_21] : memref<256x784xbf16, #tpu.memory_space<vmem>>, vector<256x784xbf16>
      tpu.vector_store %arg7[%c0_20, %c0_21], %34 {strides = array<i32>} : memref<256x784xbf16, #tpu.memory_space<vmem>>, vector<256x784xbf16>,
      %cst_22 = arith.constant dense<0.000000e+00> : vector<256xf32>
      %36 = vector.multi_reduction <add>, %33, %cst_22 [1] : vector<256x784xf32> to vector<256xf32>
      %37 = vector.shape_cast %36 : vector<256xf32> to vector<256x1xf32>
      %c0_23 = arith.constant 0 : index
      %c0_24 = arith.constant 0 : index
      %38 = vector.load %arg8[%c0_23, %c0_24] : memref<256x1xf32, #tpu.memory_space<vmem>>, vector<256x1xf32>
      tpu.vector_store %arg8[%c0_23, %c0_24], %37 {strides = array<i32>} : memref<256x1xf32, #tpu.memory_space<vmem>>, vector<256x1xf32>,
    } else {
    }
    %c0 = arith.constant 0 : index
    %c0_1 = arith.constant 0 : index
    %3 = vector.load %arg3[%c0, %c0_1] : memref<256x256xbf16, #tpu.memory_space<vmem>>, vector<256x256xbf16>
    %c0_2 = arith.constant 0 : index
    %c0_3 = arith.constant 0 : index
    %4 = vector.load %arg7[%c0_2, %c0_3] : memref<256x784xbf16, #tpu.memory_space<vmem>>, vector<256x784xbf16>
    %cst = arith.constant dense<0.000000e+00> : vector<256x784xf32>
    %5 = tpu.matmul %3, %4, %cst {dimension_numbers = #tpu.dot_dimension_numbers<[1], [0], [0], [1], [0, 0, 1, 1], [], []>} : vector<256x256xbf16>, vector<256x784xbf16>, vector<256x784xf32> -> vector<256x784xf32>
    %6 = arith.extf %3 : vector<256x256xbf16> to vector<256x256xf32>
    %c0_4 = arith.constant 0 : index
    %c0_5 = arith.constant 0 : index
    %7 = vector.load %arg8[%c0_4, %c0_5] : memref<256x1xf32, #tpu.memory_space<vmem>>, vector<256x1xf32>
    %cst_6 = arith.constant dense<0.000000e+00> : vector<256x1xf32>
    %8 = tpu.matmul %6, %7, %cst_6 {dimension_numbers = #tpu.dot_dimension_numbers<[1], [0], [0], [1], [0, 0, 1, 1], [], []>} : vector<256x256xf32>, vector<256x1xf32>, vector<256x1xf32> -> vector<256x1xf32>
    %9 = arith.mulf %5, %5 : vector<256x784xf32>
    %cst_7 = arith.constant dense<0.000000e+00> : vector<256xf32>
    %10 = vector.multi_reduction <add>, %9, %cst_7 [1] : vector<256x784xf32> to vector<256xf32>
    %11 = vector.shape_cast %10 : vector<256xf32> to vector<256x1xf32>
    %cst_8 = arith.constant 0.00127551018 : f32
    %12 = vector.broadcast %cst_8 : f32 to vector<256x1xf32>
    %13 = arith.mulf %8, %12 : vector<256x1xf32>
    %cst_9 = arith.constant 0.00127551018 : f32
    %14 = vector.broadcast %cst_9 : f32 to vector<256x1xf32>
    %15 = arith.mulf %11, %14 : vector<256x1xf32>
    %16 = arith.mulf %13, %13 : vector<256x1xf32>
    %17 = arith.subf %15, %16 : vector<256x1xf32>
    %c0_10 = arith.constant 0 : index
    %c0_11 = arith.constant 0 : index
    %18 = vector.load %arg4[%c0_10, %c0_11] : memref<256x1xf32, #tpu.memory_space<vmem>>, vector<256x1xf32>
    %cst_12 = arith.constant 9.99999974E-6 : f32
    %19 = vector.broadcast %cst_12 : f32 to vector<256x1xf32>
    %20 = arith.addf %17, %19 : vector<256x1xf32>
    %21 = math.rsqrt %20 : vector<256x1xf32>
    %22 = arith.mulf %18, %21 : vector<256x1xf32>
    %c0_13 = arith.constant 0 : index
    %c0_14 = arith.constant 0 : index
    %23 = vector.load %arg5[%c0_13, %c0_14] : memref<256x1xf32, #tpu.memory_space<vmem>>, vector<256x1xf32>
    %24 = arith.mulf %13, %22 : vector<256x1xf32>
    %25 = arith.subf %23, %24 : vector<256x1xf32>
    %26 = vector.broadcast %22 : vector<256x1xf32> to vector<256x784xf32>
    %27 = arith.mulf %5, %26 : vector<256x784xf32>
    %28 = vector.broadcast %25 : vector<256x1xf32> to vector<256x784xf32>
    %29 = arith.addf %27, %28 : vector<256x784xf32>
    %c0_15 = arith.constant 0 : index
    %c0_16 = arith.constant 0 : index
    %30 = vector.load %arg6[%c0_15, %c0_16] : memref<256x784xf32, #tpu.memory_space<vmem>>, vector<256x784xf32>
    tpu.vector_store %arg6[%c0_15, %c0_16], %29 {strides = array<i32>} : memref<256x784xf32, #tpu.memory_space<vmem>>, vector<256x784xf32>,
    return
  }
  func.func @transform_0(%arg0: i32, %arg1: i32) -> (i32, i32) {
    %c0_i32 = arith.constant 0 : i32
    %c0_i32_0 = arith.constant 0 : i32
    %c0_i32_1 = arith.constant 0 : i32
    return %c0_i32, %c0_i32_0 : i32, i32
  }
  func.func @transform_1(%arg0: i32, %arg1: i32) -> (i32, i32) {
    %c2_i32 = arith.constant 2 : i32
    %0 = arith.muli %arg0, %c2_i32 : i32
    %1 = arith.addi %0, %arg1 : i32
    %c0_i32 = arith.constant 0 : i32
    %c0_i32_0 = arith.constant 0 : i32
    return %1, %c0_i32 : i32, i32
  }
  func.func @transform_2(%arg0: i32, %arg1: i32) -> (i32, i32) {
    %c2_i32 = arith.constant 2 : i32
    %0 = arith.muli %arg0, %c2_i32 : i32
    %1 = arith.addi %0, %arg1 : i32
    %c0_i32 = arith.constant 0 : i32
    %c0_i32_0 = arith.constant 0 : i32
    return %1, %c0_i32 : i32, i32
  }
  func.func @transform_3(%arg0: i32, %arg1: i32) -> (i32, i32) {
    %c2_i32 = arith.constant 2 : i32
    %0 = arith.muli %arg0, %c2_i32 : i32
    %1 = arith.addi %0, %arg1 : i32
    %c0_i32 = arith.constant 0 : i32
    %c0_i32_0 = arith.constant 0 : i32
    return %1, %c0_i32 : i32, i32
  }
  func.func @transform_4(%arg0: i32, %arg1: i32) -> (i32, i32) {
    %c2_i32 = arith.constant 2 : i32
    %0 = arith.muli %arg0, %c2_i32 : i32
    %1 = arith.addi %0, %arg1 : i32
    %c0_i32 = arith.constant 0 : i32
    %c0_i32_0 = arith.constant 0 : i32
    return %1, %c0_i32 : i32, i32
  }
}

</mosaic_0001>

<llo_original>
// kernel: tpu_custom_call.1
$region0: #{tpu_custom_call.1}
  #allocation0 [shape = 'u32[]', space=smem, size = 0x4, offset = 0x4, fixed_abs, tag = 'smem constant byte address 0x4 - core index']
  #allocation1 [shape = 'u32[144,128]{1,0:T(1,128)}', space=vmem, size = 0x12000, scoped, tag = 'internal scratch']
  #allocation2 [shape = 'bf16[256,784]{1,0:T(16,128)(2,1)}', space=vmem, size = 0x70000, scoped, tag = 'scratch operand']
  #allocation3 [shape = 'f32[256,1]{1,0:T(8,128)}', space=vmem, size = 0x20000, scoped, tag = 'scratch operand']
  %s0 = inlined_call_operand.vmem [shape: f32[256,784], index: 0, kind: input, shape index: {}]
  %s1 = inlined_call_operand.hbm [shape: bf16[1024,256], index: 1, kind: input, shape index: {}]
  %s2 = inlined_call_operand.vmem [shape: f32[1024,1], index: 2, kind: input, shape index: {}]
  %s3 = inlined_call_operand.vmem [shape: f32[1024,1], index: 3, kind: input, shape index: {}]
  %s4 = inlined_call_operand.vmem [shape: f32[1024,784], index: 4, kind: output, shape index: {}]
  %s5 = sld [smem:[#allocation0]]
  $region57: #{tpu_custom_call.1} parent=0
    _
  %s7 = ssub.s32 1, %s5
  %s8 = scalar_select 0, %s7, %s5
  $region1: #{tpu_custom_call.1} parent=0
    #allocation4 [shape = 'u8[262144]{0}', space=vmem, size = 0x40000, scoped, tag = 'input window, operand 1']
    #allocation5 [shape = 's32[2]{0}', space=sflag, size = 0x8, scoped, tag = 'scoped memory for tpu_custom_call.1']
    %9 = vsyncpa [#allocation5], 0
    %s10 = scalar_lea.sflag [#allocation5], 1
    %11 = vsyncpa %s10, 0
    loop: start=0, step=1, limit=6
    $region2: #{tpu_custom_call.1} parent=1 // loop_pre_header
      _
    $region3: #{tpu_custom_call.1} parent=1 // loop_header
      %s13 = sphi 0, %s17
      %p14 = scmp.ge.s32.totalorder %s13, 6
      %s20 = sphi 0, %s32
      %s21 = sphi 0, %s28
      %s22 = sphi 0, %s20
      %s23 = sphi 0, %s21
      %s24 = sphi 0, %s22
      %s25 = sphi 0, %s23
      %s33 = sphi 0, %s33
      %s35 = sphi 0, %s33
      %s36 = sphi 0, %s35
      %s50 = sphi 0, %s36
      %s60 = sphi 0, %s62
      %s63 = sphi 0, %s60
      %s64 = sphi 0, %s63
      %s80 = sphi 0, %s64
      %s90 = sphi 0, %s92
      %s93 = sphi 0, %s90
      %s94 = sphi 0, %s93
      %s110 = sphi 0, %s94
      %s120 = sphi 0, %s122
      %s123 = sphi 0, %s120
      %s124 = sphi 0, %s123
      %s140 = sphi 0, %s124
      %s150 = sphi 0, %s152
      %s153 = sphi 0, %s150
      %s154 = sphi 0, %s153
      %s170 = sphi 0, %s154
    $region4: #{tpu_custom_call.1} parent=1 // loop_header_branch
      %16 = sbr.rel (%p14) target = $region8
    $region5: #{tpu_custom_call.1} parent=1 // loop_body
      %s18 = ssub.s32 %s13, 1
      %s19 = ssub.s32 %s13, 2
      %s26 = sadd.s32 1, %s21
      %p27 = scmp.ge.s32.totalorder %s26, 2
      %s28 = scalar_select %p27, 0, %s26
      %s29 = sadd.s32 1, %s20
      %s30 = scalar_select %p27, %s29, %s20
      %p31 = scmp.ge.s32.totalorder %s30, 2
      %s32 = scalar_select %p31, 0, %s30
      %s34 = sadd.s32 %s33, 1
      %p37 = scmp.eq.s32.totalorder %s13, 3
      %p38 = scmp.ne.s32.totalorder %s33, %s35
      %p39 = scmp.eq.s32.totalorder %s13, 0
      %p40 = por %p38, %p39
      %p41 = scmp.ne.s32.totalorder %s33, %s35
      %p42 = scmp.eq.s32.totalorder %s18, 3
      %p43 = por %p41, %p42
      %p44 = scmp.ne.s32.totalorder %s35, %s36
      %p45 = scmp.eq.s32.totalorder %s18, 0
      %p46 = por %p44, %p45
      %p47 = scmp.ne.s32.totalorder %s35, %s36
      %p48 = scmp.eq.s32.totalorder %s19, 3
      %p49 = por %p47, %p48
      %p51 = scmp.ne.s32.totalorder %s36, %s50
      %p52 = scmp.eq.s32.totalorder %s19, 0
      %p53 = por %p51, %p52
      %s54 = smul.u32 %s20, 2
      %s55 = sadd.s32 %s54, %s21
      %s56 = smul.u32 %s32, 2
      %s57 = sadd.s32 %s56, %s28
      %s58 = ssub.s32 %s55, %s57
      %p59 = scmp.eq.s32.totalorder %s58, 0
      %s61 = sadd.s32 %s60, 1
      %s62 = scalar_select %p59, %s60, %s61
      %p65 = pneg %p59
      %p66 = scmp.eq.s32.totalorder %s13, 3
      %p67 = por %p65, %p66
      %p68 = scmp.ne.s32.totalorder %s60, %s63
      %p69 = scmp.eq.s32.totalorder %s13, 0
      %p70 = por %p68, %p69
      %p71 = scmp.ne.s32.totalorder %s60, %s63
      %p72 = scmp.eq.s32.totalorder %s18, 3
      %p73 = por %p71, %p72
      %p74 = scmp.ne.s32.totalorder %s63, %s64
      %p75 = scmp.eq.s32.totalorder %s18, 0
      %p76 = por %p74, %p75
      %p77 = scmp.ne.s32.totalorder %s63, %s64
      %p78 = scmp.eq.s32.totalorder %s19, 3
      %p79 = por %p77, %p78
      %p81 = scmp.ne.s32.totalorder %s64, %s80
      %p82 = scmp.eq.s32.totalorder %s19, 0
      %p83 = por %p81, %p82
      %s84 = smul.u32 %s20, 2
      %s85 = sadd.s32 %s84, %s21
      %s86 = smul.u32 %s32, 2
      %s87 = sadd.s32 %s86, %s28
      %s88 = ssub.s32 %s85, %s87
      %p89 = scmp.eq.s32.totalorder %s88, 0
      %s91 = sadd.s32 %s90, 1
      %s92 = scalar_select %p89, %s90, %s91
      %p95 = pneg %p89
      %p96 = scmp.eq.s32.totalorder %s13, 3
      %p97 = por %p95, %p96
      %p98 = scmp.ne.s32.totalorder %s90, %s93
      %p99 = scmp.eq.s32.totalorder %s13, 0
      %p100 = por %p98, %p99
      %p101 = scmp.ne.s32.totalorder %s90, %s93
      %p102 = scmp.eq.s32.totalorder %s18, 3
      %p103 = por %p101, %p102
      %p104 = scmp.ne.s32.totalorder %s93, %s94
      %p105 = scmp.eq.s32.totalorder %s18, 0
      %p106 = por %p104, %p105
      %p107 = scmp.ne.s32.totalorder %s93, %s94
      %p108 = scmp.eq.s32.totalorder %s19, 3
      %p109 = por %p107, %p108
      %p111 = scmp.ne.s32.totalorder %s94, %s110
      %p112 = scmp.eq.s32.totalorder %s19, 0
      %p113 = por %p111, %p112
      %s114 = smul.u32 %s20, 2
      %s115 = sadd.s32 %s114, %s21
      %s116 = smul.u32 %s32, 2
      %s117 = sadd.s32 %s116, %s28
      %s118 = ssub.s32 %s115, %s117
      %p119 = scmp.eq.s32.totalorder %s118, 0
      %s121 = sadd.s32 %s120, 1
      %s122 = scalar_select %p119, %s120, %s121
      %p125 = pneg %p119
      %p126 = scmp.eq.s32.totalorder %s13, 3
      %p127 = por %p125, %p126
      %p128 = scmp.ne.s32.totalorder %s120, %s123
      %p129 = scmp.eq.s32.totalorder %s13, 0
      %p130 = por %p128, %p129
      %p131 = scmp.ne.s32.totalorder %s120, %s123
      %p132 = scmp.eq.s32.totalorder %s18, 3
      %p133 = por %p131, %p132
      %p134 = scmp.ne.s32.totalorder %s123, %s124
      %p135 = scmp.eq.s32.totalorder %s18, 0
      %p136 = por %p134, %p135
      %p137 = scmp.ne.s32.totalorder %s123, %s124
      %p138 = scmp.eq.s32.totalorder %s19, 3
      %p139 = por %p137, %p138
      %p141 = scmp.ne.s32.totalorder %s124, %s140
      %p142 = scmp.eq.s32.totalorder %s19, 0
      %p143 = por %p141, %p142
      %s144 = smul.u32 %s20, 2
      %s145 = sadd.s32 %s144, %s21
      %s146 = smul.u32 %s32, 2
      %s147 = sadd.s32 %s146, %s28
      %s148 = ssub.s32 %s145, %s147
      %p149 = scmp.eq.s32.totalorder %s148, 0
      %s151 = sadd.s32 %s150, 1
      %s152 = scalar_select %p149, %s150, %s151
      %p155 = pneg %p149
      %p156 = scmp.eq.s32.totalorder %s13, 3
      %p157 = por %p155, %p156
      %p158 = scmp.ne.s32.totalorder %s150, %s153
      %p159 = scmp.eq.s32.totalorder %s13, 0
      %p160 = por %p158, %p159
      %p161 = scmp.ne.s32.totalorder %s150, %s153
      %p162 = scmp.eq.s32.totalorder %s18, 3
      %p163 = por %p161, %p162
      %p164 = scmp.ne.s32.totalorder %s153, %s154
      %p165 = scmp.eq.s32.totalorder %s18, 0
      %p166 = por %p164, %p165
      %p167 = scmp.ne.s32.totalorder %s153, %s154
      %p168 = scmp.eq.s32.totalorder %s19, 3
      %p169 = por %p167, %p168
      %p171 = scmp.ne.s32.totalorder %s154, %s170
      %p172 = scmp.eq.s32.totalorder %s19, 0
      %p173 = por %p171, %p172
      %p174 = scmp.le.s32.totalorder 1, %s13
      %p175 = scmp.lt.s32.totalorder %s13, 5
      %p176 = pnand %p174, %p175
      %p177 = pneg %p176
      // Predicated region
      $region9: #{tpu_custom_call.1} parent=5 // pred_check
        _
      $region10: #{tpu_custom_call.1} parent=5 // pred_check_branch
        %179 = sbr.rel (%p176) target = $region12
      $region11: #{tpu_custom_call.1} parent=5 // pred_region
        %s180 = ssub.s32 %s13, 1
        // Predicated region
        $region13: #{tpu_custom_call.1} parent=11 // pred_check
          %p181 = pneg %p46
        $region14: #{tpu_custom_call.1} parent=11 // pred_check_branch
          %183 = sbr.rel (%p181) target = $region16
        $region15: #{tpu_custom_call.1} parent=11 // pred_region
          _
        $region16: #{tpu_custom_call.1} parent=11 // pred_fallthru
          _
      $region12: #{tpu_custom_call.1} parent=5 // pred_fallthru
        _
      %p184 = scmp.lt.s32.totalorder %s13, 4
      // Predicated region
      $region17: #{tpu_custom_call.1} parent=5 // pred_check
        %p185 = pneg %p184
      $region18: #{tpu_custom_call.1} parent=5 // pred_check_branch
        %187 = sbr.rel (%p185) target = $region20
      $region19: #{tpu_custom_call.1} parent=5 // pred_region
        // Predicated region
        $region21: #{tpu_custom_call.1} parent=19 // pred_check
          %p188 = pneg %p70
        $region22: #{tpu_custom_call.1} parent=19 // pred_check_branch
          %190 = sbr.rel (%p188) target = $region24
        $region23: #{tpu_custom_call.1} parent=19 // pred_region
          %s191 = sand.u32 %s60, 1
          %s192 = scalar_lea.sflag [#allocation5], %s191
          %s193 = sand.u32 %s60, 1
          %s194 = smul.addr %s193, 256
          %s195 = scalar_lea.vmem [#allocation4], %s194
          %s196 = smul.u32 %s20, 2
          %s197 = sadd.s32 %s196, %s21
          %s198 = smul.u32 32, %s197
          %s200 = ssub.s32 4096, 4096
          %201 = vsyncadd %s192, %s200
          %s202 = smul.addr %s198, 2
          %s203 = smul.addr %s202, 64
          %s204 = scalar_lea.hbm %s1, %s203
          %s205 = sshll.u32 %s195, 4
          %s206 = int_to_ptr.vmem [resolvable:$true] %s205
          %211 = dma.hbm_to_vmem [thread:$0]  %s204, 4096, %s206, %s192, 128, 128, 8
        $region24: #{tpu_custom_call.1} parent=19 // pred_fallthru
          _
        // Predicated region
        $region25: #{tpu_custom_call.1} parent=19 // pred_check
          %p212 = pneg %p100
        $region26: #{tpu_custom_call.1} parent=19 // pred_check_branch
          %214 = sbr.rel (%p212) target = $region28
        $region27: #{tpu_custom_call.1} parent=19 // pred_region
          %s215 = smul.u32 %s20, 2
          %s216 = sadd.s32 %s215, %s21
          %s217 = smul.u32 32, %s216
          %p218 = scmp.lt.s32.totalorder %s217, 127
          %s219 = scalar_select %p218, %s217, 127
          %s220 = smul.addr %s219, 8
          %s221 = scalar_lea.vmem %s2, %s220
          %s222 = smul.u32 %s20, 2
          %s223 = sadd.s32 %s222, %s21
          %s224 = smul.u32 32, %s223
        $region28: #{tpu_custom_call.1} parent=19 // pred_fallthru
          _
        // Predicated region
        $region29: #{tpu_custom_call.1} parent=19 // pred_check
          %p225 = pneg %p130
        $region30: #{tpu_custom_call.1} parent=19 // pred_check_branch
          %227 = sbr.rel (%p225) target = $region32
        $region31: #{tpu_custom_call.1} parent=19 // pred_region
          %s228 = smul.u32 %s20, 2
          %s229 = sadd.s32 %s228, %s21
          %s230 = smul.u32 32, %s229
          %p231 = scmp.lt.s32.totalorder %s230, 127
          %s232 = scalar_select %p231, %s230, 127
          %s233 = smul.addr %s232, 8
          %s234 = scalar_lea.vmem %s3, %s233
          %s235 = smul.u32 %s20, 2
          %s236 = sadd.s32 %s235, %s21
          %s237 = smul.u32 32, %s236
        $region32: #{tpu_custom_call.1} parent=19 // pred_fallthru
          _
      $region20: #{tpu_custom_call.1} parent=5 // pred_fallthru
        _
      %p238 = scmp.le.s32.totalorder 1, %s13
      %p239 = scmp.lt.s32.totalorder %s13, 5
      %p240 = pnand %p238, %p239
      %p241 = pneg %p240
      // Predicated region
      $region33: #{tpu_custom_call.1} parent=5 // pred_check
        _
      $region34: #{tpu_custom_call.1} parent=5 // pred_check_branch
        %243 = sbr.rel (%p240) target = $region36
      $region35: #{tpu_custom_call.1} parent=5 // pred_region
        %s244 = ssub.s32 %s13, 1
        %s245 = sand.u32 %s63, 1
        %s246 = scalar_lea.sflag [#allocation5], %s245
        %s247 = sand.u32 %s63, 1
        %s248 = smul.addr %s247, 256
        %s249 = scalar_lea.vmem [#allocation4], %s248
        // Predicated region
        $region37: #{tpu_custom_call.1} parent=35 // pred_check
          %p250 = pneg %p76
        $region38: #{tpu_custom_call.1} parent=35 // pred_check_branch
          %252 = sbr.rel (%p250) target = $region40
        $region39: #{tpu_custom_call.1} parent=35 // pred_region
          %253 = dma.done %s246, 4096
        $region40: #{tpu_custom_call.1} parent=35 // pred_fallthru
          _
        %p254 = pneg %p46
        %p255 = pneg %p43
        %s256 = sand.u32 %s63, 1
        %s257 = scalar_lea.sflag [#allocation5], %s256
        %s258 = sand.u32 %s63, 1
        %s259 = smul.addr %s258, 256
        %s260 = scalar_lea.vmem [#allocation4], %s259
        %p261 = pneg %p76
        %p262 = pneg %p73
        %s263 = smul.u32 %s22, 2
        %s264 = sadd.s32 %s263, %s23
        %s265 = smul.u32 32, %s264
        %p266 = scmp.lt.s32.totalorder %s265, 127
        %s267 = scalar_select %p266, %s265, 127
        %s268 = smul.addr %s267, 8
        %s269 = scalar_lea.vmem %s2, %s268
        %p270 = pneg %p106
        %p271 = pneg %p103
        %s272 = smul.u32 %s22, 2
        %s273 = sadd.s32 %s272, %s23
        %s274 = smul.u32 32, %s273
        %p275 = scmp.lt.s32.totalorder %s274, 127
        %s276 = scalar_select %p275, %s274, 127
        %s277 = smul.addr %s276, 8
        %s278 = scalar_lea.vmem %s3, %s277
        %p279 = pneg %p136
        %p280 = pneg %p133
        %p281 = pneg %p166
        %p282 = pneg %p163
        %s283 = smul.u32 %s22, 2
        %s284 = sadd.s32 %s283, %s23
        %s285 = smul.u32 32, %s284
        %p286 = scmp.lt.s32.totalorder %s285, 127
        %s287 = scalar_select %p286, %s285, 127
        %s288 = smul.addr %s287, 7
        %s289 = smul.addr %s288, 8
        %s290 = scalar_lea.vmem %s4, %s289
        %s291 = smul.u32 %s22, 2
        %s292 = sadd.s32 %s291, %s23
        %s293 = smul.u32 32, %s292
        %s294 = smul.u32 %s22, 2
        %s295 = sadd.s32 %s294, %s23
        %s296 = smul.u32 32, %s295
        %p297 = scmp.lt.s32.totalorder %s296, 127
        %s298 = scalar_select %p297, %s296, 127
        %s299 = smul.addr %s298, 8
        %s300 = scalar_lea.vmem %s2, %s299
        %s301 = smul.u32 %s22, 2
        %s302 = sadd.s32 %s301, %s23
        %s303 = smul.u32 32, %s302
        %s304 = smul.u32 %s22, 2
        %s305 = sadd.s32 %s304, %s23
        %s306 = smul.u32 32, %s305
        %p307 = scmp.lt.s32.totalorder %s306, 127
        %s308 = scalar_select %p307, %s306, 127
        %s309 = smul.addr %s308, 8
        %s310 = scalar_lea.vmem %s3, %s309
        %s311 = smul.u32 %s22, 2
        %s312 = sadd.s32 %s311, %s23
        %s313 = smul.u32 32, %s312
        %s314 = smul.u32 %s22, 2
        %s315 = sadd.s32 %s314, %s23
        %s316 = smul.u32 32, %s315
        %p317 = scmp.lt.s32.totalorder %s316, 127
        %s318 = scalar_select %p317, %s316, 127
        %s319 = smul.addr %s318, 7
        %s320 = smul.addr %s319, 8
        %s321 = scalar_lea.vmem %s4, %s320
        %s322 = smul.u32 %s22, 2
        %s323 = sadd.s32 %s322, %s23
        %s324 = smul.u32 32, %s323
        %p326 = scmp.eq.s32.totalorder %s23, 0
        // Predicated region
        $region41: #{tpu_custom_call.1} parent=35 // pred_check
          %p327 = pneg %p326
        $region42: #{tpu_custom_call.1} parent=35 // pred_check_branch
          %329 = sbr.rel (%p327) target = $region44
        $region43: #{tpu_custom_call.1} parent=35 // pred_region
          %v330 = vld [vmem:[%s0] sm:$0xff]
          %v331 = vld [vmem:[%s0 + $0x8] sm:$0xff]
          %v332 = vld [vmem:[%s0 + $0x10] sm:$0xff]
          %v333 = vld [vmem:[%s0 + $0x18] sm:$0xff]
          %v334 = vld [vmem:[%s0 + $0x20] sm:$0xff]
          %v335 = vld [vmem:[%s0 + $0x28] sm:$0xff]
          %v336 = vld [vmem:[%s0 + $0x30] sm:$0xff]
          %v337 = vld [vmem:[%s0 + $0x38] sm:$0xff]
          %v338 = vld [vmem:[%s0 + $0x40] sm:$0xff]
          %v339 = vld [vmem:[%s0 + $0x48] sm:$0xff]
          %v340 = vld [vmem:[%s0 + $0x50] sm:$0xff]
          %v341 = vld [vmem:[%s0 + $0x58] sm:$0xff]
          %v342 = vld [vmem:[%s0 + $0x60] sm:$0xff]
          %v343 = vld [vmem:[%s0 + $0x68] sm:$0xff]
          %v344 = vld [vmem:[%s0 + $0x70] sm:$0xff]
          %v345 = vld [vmem:[%s0 + $0x78] sm:$0xff]
          %v346 = vld [vmem:[%s0 + $0x80] sm:$0xff]
          %v347 = vld [vmem:[%s0 + $0x88] sm:$0xff]
          %v348 = vld [vmem:[%s0 + $0x90] sm:$0xff]
          %v349 = vld [vmem:[%s0 + $0x98] sm:$0xff]
          %v350 = vld [vmem:[%s0 + $0xa0] sm:$0xff]
          %v351 = vld [vmem:[%s0 + $0xa8] sm:$0xff]
          %v352 = vld [vmem:[%s0 + $0xb0] sm:$0xff]
          %v353 = vld [vmem:[%s0 + $0xb8] sm:$0xff]
          %v354 = vld [vmem:[%s0 + $0xc0] sm:$0xff]
          %v355 = vld [vmem:[%s0 + $0xc8] sm:$0xff]
          %v356 = vld [vmem:[%s0 + $0xd0] sm:$0xff]
          %v357 = vld [vmem:[%s0 + $0xd8] sm:$0xff]
          %v358 = vld [vmem:[%s0 + $0xe0] sm:$0xff]
          %v359 = vld [vmem:[%s0 + $0xe8] sm:$0xff]
          %v360 = vld [vmem:[%s0 + $0xf0] sm:$0xff]
          %v361 = vld [vmem:[%s0 + $0xf8] sm:$0xff]
          %v362 = vld [vmem:[%s0 + $0x100] sm:$0xff]
          %v363 = vld [vmem:[%s0 + $0x108] sm:$0xff]
          %v364 = vld [vmem:[%s0 + $0x110] sm:$0xff]
          %v365 = vld [vmem:[%s0 + $0x118] sm:$0xff]
          %v366 = vld [vmem:[%s0 + $0x120] sm:$0xff]
          %v367 = vld [vmem:[%s0 + $0x128] sm:$0xff]
          %v368 = vld [vmem:[%s0 + $0x130] sm:$0xff]
          %v369 = vld [vmem:[%s0 + $0x138] sm:$0xff]
          %v370 = vld [vmem:[%s0 + $0x140] sm:$0xff]
          %v371 = vld [vmem:[%s0 + $0x148] sm:$0xff]
          %v372 = vld [vmem:[%s0 + $0x150] sm:$0xff]
          %v373 = vld [vmem:[%s0 + $0x158] sm:$0xff]
          %v374 = vld [vmem:[%s0 + $0x160] sm:$0xff]
          %v375 = vld [vmem:[%s0 + $0x168] sm:$0xff]
          %v376 = vld [vmem:[%s0 + $0x170] sm:$0xff]
          %v377 = vld [vmem:[%s0 + $0x178] sm:$0xff]
          %v378 = vld [vmem:[%s0 + $0x180] sm:$0xff]
          %v379 = vld [vmem:[%s0 + $0x188] sm:$0xff]
          %v380 = vld [vmem:[%s0 + $0x190] sm:$0xff]
          %v381 = vld [vmem:[%s0 + $0x198] sm:$0xff]
          %v382 = vld [vmem:[%s0 + $0x1a0] sm:$0xff]
          %v383 = vld [vmem:[%s0 + $0x1a8] sm:$0xff]
          %v384 = vld [vmem:[%s0 + $0x1b0] sm:$0xff]
          %v385 = vld [vmem:[%s0 + $0x1b8] sm:$0xff]
          %v386 = vld [vmem:[%s0 + $0x1c0] sm:$0xff]
          %v387 = vld [vmem:[%s0 + $0x1c8] sm:$0xff]
          %v388 = vld [vmem:[%s0 + $0x1d0] sm:$0xff]
          %v389 = vld [vmem:[%s0 + $0x1d8] sm:$0xff]
          %v390 = vld [vmem:[%s0 + $0x1e0] sm:$0xff]
          %v391 = vld [vmem:[%s0 + $0x1e8] sm:$0xff]
          %v392 = vld [vmem:[%s0 + $0x1f0] sm:$0xff]
          %v393 = vld [vmem:[%s0 + $0x1f8] sm:$0xff]
          %v394 = vld [vmem:[%s0 + $0x200] sm:$0xff]
          %v395 = vld [vmem:[%s0 + $0x208] sm:$0xff]
          %v396 = vld [vmem:[%s0 + $0x210] sm:$0xff]
          %v397 = vld [vmem:[%s0 + $0x218] sm:$0xff]
          %v398 = vld [vmem:[%s0 + $0x220] sm:$0xff]
          %v399 = vld [vmem:[%s0 + $0x228] sm:$0xff]
          %v400 = vld [vmem:[%s0 + $0x230] sm:$0xff]
          %v401 = vld [vmem:[%s0 + $0x238] sm:$0xff]
          %v402 = vld [vmem:[%s0 + $0x240] sm:$0xff]
          %v403 = vld [vmem:[%s0 + $0x248] sm:$0xff]
          %v404 = vld [vmem:[%s0 + $0x250] sm:$0xff]
          %v405 = vld [vmem:[%s0 + $0x258] sm:$0xff]
          %v406 = vld [vmem:[%s0 + $0x260] sm:$0xff]
          %v407 = vld [vmem:[%s0 + $0x268] sm:$0xff]
          %v408 = vld [vmem:[%s0 + $0x270] sm:$0xff]
          %v409 = vld [vmem:[%s0 + $0x278] sm:$0xff]
          %v410 = vld [vmem:[%s0 + $0x280] sm:$0xff]
          %v411 = vld [vmem:[%s0 + $0x288] sm:$0xff]
          %v412 = vld [vmem:[%s0 + $0x290] sm:$0xff]
          %v413 = vld [vmem:[%s0 + $0x298] sm:$0xff]
          %v414 = vld [vmem:[%s0 + $0x2a0] sm:$0xff]
          %v415 = vld [vmem:[%s0 + $0x2a8] sm:$0xff]
          %v416 = vld [vmem:[%s0 + $0x2b0] sm:$0xff]
          %v417 = vld [vmem:[%s0 + $0x2b8] sm:$0xff]
          %v418 = vld [vmem:[%s0 + $0x2c0] sm:$0xff]
          %v419 = vld [vmem:[%s0 + $0x2c8] sm:$0xff]
          %v420 = vld [vmem:[%s0 + $0x2d0] sm:$0xff]
          %v421 = vld [vmem:[%s0 + $0x2d8] sm:$0xff]
          %v422 = vld [vmem:[%s0 + $0x2e0] sm:$0xff]
          %v423 = vld [vmem:[%s0 + $0x2e8] sm:$0xff]
          %v424 = vld [vmem:[%s0 + $0x2f0] sm:$0xff]
          %v425 = vld [vmem:[%s0 + $0x2f8] sm:$0xff]
          %v426 = vld [vmem:[%s0 + $0x300] sm:$0xff]
          %v427 = vld [vmem:[%s0 + $0x308] sm:$0xff]
          %v428 = vld [vmem:[%s0 + $0x310] sm:$0xff]
          %v429 = vld [vmem:[%s0 + $0x318] sm:$0xff]
          %v430 = vld [vmem:[%s0 + $0x320] sm:$0xff]
          %v431 = vld [vmem:[%s0 + $0x328] sm:$0xff]
          %v432 = vld [vmem:[%s0 + $0x330] sm:$0xff]
          %v433 = vld [vmem:[%s0 + $0x338] sm:$0xff]
          %v434 = vld [vmem:[%s0 + $0x340] sm:$0xff]
          %v435 = vld [vmem:[%s0 + $0x348] sm:$0xff]
          %v436 = vld [vmem:[%s0 + $0x350] sm:$0xff]
          %v437 = vld [vmem:[%s0 + $0x358] sm:$0xff]
          %v438 = vld [vmem:[%s0 + $0x360] sm:$0xff]
          %v439 = vld [vmem:[%s0 + $0x368] sm:$0xff]
          %v440 = vld [vmem:[%s0 + $0x370] sm:$0xff]
          %v441 = vld [vmem:[%s0 + $0x378] sm:$0xff]
          %v442 = vld [vmem:[%s0 + $0x380] sm:$0xff]
          %v443 = vld [vmem:[%s0 + $0x388] sm:$0xff]
          %v444 = vld [vmem:[%s0 + $0x390] sm:$0xff]
          %v445 = vld [vmem:[%s0 + $0x398] sm:$0xff]
          %v446 = vld [vmem:[%s0 + $0x3a0] sm:$0xff]
          %v447 = vld [vmem:[%s0 + $0x3a8] sm:$0xff]
          %v448 = vld [vmem:[%s0 + $0x3b0] sm:$0xff]
          %v449 = vld [vmem:[%s0 + $0x3b8] sm:$0xff]
          %v450 = vld [vmem:[%s0 + $0x3c0] sm:$0xff]
          %v451 = vld [vmem:[%s0 + $0x3c8] sm:$0xff]
          %v452 = vld [vmem:[%s0 + $0x3d0] sm:$0xff]
          %v453 = vld [vmem:[%s0 + $0x3d8] sm:$0xff]
          %v454 = vld [vmem:[%s0 + $0x3e0] sm:$0xff]
          %v455 = vld [vmem:[%s0 + $0x3e8] sm:$0xff]
          %v456 = vld [vmem:[%s0 + $0x3f0] sm:$0xff]
          %v457 = vld [vmem:[%s0 + $0x3f8] sm:$0xff]
          %v458 = vld [vmem:[%s0 + $0x400] sm:$0xff]
          %v459 = vld [vmem:[%s0 + $0x408] sm:$0xff]
          %v460 = vld [vmem:[%s0 + $0x410] sm:$0xff]
          %v461 = vld [vmem:[%s0 + $0x418] sm:$0xff]
          %v462 = vld [vmem:[%s0 + $0x420] sm:$0xff]
          %v463 = vld [vmem:[%s0 + $0x428] sm:$0xff]
          %v464 = vld [vmem:[%s0 + $0x430] sm:$0xff]
          %v465 = vld [vmem:[%s0 + $0x438] sm:$0xff]
          %v466 = vld [vmem:[%s0 + $0x440] sm:$0xff]
          %v467 = vld [vmem:[%s0 + $0x448] sm:$0xff]
          %v468 = vld [vmem:[%s0 + $0x450] sm:$0xff]
          %v469 = vld [vmem:[%s0 + $0x458] sm:$0xff]
          %v470 = vld [vmem:[%s0 + $0x460] sm:$0xff]
          %v471 = vld [vmem:[%s0 + $0x468] sm:$0xff]
          %v472 = vld [vmem:[%s0 + $0x470] sm:$0xff]
          %v473 = vld [vmem:[%s0 + $0x478] sm:$0xff]
          %v474 = vld [vmem:[%s0 + $0x480] sm:$0xff]
          %v475 = vld [vmem:[%s0 + $0x488] sm:$0xff]
          %v476 = vld [vmem:[%s0 + $0x490] sm:$0xff]
          %v477 = vld [vmem:[%s0 + $0x498] sm:$0xff]
          %v478 = vld [vmem:[%s0 + $0x4a0] sm:$0xff]
          %v479 = vld [vmem:[%s0 + $0x4a8] sm:$0xff]
          %v480 = vld [vmem:[%s0 + $0x4b0] sm:$0xff]
          %v481 = vld [vmem:[%s0 + $0x4b8] sm:$0xff]
          %v482 = vld [vmem:[%s0 + $0x4c0] sm:$0xff]
          %v483 = vld [vmem:[%s0 + $0x4c8] sm:$0xff]
          %v484 = vld [vmem:[%s0 + $0x4d0] sm:$0xff]
          %v485 = vld [vmem:[%s0 + $0x4d8] sm:$0xff]
          %v486 = vld [vmem:[%s0 + $0x4e0] sm:$0xff]
          %v487 = vld [vmem:[%s0 + $0x4e8] sm:$0xff]
          %v488 = vld [vmem:[%s0 + $0x4f0] sm:$0xff]
          %v489 = vld [vmem:[%s0 + $0x4f8] sm:$0xff]
          %v490 = vld [vmem:[%s0 + $0x500] sm:$0xff]
          %v491 = vld [vmem:[%s0 + $0x508] sm:$0xff]
          %v492 = vld [vmem:[%s0 + $0x510] sm:$0xff]
          %v493 = vld [vmem:[%s0 + $0x518] sm:$0xff]
          %v494 = vld [vmem:[%s0 + $0x520] sm:$0xff]
          %v495 = vld [vmem:[%s0 + $0x528] sm:$0xff]
          %v496 = vld [vmem:[%s0 + $0x530] sm:$0xff]
          %v497 = vld [vmem:[%s0 + $0x538] sm:$0xff]
          %v498 = vld [vmem:[%s0 + $0x540] sm:$0xff]
          %v499 = vld [vmem:[%s0 + $0x548] sm:$0xff]
          %v500 = vld [vmem:[%s0 + $0x550] sm:$0xff]
          %v501 = vld [vmem:[%s0 + $0x558] sm:$0xff]
          %v502 = vld [vmem:[%s0 + $0x560] sm:$0xff]
          %v503 = vld [vmem:[%s0 + $0x568] sm:$0xff]
          %v504 = vld [vmem:[%s0 + $0x570] sm:$0xff]
          %v505 = vld [vmem:[%s0 + $0x578] sm:$0xff]
          %v506 = vld [vmem:[%s0 + $0x580] sm:$0xff]
          %v507 = vld [vmem:[%s0 + $0x588] sm:$0xff]
          %v508 = vld [vmem:[%s0 + $0x590] sm:$0xff]
          %v509 = vld [vmem:[%s0 + $0x598] sm:$0xff]
          %v510 = vld [vmem:[%s0 + $0x5a0] sm:$0xff]
          %v511 = vld [vmem:[%s0 + $0x5a8] sm:$0xff]
          %v512 = vld [vmem:[%s0 + $0x5b0] sm:$0xff]
          %v513 = vld [vmem:[%s0 + $0x5b8] sm:$0xff]
          %v514 = vld [vmem:[%s0 + $0x5c0] sm:$0xff]
          %v515 = vld [vmem:[%s0 + $0x5c8] sm:$0xff]
          %v516 = vld [vmem:[%s0 + $0x5d0] sm:$0xff]
          %v517 = vld [vmem:[%s0 + $0x5d8] sm:$0xff]
          %v518 = vld [vmem:[%s0 + $0x5e0] sm:$0xff]
          %v519 = vld [vmem:[%s0 + $0x5e8] sm:$0xff]
          %v520 = vld [vmem:[%s0 + $0x5f0] sm:$0xff]
          %v521 = vld [vmem:[%s0 + $0x5f8] sm:$0xff]
          %v522 = vld [vmem:[%s0 + $0x600] sm:$0xff]
          %v523 = vld [vmem:[%s0 + $0x608] sm:$0xff]
          %v524 = vld [vmem:[%s0 + $0x610] sm:$0xff]
          %v525 = vld [vmem:[%s0 + $0x618] sm:$0xff]
          %v526 = vld [vmem:[%s0 + $0x620] sm:$0xff]
          %v527 = vld [vmem:[%s0 + $0x628] sm:$0xff]
          %v528 = vld [vmem:[%s0 + $0x630] sm:$0xff]
          %v529 = vld [vmem:[%s0 + $0x638] sm:$0xff]
          %v530 = vld [vmem:[%s0 + $0x640] sm:$0xff]
          %v531 = vld [vmem:[%s0 + $0x648] sm:$0xff]
          %v532 = vld [vmem:[%s0 + $0x650] sm:$0xff]
          %v533 = vld [vmem:[%s0 + $0x658] sm:$0xff]
          %v534 = vld [vmem:[%s0 + $0x660] sm:$0xff]
          %v535 = vld [vmem:[%s0 + $0x668] sm:$0xff]
          %v536 = vld [vmem:[%s0 + $0x670] sm:$0xff]
          %v537 = vld [vmem:[%s0 + $0x678] sm:$0xff]
          %v538 = vld [vmem:[%s0 + $0x680] sm:$0xff]
          %v539 = vld [vmem:[%s0 + $0x688] sm:$0xff]
          %v540 = vld [vmem:[%s0 + $0x690] sm:$0xff]
          %v541 = vld [vmem:[%s0 + $0x698] sm:$0xff]
          %v542 = vld [vmem:[%s0 + $0x6a0] sm:$0xff]
          %v543 = vld [vmem:[%s0 + $0x6a8] sm:$0xff]
          %v544 = vld [vmem:[%s0 + $0x6b0] sm:$0xff]
          %v545 = vld [vmem:[%s0 + $0x6b8] sm:$0xff]
          %v546 = vld [vmem:[%s0 + $0x6c0] sm:$0xff]
          %v547 = vld [vmem:[%s0 + $0x6c8] sm:$0xff]
          %v548 = vld [vmem:[%s0 + $0x6d0] sm:$0xff]
          %v549 = vld [vmem:[%s0 + $0x6d8] sm:$0xff]
          %v550 = vld [vmem:[%s0 + $0x6e0] sm:$0xff]
          %v551 = vld [vmem:[%s0 + $0x6e8] sm:$0xff]
          %v552 = vld [vmem:[%s0 + $0x6f0] sm:$0xff]
          %v553 = vld [vmem:[%s0 + $0x6f8] sm:$0xff]
          %v554 = vmax.f32 %v330, 0.0
          %v555 = vmax.f32 %v331, 0.0
          %v556 = vmax.f32 %v332, 0.0
          %v557 = vmax.f32 %v333, 0.0
          %v558 = vmax.f32 %v334, 0.0
          %v559 = vmax.f32 %v335, 0.0
          %v560 = vmax.f32 %v336, 0.0
          %v561 = vmax.f32 %v337, 0.0
          %v562 = vmax.f32 %v338, 0.0
          %v563 = vmax.f32 %v339, 0.0
          %v564 = vmax.f32 %v340, 0.0
          %v565 = vmax.f32 %v341, 0.0
          %v566 = vmax.f32 %v342, 0.0
          %v567 = vmax.f32 %v343, 0.0
          %v568 = vmax.f32 %v344, 0.0
          %v569 = vmax.f32 %v345, 0.0
          %v570 = vmax.f32 %v346, 0.0
          %v571 = vmax.f32 %v347, 0.0
          %v572 = vmax.f32 %v348, 0.0
          %v573 = vmax.f32 %v349, 0.0
          %v574 = vmax.f32 %v350, 0.0
          %v575 = vmax.f32 %v351, 0.0
          %v576 = vmax.f32 %v352, 0.0
          %v577 = vmax.f32 %v353, 0.0
          %v578 = vmax.f32 %v354, 0.0
          %v579 = vmax.f32 %v355, 0.0
          %v580 = vmax.f32 %v356, 0.0
          %v581 = vmax.f32 %v357, 0.0
          %v582 = vmax.f32 %v358, 0.0
          %v583 = vmax.f32 %v359, 0.0
          %v584 = vmax.f32 %v360, 0.0
          %v585 = vmax.f32 %v361, 0.0
          %v586 = vmax.f32 %v362, 0.0
          %v587 = vmax.f32 %v363, 0.0
          %v588 = vmax.f32 %v364, 0.0
          %v589 = vmax.f32 %v365, 0.0
          %v590 = vmax.f32 %v366, 0.0
          %v591 = vmax.f32 %v367, 0.0
          %v592 = vmax.f32 %v368, 0.0
          %v593 = vmax.f32 %v369, 0.0
          %v594 = vmax.f32 %v370, 0.0
          %v595 = vmax.f32 %v371, 0.0
          %v596 = vmax.f32 %v372, 0.0
          %v597 = vmax.f32 %v373, 0.0
          %v598 = vmax.f32 %v374, 0.0
          %v599 = vmax.f32 %v375, 0.0
          %v600 = vmax.f32 %v376, 0.0
          %v601 = vmax.f32 %v377, 0.0
          %v602 = vmax.f32 %v378, 0.0
          %v603 = vmax.f32 %v379, 0.0
          %v604 = vmax.f32 %v380, 0.0
          %v605 = vmax.f32 %v381, 0.0
          %v606 = vmax.f32 %v382, 0.0
          %v607 = vmax.f32 %v383, 0.0
          %v608 = vmax.f32 %v384, 0.0
          %v609 = vmax.f32 %v385, 0.0
          %v610 = vmax.f32 %v386, 0.0
          %v611 = vmax.f32 %v387, 0.0
          %v612 = vmax.f32 %v388, 0.0
          %v613 = vmax.f32 %v389, 0.0
          %v614 = vmax.f32 %v390, 0.0
          %v615 = vmax.f32 %v391, 0.0
          %v616 = vmax.f32 %v392, 0.0
          %v617 = vmax.f32 %v393, 0.0
          %v618 = vmax.f32 %v394, 0.0
          %v619 = vmax.f32 %v395, 0.0
          %v620 = vmax.f32 %v396, 0.0
          %v621 = vmax.f32 %v397, 0.0
          %v622 = vmax.f32 %v398, 0.0
          %v623 = vmax.f32 %v399, 0.0
          %v624 = vmax.f32 %v400, 0.0
          %v625 = vmax.f32 %v401, 0.0
          %v626 = vmax.f32 %v402, 0.0
          %v627 = vmax.f32 %v403, 0.0
          %v628 = vmax.f32 %v404, 0.0
          %v629 = vmax.f32 %v405, 0.0
          %v630 = vmax.f32 %v406, 0.0
          %v631 = vmax.f32 %v407, 0.0
          %v632 = vmax.f32 %v408, 0.0
          %v633 = vmax.f32 %v409, 0.0
          %v634 = vmax.f32 %v410, 0.0
          %v635 = vmax.f32 %v411, 0.0
          %v636 = vmax.f32 %v412, 0.0
          %v637 = vmax.f32 %v413, 0.0
          %v638 = vmax.f32 %v414, 0.0
          %v639 = vmax.f32 %v415, 0.0
          %v640 = vmax.f32 %v416, 0.0
          %v641 = vmax.f32 %v417, 0.0
          %v642 = vmax.f32 %v418, 0.0
          %v643 = vmax.f32 %v419, 0.0
          %v644 = vmax.f32 %v420, 0.0
          %v645 = vmax.f32 %v421, 0.0
          %v646 = vmax.f32 %v422, 0.0
          %v647 = vmax.f32 %v423, 0.0
          %v648 = vmax.f32 %v424, 0.0
          %v649 = vmax.f32 %v425, 0.0
          %v650 = vmax.f32 %v426, 0.0
          %v651 = vmax.f32 %v427, 0.0
          %v652 = vmax.f32 %v428, 0.0
          %v653 = vmax.f32 %v429, 0.0
          %v654 = vmax.f32 %v430, 0.0
          %v655 = vmax.f32 %v431, 0.0
          %v656 = vmax.f32 %v432, 0.0
          %v657 = vmax.f32 %v433, 0.0
          %v658 = vmax.f32 %v434, 0.0
          %v659 = vmax.f32 %v435, 0.0
          %v660 = vmax.f32 %v436, 0.0
          %v661 = vmax.f32 %v437, 0.0
          %v662 = vmax.f32 %v438, 0.0
          %v663 = vmax.f32 %v439, 0.0
          %v664 = vmax.f32 %v440, 0.0
          %v665 = vmax.f32 %v441, 0.0
          %v666 = vmax.f32 %v442, 0.0
          %v667 = vmax.f32 %v443, 0.0
          %v668 = vmax.f32 %v444, 0.0
          %v669 = vmax.f32 %v445, 0.0
          %v670 = vmax.f32 %v446, 0.0
          %v671 = vmax.f32 %v447, 0.0
          %v672 = vmax.f32 %v448, 0.0
          %v673 = vmax.f32 %v449, 0.0
          %v674 = vmax.f32 %v450, 0.0
          %v675 = vmax.f32 %v451, 0.0
          %v676 = vmax.f32 %v452, 0.0
          %v677 = vmax.f32 %v453, 0.0
          %v678 = vmax.f32 %v454, 0.0
          %v679 = vmax.f32 %v455, 0.0
          %v680 = vmax.f32 %v456, 0.0
          %v681 = vmax.f32 %v457, 0.0
          %v682 = vmax.f32 %v458, 0.0
          %v683 = vmax.f32 %v459, 0.0
          %v684 = vmax.f32 %v460, 0.0
          %v685 = vmax.f32 %v461, 0.0
          %v686 = vmax.f32 %v462, 0.0
          %v687 = vmax.f32 %v463, 0.0
          %v688 = vmax.f32 %v464, 0.0
          %v689 = vmax.f32 %v465, 0.0
          %v690 = vmax.f32 %v466, 0.0
          %v691 = vmax.f32 %v467, 0.0
          %v692 = vmax.f32 %v468, 0.0
          %v693 = vmax.f32 %v469, 0.0
          %v694 = vmax.f32 %v470, 0.0
          %v695 = vmax.f32 %v471, 0.0
          %v696 = vmax.f32 %v472, 0.0
          %v697 = vmax.f32 %v473, 0.0
          %v698 = vmax.f32 %v474, 0.0
          %v699 = vmax.f32 %v475, 0.0
          %v700 = vmax.f32 %v476, 0.0
          %v701 = vmax.f32 %v477, 0.0
          %v702 = vmax.f32 %v478, 0.0
          %v703 = vmax.f32 %v479, 0.0
          %v704 = vmax.f32 %v480, 0.0
          %v705 = vmax.f32 %v481, 0.0
          %v706 = vmax.f32 %v482, 0.0
          %v707 = vmax.f32 %v483, 0.0
          %v708 = vmax.f32 %v484, 0.0
          %v709 = vmax.f32 %v485, 0.0
          %v710 = vmax.f32 %v486, 0.0
          %v711 = vmax.f32 %v487, 0.0
          %v712 = vmax.f32 %v488, 0.0
          %v713 = vmax.f32 %v489, 0.0
          %v714 = vmax.f32 %v490, 0.0
          %v715 = vmax.f32 %v491, 0.0
          %v716 = vmax.f32 %v492, 0.0
          %v717 = vmax.f32 %v493, 0.0
          %v718 = vmax.f32 %v494, 0.0
          %v719 = vmax.f32 %v495, 0.0
          %v720 = vmax.f32 %v496, 0.0
          %v721 = vmax.f32 %v497, 0.0
          %v722 = vmax.f32 %v498, 0.0
          %v723 = vmax.f32 %v499, 0.0
          %v724 = vmax.f32 %v500, 0.0
          %v725 = vmax.f32 %v501, 0.0
          %v726 = vmax.f32 %v502, 0.0
          %v727 = vmax.f32 %v503, 0.0
          %v728 = vmax.f32 %v504, 0.0
          %v729 = vmax.f32 %v505, 0.0
          %v730 = vmax.f32 %v506, 0.0
          %v731 = vmax.f32 %v507, 0.0
          %v732 = vmax.f32 %v508, 0.0
          %v733 = vmax.f32 %v509, 0.0
          %v734 = vmax.f32 %v510, 0.0
          %v735 = vmax.f32 %v511, 0.0
          %v736 = vmax.f32 %v512, 0.0
          %v737 = vmax.f32 %v513, 0.0
          %v738 = vmax.f32 %v514, 0.0
          %v739 = vmax.f32 %v515, 0.0
          %v740 = vmax.f32 %v516, 0.0
          %v741 = vmax.f32 %v517, 0.0
          %v742 = vmax.f32 %v518, 0.0
          %v743 = vmax.f32 %v519, 0.0
          %v744 = vmax.f32 %v520, 0.0
          %v745 = vmax.f32 %v521, 0.0
          %v746 = vmax.f32 %v522, 0.0
          %v747 = vmax.f32 %v523, 0.0
          %v748 = vmax.f32 %v524, 0.0
          %v749 = vmax.f32 %v525, 0.0
          %v750 = vmax.f32 %v526, 0.0
          %v751 = vmax.f32 %v527, 0.0
          %v752 = vmax.f32 %v528, 0.0
          %v753 = vmax.f32 %v529, 0.0
          %v754 = vmax.f32 %v530, 0.0
          %v755 = vmax.f32 %v531, 0.0
          %v756 = vmax.f32 %v532, 0.0
          %v757 = vmax.f32 %v533, 0.0
          %v758 = vmax.f32 %v534, 0.0
          %v759 = vmax.f32 %v535, 0.0
          %v760 = vmax.f32 %v536, 0.0
          %v761 = vmax.f32 %v537, 0.0
          %v762 = vmax.f32 %v538, 0.0
          %v763 = vmax.f32 %v539, 0.0
          %v764 = vmax.f32 %v540, 0.0
          %v765 = vmax.f32 %v541, 0.0
          %v766 = vmax.f32 %v542, 0.0
          %v767 = vmax.f32 %v543, 0.0
          %v768 = vmax.f32 %v544, 0.0
          %v769 = vmax.f32 %v545, 0.0
          %v770 = vmax.f32 %v546, 0.0
          %v771 = vmax.f32 %v547, 0.0
          %v772 = vmax.f32 %v548, 0.0
          %v773 = vmax.f32 %v549, 0.0
          %v774 = vmax.f32 %v550, 0.0
          %v775 = vmax.f32 %v551, 0.0
          %v776 = vmax.f32 %v552, 0.0
          %v777 = vmax.f32 %v553, 0.0
          %v778 = vpack.c.bf16 %v561, %v554
          %v779 = vpack.c.bf16 %v562, %v555
          %v780 = vpack.c.bf16 %v563, %v556
          %v781 = vpack.c.bf16 %v564, %v557
          %v782 = vpack.c.bf16 %v565, %v558
          %v783 = vpack.c.bf16 %v566, %v559
          %v784 = vpack.c.bf16 %v567, %v560
          %v785 = vpack.c.bf16 %v575, %v568
          %v786 = vpack.c.bf16 %v576, %v569
          %v787 = vpack.c.bf16 %v577, %v570
          %v788 = vpack.c.bf16 %v578, %v571
          %v789 = vpack.c.bf16 %v579, %v572
          %v790 = vpack.c.bf16 %v580, %v573
          %v791 = vpack.c.bf16 %v581, %v574
          %v792 = vpack.c.bf16 %v589, %v582
          %v793 = vpack.c.bf16 %v590, %v583
          %v794 = vpack.c.bf16 %v591, %v584
          %v795 = vpack.c.bf16 %v592, %v585
          %v796 = vpack.c.bf16 %v593, %v586
          %v797 = vpack.c.bf16 %v594, %v587
          %v798 = vpack.c.bf16 %v595, %v588
          %v799 = vpack.c.bf16 %v603, %v596
          %v800 = vpack.c.bf16 %v604, %v597
          %v801 = vpack.c.bf16 %v605, %v598
          %v802 = vpack.c.bf16 %v606, %v599
          %v803 = vpack.c.bf16 %v607, %v600
          %v804 = vpack.c.bf16 %v608, %v601
          %v805 = vpack.c.bf16 %v609, %v602
          %v806 = vpack.c.bf16 %v617, %v610
          %v807 = vpack.c.bf16 %v618, %v611
          %v808 = vpack.c.bf16 %v619, %v612
          %v809 = vpack.c.bf16 %v620, %v613
          %v810 = vpack.c.bf16 %v621, %v614
          %v811 = vpack.c.bf16 %v622, %v615
          %v812 = vpack.c.bf16 %v623, %v616
          %v813 = vpack.c.bf16 %v631, %v624
          %v814 = vpack.c.bf16 %v632, %v625
          %v815 = vpack.c.bf16 %v633, %v626
          %v816 = vpack.c.bf16 %v634, %v627
          %v817 = vpack.c.bf16 %v635, %v628
          %v818 = vpack.c.bf16 %v636, %v629
          %v819 = vpack.c.bf16 %v637, %v630
          %v820 = vpack.c.bf16 %v645, %v638
          %v821 = vpack.c.bf16 %v646, %v639
          %v822 = vpack.c.bf16 %v647, %v640
          %v823 = vpack.c.bf16 %v648, %v641
          %v824 = vpack.c.bf16 %v649, %v642
          %v825 = vpack.c.bf16 %v650, %v643
          %v826 = vpack.c.bf16 %v651, %v644
          %v827 = vpack.c.bf16 %v659, %v652
          %v828 = vpack.c.bf16 %v660, %v653
          %v829 = vpack.c.bf16 %v661, %v654
          %v830 = vpack.c.bf16 %v662, %v655
          %v831 = vpack.c.bf16 %v663, %v656
          %v832 = vpack.c.bf16 %v664, %v657
          %v833 = vpack.c.bf16 %v665, %v658
          %v834 = vpack.c.bf16 %v673, %v666
          %v835 = vpack.c.bf16 %v674, %v667
          %v836 = vpack.c.bf16 %v675, %v668
          %v837 = vpack.c.bf16 %v676, %v669
          %v838 = vpack.c.bf16 %v677, %v670
          %v839 = vpack.c.bf16 %v678, %v671
          %v840 = vpack.c.bf16 %v679, %v672
          %v841 = vpack.c.bf16 %v687, %v680
          %v842 = vpack.c.bf16 %v688, %v681
          %v843 = vpack.c.bf16 %v689, %v682
          %v844 = vpack.c.bf16 %v690, %v683
          %v845 = vpack.c.bf16 %v691, %v684
          %v846 = vpack.c.bf16 %v692, %v685
          %v847 = vpack.c.bf16 %v693, %v686
          %v848 = vpack.c.bf16 %v701, %v694
          %v849 = vpack.c.bf16 %v702, %v695
          %v850 = vpack.c.bf16 %v703, %v696
          %v851 = vpack.c.bf16 %v704, %v697
          %v852 = vpack.c.bf16 %v705, %v698
          %v853 = vpack.c.bf16 %v706, %v699
          %v854 = vpack.c.bf16 %v707, %v700
          %v855 = vpack.c.bf16 %v715, %v708
          %v856 = vpack.c.bf16 %v716, %v709
          %v857 = vpack.c.bf16 %v717, %v710
          %v858 = vpack.c.bf16 %v718, %v711
          %v859 = vpack.c.bf16 %v719, %v712
          %v860 = vpack.c.bf16 %v720, %v713
          %v861 = vpack.c.bf16 %v721, %v714
          %v862 = vpack.c.bf16 %v729, %v722
          %v863 = vpack.c.bf16 %v730, %v723
          %v864 = vpack.c.bf16 %v731, %v724
          %v865 = vpack.c.bf16 %v732, %v725
          %v866 = vpack.c.bf16 %v733, %v726
          %v867 = vpack.c.bf16 %v734, %v727
          %v868 = vpack.c.bf16 %v735, %v728
          %v869 = vpack.c.bf16 %v743, %v736
          %v870 = vpack.c.bf16 %v744, %v737
          %v871 = vpack.c.bf16 %v745, %v738
          %v872 = vpack.c.bf16 %v746, %v739
          %v873 = vpack.c.bf16 %v747, %v740
          %v874 = vpack.c.bf16 %v748, %v741
          %v875 = vpack.c.bf16 %v749, %v742
          %v876 = vpack.c.bf16 %v757, %v750
          %v877 = vpack.c.bf16 %v758, %v751
          %v878 = vpack.c.bf16 %v759, %v752
          %v879 = vpack.c.bf16 %v760, %v753
          %v880 = vpack.c.bf16 %v761, %v754
          %v881 = vpack.c.bf16 %v762, %v755
          %v882 = vpack.c.bf16 %v763, %v756
          %v883 = vpack.c.bf16 %v771, %v764
          %v884 = vpack.c.bf16 %v772, %v765
          %v885 = vpack.c.bf16 %v773, %v766
          %v886 = vpack.c.bf16 %v774, %v767
          %v887 = vpack.c.bf16 %v775, %v768
          %v888 = vpack.c.bf16 %v776, %v769
          %v889 = vpack.c.bf16 %v777, %v770
          %890 = vst [vmem:[#allocation2] sm:$0xff] %v778
          %891 = vst [vmem:[#allocation2 + $0x8] sm:$0xff] %v779
          %892 = vst [vmem:[#allocation2 + $0x10] sm:$0xff] %v780
          %893 = vst [vmem:[#allocation2 + $0x18] sm:$0xff] %v781
          %894 = vst [vmem:[#allocation2 + $0x20] sm:$0xff] %v782
          %895 = vst [vmem:[#allocation2 + $0x28] sm:$0xff] %v783
          %vm896 = vcmask 130048
          %897 = vst.msk [vmem:[#allocation2 + $0x30] sm:$0xff] %vm896, %v784
          %898 = vst [vmem:[#allocation2 + $0x38] sm:$0xff] %v785
          %899 = vst [vmem:[#allocation2 + $0x40] sm:$0xff] %v786
          %900 = vst [vmem:[#allocation2 + $0x48] sm:$0xff] %v787
          %901 = vst [vmem:[#allocation2 + $0x50] sm:$0xff] %v788
          %902 = vst [vmem:[#allocation2 + $0x58] sm:$0xff] %v789
          %903 = vst [vmem:[#allocation2 + $0x60] sm:$0xff] %v790
          %904 = vst.msk [vmem:[#allocation2 + $0x68] sm:$0xff] %vm896, %v791
          %905 = vst [vmem:[#allocation2 + $0x70] sm:$0xff] %v792
          %906 = vst [vmem:[#allocation2 + $0x78] sm:$0xff] %v793
          %907 = vst [vmem:[#allocation2 + $0x80] sm:$0xff] %v794
          %908 = vst [vmem:[#allocation2 + $0x88] sm:$0xff] %v795
          %909 = vst [vmem:[#allocation2 + $0x90] sm:$0xff] %v796
          %910 = vst [vmem:[#allocation2 + $0x98] sm:$0xff] %v797
          %911 = vst.msk [vmem:[#allocation2 + $0xa0] sm:$0xff] %vm896, %v798
          %912 = vst [vmem:[#allocation2 + $0xa8] sm:$0xff] %v799
          %913 = vst [vmem:[#allocation2 + $0xb0] sm:$0xff] %v800
          %914 = vst [vmem:[#allocation2 + $0xb8] sm:$0xff] %v801
          %915 = vst [vmem:[#allocation2 + $0xc0] sm:$0xff] %v802
          %916 = vst [vmem:[#allocation2 + $0xc8] sm:$0xff] %v803
          %917 = vst [vmem:[#allocation2 + $0xd0] sm:$0xff] %v804
          %918 = vst.msk [vmem:[#allocation2 + $0xd8] sm:$0xff] %vm896, %v805
          %919 = vst [vmem:[#allocation2 + $0xe0] sm:$0xff] %v806
          %920 = vst [vmem:[#allocation2 + $0xe8] sm:$0xff] %v807
          %921 = vst [vmem:[#allocation2 + $0xf0] sm:$0xff] %v808
          %922 = vst [vmem:[#allocation2 + $0xf8] sm:$0xff] %v809
          %923 = vst [vmem:[#allocation2 + $0x100] sm:$0xff] %v810
          %924 = vst [vmem:[#allocation2 + $0x108] sm:$0xff] %v811
          %925 = vst.msk [vmem:[#allocation2 + $0x110] sm:$0xff] %vm896, %v812
          %926 = vst [vmem:[#allocation2 + $0x118] sm:$0xff] %v813
          %927 = vst [vmem:[#allocation2 + $0x120] sm:$0xff] %v814
          %928 = vst [vmem:[#allocation2 + $0x128] sm:$0xff] %v815
          %929 = vst [vmem:[#allocation2 + $0x130] sm:$0xff] %v816
          %930 = vst [vmem:[#allocation2 + $0x138] sm:$0xff] %v817
          %931 = vst [vmem:[#allocation2 + $0x140] sm:$0xff] %v818
          %932 = vst.msk [vmem:[#allocation2 + $0x148] sm:$0xff] %vm896, %v819
          %933 = vst [vmem:[#allocation2 + $0x150] sm:$0xff] %v820
          %934 = vst [vmem:[#allocation2 + $0x158] sm:$0xff] %v821
          %935 = vst [vmem:[#allocation2 + $0x160] sm:$0xff] %v822
          %936 = vst [vmem:[#allocation2 + $0x168] sm:$0xff] %v823
          %937 = vst [vmem:[#allocation2 + $0x170] sm:$0xff] %v824
          %938 = vst [vmem:[#allocation2 + $0x178] sm:$0xff] %v825
          %939 = vst.msk [vmem:[#allocation2 + $0x180] sm:$0xff] %vm896, %v826
          %940 = vst [vmem:[#allocation2 + $0x188] sm:$0xff] %v827
          %941 = vst [vmem:[#allocation2 + $0x190] sm:$0xff] %v828
          %942 = vst [vmem:[#allocation2 + $0x198] sm:$0xff] %v829
          %943 = vst [vmem:[#allocation2 + $0x1a0] sm:$0xff] %v830
          %944 = vst [vmem:[#allocation2 + $0x1a8] sm:$0xff] %v831
          %945 = vst [vmem:[#allocation2 + $0x1b0] sm:$0xff] %v832
          %946 = vst.msk [vmem:[#allocation2 + $0x1b8] sm:$0xff] %vm896, %v833
          %947 = vst [vmem:[#allocation2 + $0x1c0] sm:$0xff] %v834
          %948 = vst [vmem:[#allocation2 + $0x1c8] sm:$0xff] %v835
          %949 = vst [vmem:[#allocation2 + $0x1d0] sm:$0xff] %v836
          %950 = vst [vmem:[#allocation2 + $0x1d8] sm:$0xff] %v837
          %951 = vst [vmem:[#allocation2 + $0x1e0] sm:$0xff] %v838
          %952 = vst [vmem:[#allocation2 + $0x1e8] sm:$0xff] %v839
          %953 = vst.msk [vmem:[#allocation2 + $0x1f0] sm:$0xff] %vm896, %v840
          %954 = vst [vmem:[#allocation2 + $0x1f8] sm:$0xff] %v841
          %955 = vst [vmem:[#allocation2 + $0x200] sm:$0xff] %v842
          %956 = vst [vmem:[#allocation2 + $0x208] sm:$0xff] %v843
          %957 = vst [vmem:[#allocation2 + $0x210] sm:$0xff] %v844
          %958 = vst [vmem:[#allocation2 + $0x218] sm:$0xff] %v845
          %959 = vst [vmem:[#allocation2 + $0x220] sm:$0xff] %v846
          %960 = vst.msk [vmem:[#allocation2 + $0x228] sm:$0xff] %vm896, %v847
          %961 = vst [vmem:[#allocation2 + $0x230] sm:$0xff] %v848
          %962 = vst [vmem:[#allocation2 + $0x238] sm:$0xff] %v849
          %963 = vst [vmem:[#allocation2 + $0x240] sm:$0xff] %v850
          %964 = vst [vmem:[#allocation2 + $0x248] sm:$0xff] %v851
          %965 = vst [vmem:[#allocation2 + $0x250] sm:$0xff] %v852
          %966 = vst [vmem:[#allocation2 + $0x258] sm:$0xff] %v853
          %967 = vst.msk [vmem:[#allocation2 + $0x260] sm:$0xff] %vm896, %v854
          %968 = vst [vmem:[#allocation2 + $0x268] sm:$0xff] %v855
          %969 = vst [vmem:[#allocation2 + $0x270] sm:$0xff] %v856
          %970 = vst [vmem:[#allocation2 + $0x278] sm:$0xff] %v857
          %971 = vst [vmem:[#allocation2 + $0x280] sm:$0xff] %v858
          %972 = vst [vmem:[#allocation2 + $0x288] sm:$0xff] %v859
          %973 = vst [vmem:[#allocation2 + $0x290] sm:$0xff] %v860
          %974 = vst.msk [vmem:[#allocation2 + $0x298] sm:$0xff] %vm896, %v861
          %975 = vst [vmem:[#allocation2 + $0x2a0] sm:$0xff] %v862
          %976 = vst [vmem:[#allocation2 + $0x2a8] sm:$0xff] %v863
          %977 = vst [vmem:[#allocation2 + $0x2b0] sm:$0xff] %v864
          %978 = vst [vmem:[#allocation2 + $0x2b8] sm:$0xff] %v865
          %979 = vst [vmem:[#allocation2 + $0x2c0] sm:$0xff] %v866
          %980 = vst [vmem:[#allocation2 + $0x2c8] sm:$0xff] %v867
          %981 = vst.msk [vmem:[#allocation2 + $0x2d0] sm:$0xff] %vm896, %v868
          %982 = vst [vmem:[#allocation2 + $0x2d8] sm:$0xff] %v869
          %983 = vst [vmem:[#allocation2 + $0x2e0] sm:$0xff] %v870
          %984 = vst [vmem:[#allocation2 + $0x2e8] sm:$0xff] %v871
          %985 = vst [vmem:[#allocation2 + $0x2f0] sm:$0xff] %v872
          %986 = vst [vmem:[#allocation2 + $0x2f8] sm:$0xff] %v873
          %987 = vst [vmem:[#allocation2 + $0x300] sm:$0xff] %v874
          %988 = vst.msk [vmem:[#allocation2 + $0x308] sm:$0xff] %vm896, %v875
          %989 = vst [vmem:[#allocation2 + $0x310] sm:$0xff] %v876
          %990 = vst [vmem:[#allocation2 + $0x318] sm:$0xff] %v877
          %991 = vst [vmem:[#allocation2 + $0x320] sm:$0xff] %v878
          %992 = vst [vmem:[#allocation2 + $0x328] sm:$0xff] %v879
          %993 = vst [vmem:[#allocation2 + $0x330] sm:$0xff] %v880
          %994 = vst [vmem:[#allocation2 + $0x338] sm:$0xff] %v881
          %995 = vst.msk [vmem:[#allocation2 + $0x340] sm:$0xff] %vm896, %v882
          %996 = vst [vmem:[#allocation2 + $0x348] sm:$0xff] %v883
          %997 = vst [vmem:[#allocation2 + $0x350] sm:$0xff] %v884
          %998 = vst [vmem:[#allocation2 + $0x358] sm:$0xff] %v885
          %999 = vst [vmem:[#allocation2 + $0x360] sm:$0xff] %v886
          %1000 = vst [vmem:[#allocation2 + $0x368] sm:$0xff] %v887
          %1001 = vst [vmem:[#allocation2 + $0x370] sm:$0xff] %v888
          %1002 = vst.msk [vmem:[#allocation2 + $0x378] sm:$0xff] %vm896, %v889
          %v1003 = vadd.f32 %v554, %v555
          %v1004 = vadd.f32 %v1003, %v556
          %v1005 = vadd.f32 %v1004, %v557
          %v1006 = vadd.f32 %v1005, %v558
          %v1007 = vadd.f32 %v1006, %v559
          %v1008 = vsel %vm896, %v560, 0.0
          %v1009 = vadd.f32 %v1007, %v1008
          %1010 = vadd.xlane.f32.xlu0 %v1009
          %v1011 = vpop.xlane.xlu0 %1010
          %v1012 = vadd.f32 %v561, %v562
          %v1013 = vadd.f32 %v1012, %v563
          %v1014 = vadd.f32 %v1013, %v564
          %v1015 = vadd.f32 %v1014, %v565
          %v1016 = vadd.f32 %v1015, %v566
          %v1017 = vsel %vm896, %v567, 0.0
          %v1018 = vadd.f32 %v1016, %v1017
          %1019 = vadd.xlane.f32.xlu0 %v1018
          %v1020 = vpop.xlane.xlu0 %1019
          %v1021 = vadd.f32 %v568, %v569
          %v1022 = vadd.f32 %v1021, %v570
          %v1023 = vadd.f32 %v1022, %v571
          %v1024 = vadd.f32 %v1023, %v572
          %v1025 = vadd.f32 %v1024, %v573
          %v1026 = vsel %vm896, %v574, 0.0
          %v1027 = vadd.f32 %v1025, %v1026
          %1028 = vadd.xlane.f32.xlu0 %v1027
          %v1029 = vpop.xlane.xlu0 %1028
          %v1030 = vadd.f32 %v575, %v576
          %v1031 = vadd.f32 %v1030, %v577
          %v1032 = vadd.f32 %v1031, %v578
          %v1033 = vadd.f32 %v1032, %v579
          %v1034 = vadd.f32 %v1033, %v580
          %v1035 = vsel %vm896, %v581, 0.0
          %v1036 = vadd.f32 %v1034, %v1035
          %1037 = vadd.xlane.f32.xlu0 %v1036
          %v1038 = vpop.xlane.xlu0 %1037
          %v1039 = vadd.f32 %v582, %v583
          %v1040 = vadd.f32 %v1039, %v584
          %v1041 = vadd.f32 %v1040, %v585
          %v1042 = vadd.f32 %v1041, %v586
          %v1043 = vadd.f32 %v1042, %v587
          %v1044 = vsel %vm896, %v588, 0.0
          %v1045 = vadd.f32 %v1043, %v1044
          %1046 = vadd.xlane.f32.xlu0 %v1045
          %v1047 = vpop.xlane.xlu0 %1046
          %v1048 = vadd.f32 %v589, %v590
          %v1049 = vadd.f32 %v1048, %v591
          %v1050 = vadd.f32 %v1049, %v592
          %v1051 = vadd.f32 %v1050, %v593
          %v1052 = vadd.f32 %v1051, %v594
          %v1053 = vsel %vm896, %v595, 0.0
          %v1054 = vadd.f32 %v1052, %v1053
          %1055 = vadd.xlane.f32.xlu0 %v1054
          %v1056 = vpop.xlane.xlu0 %1055
          %v1057 = vadd.f32 %v596, %v597
          %v1058 = vadd.f32 %v1057, %v598
          %v1059 = vadd.f32 %v1058, %v599
          %v1060 = vadd.f32 %v1059, %v600
          %v1061 = vadd.f32 %v1060, %v601
          %v1062 = vsel %vm896, %v602, 0.0
          %v1063 = vadd.f32 %v1061, %v1062
          %1064 = vadd.xlane.f32.xlu0 %v1063
          %v1065 = vpop.xlane.xlu0 %1064
          %v1066 = vadd.f32 %v603, %v604
          %v1067 = vadd.f32 %v1066, %v605
          %v1068 = vadd.f32 %v1067, %v606
          %v1069 = vadd.f32 %v1068, %v607
          %v1070 = vadd.f32 %v1069, %v608
          %v1071 = vsel %vm896, %v609, 0.0
          %v1072 = vadd.f32 %v1070, %v1071
          %1073 = vadd.xlane.f32.xlu0 %v1072
          %v1074 = vpop.xlane.xlu0 %1073
          %v1075 = vadd.f32 %v610, %v611
          %v1076 = vadd.f32 %v1075, %v612
          %v1077 = vadd.f32 %v1076, %v613
          %v1078 = vadd.f32 %v1077, %v614
          %v1079 = vadd.f32 %v1078, %v615
          %v1080 = vsel %vm896, %v616, 0.0
          %v1081 = vadd.f32 %v1079, %v1080
          %1082 = vadd.xlane.f32.xlu0 %v1081
          %v1083 = vpop.xlane.xlu0 %1082
          %v1084 = vadd.f32 %v617, %v618
          %v1085 = vadd.f32 %v1084, %v619
          %v1086 = vadd.f32 %v1085, %v620
          %v1087 = vadd.f32 %v1086, %v621
          %v1088 = vadd.f32 %v1087, %v622
          %v1089 = vsel %vm896, %v623, 0.0
          %v1090 = vadd.f32 %v1088, %v1089
          %1091 = vadd.xlane.f32.xlu0 %v1090
          %v1092 = vpop.xlane.xlu0 %1091
          %v1093 = vadd.f32 %v624, %v625
          %v1094 = vadd.f32 %v1093, %v626
          %v1095 = vadd.f32 %v1094, %v627
          %v1096 = vadd.f32 %v1095, %v628
          %v1097 = vadd.f32 %v1096, %v629
          %v1098 = vsel %vm896, %v630, 0.0
          %v1099 = vadd.f32 %v1097, %v1098
          %1100 = vadd.xlane.f32.xlu0 %v1099
          %v1101 = vpop.xlane.xlu0 %1100
          %v1102 = vadd.f32 %v631, %v632
          %v1103 = vadd.f32 %v1102, %v633
          %v1104 = vadd.f32 %v1103, %v634
          %v1105 = vadd.f32 %v1104, %v635
          %v1106 = vadd.f32 %v1105, %v636
          %v1107 = vsel %vm896, %v637, 0.0
          %v1108 = vadd.f32 %v1106, %v1107
          %1109 = vadd.xlane.f32.xlu0 %v1108
          %v1110 = vpop.xlane.xlu0 %1109
          %v1111 = vadd.f32 %v638, %v639
          %v1112 = vadd.f32 %v1111, %v640
          %v1113 = vadd.f32 %v1112, %v641
          %v1114 = vadd.f32 %v1113, %v642
          %v1115 = vadd.f32 %v1114, %v643
          %v1116 = vsel %vm896, %v644, 0.0
          %v1117 = vadd.f32 %v1115, %v1116
          %1118 = vadd.xlane.f32.xlu0 %v1117
          %v1119 = vpop.xlane.xlu0 %1118
          %v1120 = vadd.f32 %v645, %v646
          %v1121 = vadd.f32 %v1120, %v647
          %v1122 = vadd.f32 %v1121, %v648
          %v1123 = vadd.f32 %v1122, %v649
          %v1124 = vadd.f32 %v1123, %v650
          %v1125 = vsel %vm896, %v651, 0.0
          %v1126 = vadd.f32 %v1124, %v1125
          %1127 = vadd.xlane.f32.xlu0 %v1126
          %v1128 = vpop.xlane.xlu0 %1127
          %v1129 = vadd.f32 %v652, %v653
          %v1130 = vadd.f32 %v1129, %v654
          %v1131 = vadd.f32 %v1130, %v655
          %v1132 = vadd.f32 %v1131, %v656
          %v1133 = vadd.f32 %v1132, %v657
          %v1134 = vsel %vm896, %v658, 0.0
          %v1135 = vadd.f32 %v1133, %v1134
          %1136 = vadd.xlane.f32.xlu0 %v1135
          %v1137 = vpop.xlane.xlu0 %1136
          %v1138 = vadd.f32 %v659, %v660
          %v1139 = vadd.f32 %v1138, %v661
          %v1140 = vadd.f32 %v1139, %v662
          %v1141 = vadd.f32 %v1140, %v663
          %v1142 = vadd.f32 %v1141, %v664
          %v1143 = vsel %vm896, %v665, 0.0
          %v1144 = vadd.f32 %v1142, %v1143
          %1145 = vadd.xlane.f32.xlu0 %v1144
          %v1146 = vpop.xlane.xlu0 %1145
          %v1147 = vadd.f32 %v666, %v667
          %v1148 = vadd.f32 %v1147, %v668
          %v1149 = vadd.f32 %v1148, %v669
          %v1150 = vadd.f32 %v1149, %v670
          %v1151 = vadd.f32 %v1150, %v671
          %v1152 = vsel %vm896, %v672, 0.0
          %v1153 = vadd.f32 %v1151, %v1152
          %1154 = vadd.xlane.f32.xlu0 %v1153
          %v1155 = vpop.xlane.xlu0 %1154
          %v1156 = vadd.f32 %v673, %v674
          %v1157 = vadd.f32 %v1156, %v675
          %v1158 = vadd.f32 %v1157, %v676
          %v1159 = vadd.f32 %v1158, %v677
          %v1160 = vadd.f32 %v1159, %v678
          %v1161 = vsel %vm896, %v679, 0.0
          %v1162 = vadd.f32 %v1160, %v1161
          %1163 = vadd.xlane.f32.xlu0 %v1162
          %v1164 = vpop.xlane.xlu0 %1163
          %v1165 = vadd.f32 %v680, %v681
          %v1166 = vadd.f32 %v1165, %v682
          %v1167 = vadd.f32 %v1166, %v683
          %v1168 = vadd.f32 %v1167, %v684
          %v1169 = vadd.f32 %v1168, %v685
          %v1170 = vsel %vm896, %v686, 0.0
          %v1171 = vadd.f32 %v1169, %v1170
          %1172 = vadd.xlane.f32.xlu0 %v1171
          %v1173 = vpop.xlane.xlu0 %1172
          %v1174 = vadd.f32 %v687, %v688
          %v1175 = vadd.f32 %v1174, %v689
          %v1176 = vadd.f32 %v1175, %v690
          %v1177 = vadd.f32 %v1176, %v691
          %v1178 = vadd.f32 %v1177, %v692
          %v1179 = vsel %vm896, %v693, 0.0
          %v1180 = vadd.f32 %v1178, %v1179
          %1181 = vadd.xlane.f32.xlu0 %v1180
          %v1182 = vpop.xlane.xlu0 %1181
          %v1183 = vadd.f32 %v694, %v695
          %v1184 = vadd.f32 %v1183, %v696
          %v1185 = vadd.f32 %v1184, %v697
          %v1186 = vadd.f32 %v1185, %v698
          %v1187 = vadd.f32 %v1186, %v699
          %v1188 = vsel %vm896, %v700, 0.0
          %v1189 = vadd.f32 %v1187, %v1188
          %1190 = vadd.xlane.f32.xlu0 %v1189
          %v1191 = vpop.xlane.xlu0 %1190
          %v1192 = vadd.f32 %v701, %v702
          %v1193 = vadd.f32 %v1192, %v703
          %v1194 = vadd.f32 %v1193, %v704
          %v1195 = vadd.f32 %v1194, %v705
          %v1196 = vadd.f32 %v1195, %v706
          %v1197 = vsel %vm896, %v707, 0.0
          %v1198 = vadd.f32 %v1196, %v1197
          %1199 = vadd.xlane.f32.xlu0 %v1198
          %v1200 = vpop.xlane.xlu0 %1199
          %v1201 = vadd.f32 %v708, %v709
          %v1202 = vadd.f32 %v1201, %v710
          %v1203 = vadd.f32 %v1202, %v711
          %v1204 = vadd.f32 %v1203, %v712
          %v1205 = vadd.f32 %v1204, %v713
          %v1206 = vsel %vm896, %v714, 0.0
          %v1207 = vadd.f32 %v1205, %v1206
          %1208 = vadd.xlane.f32.xlu0 %v1207
          %v1209 = vpop.xlane.xlu0 %1208
          %v1210 = vadd.f32 %v715, %v716
          %v1211 = vadd.f32 %v1210, %v717
          %v1212 = vadd.f32 %v1211, %v718
          %v1213 = vadd.f32 %v1212, %v719
          %v1214 = vadd.f32 %v1213, %v720
          %v1215 = vsel %vm896, %v721, 0.0
          %v1216 = vadd.f32 %v1214, %v1215
          %1217 = vadd.xlane.f32.xlu0 %v1216
          %v1218 = vpop.xlane.xlu0 %1217
          %v1219 = vadd.f32 %v722, %v723
          %v1220 = vadd.f32 %v1219, %v724
          %v1221 = vadd.f32 %v1220, %v725
          %v1222 = vadd.f32 %v1221, %v726
          %v1223 = vadd.f32 %v1222, %v727
          %v1224 = vsel %vm896, %v728, 0.0
          %v1225 = vadd.f32 %v1223, %v1224
          %1226 = vadd.xlane.f32.xlu0 %v1225
          %v1227 = vpop.xlane.xlu0 %1226
          %v1228 = vadd.f32 %v729, %v730
          %v1229 = vadd.f32 %v1228, %v731
          %v1230 = vadd.f32 %v1229, %v732
          %v1231 = vadd.f32 %v1230, %v733
          %v1232 = vadd.f32 %v1231, %v734
          %v1233 = vsel %vm896, %v735, 0.0
          %v1234 = vadd.f32 %v1232, %v1233
          %1235 = vadd.xlane.f32.xlu0 %v1234
          %v1236 = vpop.xlane.xlu0 %1235
          %v1237 = vadd.f32 %v736, %v737
          %v1238 = vadd.f32 %v1237, %v738
          %v1239 = vadd.f32 %v1238, %v739
          %v1240 = vadd.f32 %v1239, %v740
          %v1241 = vadd.f32 %v1240, %v741
          %v1242 = vsel %vm896, %v742, 0.0
          %v1243 = vadd.f32 %v1241, %v1242
          %1244 = vadd.xlane.f32.xlu0 %v1243
          %v1245 = vpop.xlane.xlu0 %1244
          %v1246 = vadd.f32 %v743, %v744
          %v1247 = vadd.f32 %v1246, %v745
          %v1248 = vadd.f32 %v1247, %v746
          %v1249 = vadd.f32 %v1248, %v747
          %v1250 = vadd.f32 %v1249, %v748
          %v1251 = vsel %vm896, %v749, 0.0
          %v1252 = vadd.f32 %v1250, %v1251
          %1253 = vadd.xlane.f32.xlu0 %v1252
          %v1254 = vpop.xlane.xlu0 %1253
          %v1255 = vadd.f32 %v750, %v751
          %v1256 = vadd.f32 %v1255, %v752
          %v1257 = vadd.f32 %v1256, %v753
          %v1258 = vadd.f32 %v1257, %v754
          %v1259 = vadd.f32 %v1258, %v755
          %v1260 = vsel %vm896, %v756, 0.0
          %v1261 = vadd.f32 %v1259, %v1260
          %1262 = vadd.xlane.f32.xlu0 %v1261
          %v1263 = vpop.xlane.xlu0 %1262
          %v1264 = vadd.f32 %v757, %v758
          %v1265 = vadd.f32 %v1264, %v759
          %v1266 = vadd.f32 %v1265, %v760
          %v1267 = vadd.f32 %v1266, %v761
          %v1268 = vadd.f32 %v1267, %v762
          %v1269 = vsel %vm896, %v763, 0.0
          %v1270 = vadd.f32 %v1268, %v1269
          %1271 = vadd.xlane.f32.xlu0 %v1270
          %v1272 = vpop.xlane.xlu0 %1271
          %v1273 = vadd.f32 %v764, %v765
          %v1274 = vadd.f32 %v1273, %v766
          %v1275 = vadd.f32 %v1274, %v767
          %v1276 = vadd.f32 %v1275, %v768
          %v1277 = vadd.f32 %v1276, %v769
          %v1278 = vsel %vm896, %v770, 0.0
          %v1279 = vadd.f32 %v1277, %v1278
          %1280 = vadd.xlane.f32.xlu0 %v1279
          %v1281 = vpop.xlane.xlu0 %1280
          %v1282 = vadd.f32 %v771, %v772
          %v1283 = vadd.f32 %v1282, %v773
          %v1284 = vadd.f32 %v1283, %v774
          %v1285 = vadd.f32 %v1284, %v775
          %v1286 = vadd.f32 %v1285, %v776
          %v1287 = vsel %vm896, %v777, 0.0
          %v1288 = vadd.f32 %v1286, %v1287
          %1289 = vadd.xlane.f32.xlu0 %v1288
          %v1290 = vpop.xlane.xlu0 %1289
          %vm1291 = vcmask 7168
          %1292 = vst.msk [vmem:[#allocation3] sm:$0xff] %vm1291, %v1011
          %1293 = vst.msk [vmem:[#allocation3 + $0x8] sm:$0xff] %vm1291, %v1020
          %1294 = vst.msk [vmem:[#allocation3 + $0x10] sm:$0xff] %vm1291, %v1029
          %1295 = vst.msk [vmem:[#allocation3 + $0x18] sm:$0xff] %vm1291, %v1038
          %1296 = vst.msk [vmem:[#allocation3 + $0x20] sm:$0xff] %vm1291, %v1047
          %1297 = vst.msk [vmem:[#allocation3 + $0x28] sm:$0xff] %vm1291, %v1056
          %1298 = vst.msk [vmem:[#allocation3 + $0x30] sm:$0xff] %vm1291, %v1065
          %1299 = vst.msk [vmem:[#allocation3 + $0x38] sm:$0xff] %vm1291, %v1074
          %1300 = vst.msk [vmem:[#allocation3 + $0x40] sm:$0xff] %vm1291, %v1083
          %1301 = vst.msk [vmem:[#allocation3 + $0x48] sm:$0xff] %vm1291, %v1092
          %1302 = vst.msk [vmem:[#allocation3 + $0x50] sm:$0xff] %vm1291, %v1101
          %1303 = vst.msk [vmem:[#allocation3 + $0x58] sm:$0xff] %vm1291, %v1110
          %1304 = vst.msk [vmem:[#allocation3 + $0x60] sm:$0xff] %vm1291, %v1119
          %1305 = vst.msk [vmem:[#allocation3 + $0x68] sm:$0xff] %vm1291, %v1128
          %1306 = vst.msk [vmem:[#allocation3 + $0x70] sm:$0xff] %vm1291, %v1137
          %1307 = vst.msk [vmem:[#allocation3 + $0x78] sm:$0xff] %vm1291, %v1146
          %1308 = vst.msk [vmem:[#allocation3 + $0x80] sm:$0xff] %vm1291, %v1155
          %1309 = vst.msk [vmem:[#allocation3 + $0x88] sm:$0xff] %vm1291, %v1164
          %1310 = vst.msk [vmem:[#allocation3 + $0x90] sm:$0xff] %vm1291, %v1173
          %1311 = vst.msk [vmem:[#allocation3 + $0x98] sm:$0xff] %vm1291, %v1182
          %1312 = vst.msk [vmem:[#allocation3 + $0xa0] sm:$0xff] %vm1291, %v1191
          %1313 = vst.msk [vmem:[#allocation3 + $0xa8] sm:$0xff] %vm1291, %v1200
          %1314 = vst.msk [vmem:[#allocation3 + $0xb0] sm:$0xff] %vm1291, %v1209
          %1315 = vst.msk [vmem:[#allocation3 + $0xb8] sm:$0xff] %vm1291, %v1218
          %1316 = vst.msk [vmem:[#allocation3 + $0xc0] sm:$0xff] %vm1291, %v1227
          %1317 = vst.msk [vmem:[#allocation3 + $0xc8] sm:$0xff] %vm1291, %v1236
          %1318 = vst.msk [vmem:[#allocation3 + $0xd0] sm:$0xff] %vm1291, %v1245
          %1319 = vst.msk [vmem:[#allocation3 + $0xd8] sm:$0xff] %vm1291, %v1254
          %1320 = vst.msk [vmem:[#allocation3 + $0xe0] sm:$0xff] %vm1291, %v1263
          %1321 = vst.msk [vmem:[#allocation3 + $0xe8] sm:$0xff] %vm1291, %v1272
          %1322 = vst.msk [vmem:[#allocation3 + $0xf0] sm:$0xff] %vm1291, %v1281
          %1323 = vst.msk [vmem:[#allocation3 + $0xf8] sm:$0xff] %vm1291, %v1290
        $region44: #{tpu_custom_call.1} parent=35 // pred_fallthru
          _
        %v1324 = vld [vmem:[%s249] sm:$0xff]
        %v1325 = vld [vmem:[%s249 + $0x8] sm:$0xff]
        %v1326 = vld [vmem:[%s249 + $0x10] sm:$0xff]
        %v1327 = vld [vmem:[%s249 + $0x18] sm:$0xff]
        %v1328 = vld [vmem:[%s249 + $0x20] sm:$0xff]
        %v1329 = vld [vmem:[%s249 + $0x28] sm:$0xff]
        %v1330 = vld [vmem:[%s249 + $0x30] sm:$0xff]
        %v1331 = vld [vmem:[%s249 + $0x38] sm:$0xff]
        %v1332 = vld [vmem:[%s249 + $0x40] sm:$0xff]
        %v1333 = vld [vmem:[%s249 + $0x48] sm:$0xff]
        %v1334 = vld [vmem:[%s249 + $0x50] sm:$0xff]
        %v1335 = vld [vmem:[%s249 + $0x58] sm:$0xff]
        %v1336 = vld [vmem:[%s249 + $0x60] sm:$0xff]
        %v1337 = vld [vmem:[%s249 + $0x68] sm:$0xff]
        %v1338 = vld [vmem:[%s249 + $0x70] sm:$0xff]
        %v1339 = vld [vmem:[%s249 + $0x78] sm:$0xff]
        %v1340 = vld [vmem:[%s249 + $0x80] sm:$0xff]
        %v1341 = vld [vmem:[%s249 + $0x88] sm:$0xff]
        %v1342 = vld [vmem:[%s249 + $0x90] sm:$0xff]
        %v1343 = vld [vmem:[%s249 + $0x98] sm:$0xff]
        %v1344 = vld [vmem:[%s249 + $0xa0] sm:$0xff]
        %v1345 = vld [vmem:[%s249 + $0xa8] sm:$0xff]
        %v1346 = vld [vmem:[%s249 + $0xb0] sm:$0xff]
        %v1347 = vld [vmem:[%s249 + $0xb8] sm:$0xff]
        %v1348 = vld [vmem:[%s249 + $0xc0] sm:$0xff]
        %v1349 = vld [vmem:[%s249 + $0xc8] sm:$0xff]
        %v1350 = vld [vmem:[%s249 + $0xd0] sm:$0xff]
        %v1351 = vld [vmem:[%s249 + $0xd8] sm:$0xff]
        %v1352 = vld [vmem:[%s249 + $0xe0] sm:$0xff]
        %v1353 = vld [vmem:[%s249 + $0xe8] sm:$0xff]
        %v1354 = vld [vmem:[%s249 + $0xf0] sm:$0xff]
        %v1355 = vld [vmem:[%s249 + $0xf8] sm:$0xff]
        %v1356 = vld [vmem:[#allocation2] sm:$0xff]
        %v1357 = vld [vmem:[#allocation2 + $0x8] sm:$0xff]
        %v1358 = vld [vmem:[#allocation2 + $0x10] sm:$0xff]
        %v1359 = vld [vmem:[#allocation2 + $0x18] sm:$0xff]
        %v1360 = vld [vmem:[#allocation2 + $0x20] sm:$0xff]
        %v1361 = vld [vmem:[#allocation2 + $0x28] sm:$0xff]
        %v1362 = vld [vmem:[#allocation2 + $0x30] sm:$0xff]
        %v1363 = vld [vmem:[#allocation2 + $0x38] sm:$0xff]
        %v1364 = vld [vmem:[#allocation2 + $0x40] sm:$0xff]
        %v1365 = vld [vmem:[#allocation2 + $0x48] sm:$0xff]
        %v1366 = vld [vmem:[#allocation2 + $0x50] sm:$0xff]
        %v1367 = vld [vmem:[#allocation2 + $0x58] sm:$0xff]
        %v1368 = vld [vmem:[#allocation2 + $0x60] sm:$0xff]
        %v1369 = vld [vmem:[#allocation2 + $0x68] sm:$0xff]
        %v1370 = vld [vmem:[#allocation2 + $0x70] sm:$0xff]
        %v1371 = vld [vmem:[#allocation2 + $0x78] sm:$0xff]
        %v1372 = vld [vmem:[#allocation2 + $0x80] sm:$0xff]
        %v1373 = vld [vmem:[#allocation2 + $0x88] sm:$0xff]
        %v1374 = vld [vmem:[#allocation2 + $0x90] sm:$0xff]
        %v1375 = vld [vmem:[#allocation2 + $0x98] sm:$0xff]
        %v1376 = vld [vmem:[#allocation2 + $0xa0] sm:$0xff]
        %v1377 = vld [vmem:[#allocation2 + $0xa8] sm:$0xff]
        %v1378 = vld [vmem:[#allocation2 + $0xb0] sm:$0xff]
        %v1379 = vld [vmem:[#allocation2 + $0xb8] sm:$0xff]
        %v1380 = vld [vmem:[#allocation2 + $0xc0] sm:$0xff]
        %v1381 = vld [vmem:[#allocation2 + $0xc8] sm:$0xff]
        %v1382 = vld [vmem:[#allocation2 + $0xd0] sm:$0xff]
        %v1383 = vld [vmem:[#allocation2 + $0xd8] sm:$0xff]
        %v1384 = vld [vmem:[#allocation2 + $0xe0] sm:$0xff]
        %v1385 = vld [vmem:[#allocation2 + $0xe8] sm:$0xff]
        %v1386 = vld [vmem:[#allocation2 + $0xf0] sm:$0xff]
        %v1387 = vld [vmem:[#allocation2 + $0xf8] sm:$0xff]
        %v1388 = vld [vmem:[#allocation2 + $0x100] sm:$0xff]
        %v1389 = vld [vmem:[#allocation2 + $0x108] sm:$0xff]
        %v1390 = vld [vmem:[#allocation2 + $0x110] sm:$0xff]
        %v1391 = vld [vmem:[#allocation2 + $0x118] sm:$0xff]
        %v1392 = vld [vmem:[#allocation2 + $0x120] sm:$0xff]
        %v1393 = vld [vmem:[#allocation2 + $0x128] sm:$0xff]
        %v1394 = vld [vmem:[#allocation2 + $0x130] sm:$0xff]
        %v1395 = vld [vmem:[#allocation2 + $0x138] sm:$0xff]
        %v1396 = vld [vmem:[#allocation2 + $0x140] sm:$0xff]
        %v1397 = vld [vmem:[#allocation2 + $0x148] sm:$0xff]
        %v1398 = vld [vmem:[#allocation2 + $0x150] sm:$0xff]
        %v1399 = vld [vmem:[#allocation2 + $0x158] sm:$0xff]
        %v1400 = vld [vmem:[#allocation2 + $0x160] sm:$0xff]
        %v1401 = vld [vmem:[#allocation2 + $0x168] sm:$0xff]
        %v1402 = vld [vmem:[#allocation2 + $0x170] sm:$0xff]
        %v1403 = vld [vmem:[#allocation2 + $0x178] sm:$0xff]
        %v1404 = vld [vmem:[#allocation2 + $0x180] sm:$0xff]
        %v1405 = vld [vmem:[#allocation2 + $0x188] sm:$0xff]
        %v1406 = vld [vmem:[#allocation2 + $0x190] sm:$0xff]
        %v1407 = vld [vmem:[#allocation2 + $0x198] sm:$0xff]
        %v1408 = vld [vmem:[#allocation2 + $0x1a0] sm:$0xff]
        %v1409 = vld [vmem:[#allocation2 + $0x1a8] sm:$0xff]
        %v1410 = vld [vmem:[#allocation2 + $0x1b0] sm:$0xff]
        %v1411 = vld [vmem:[#allocation2 + $0x1b8] sm:$0xff]
        %v1412 = vld [vmem:[#allocation2 + $0x1c0] sm:$0xff]
        %v1413 = vld [vmem:[#allocation2 + $0x1c8] sm:$0xff]
        %v1414 = vld [vmem:[#allocation2 + $0x1d0] sm:$0xff]
        %v1415 = vld [vmem:[#allocation2 + $0x1d8] sm:$0xff]
        %v1416 = vld [vmem:[#allocation2 + $0x1e0] sm:$0xff]
        %v1417 = vld [vmem:[#allocation2 + $0x1e8] sm:$0xff]
        %v1418 = vld [vmem:[#allocation2 + $0x1f0] sm:$0xff]
        %v1419 = vld [vmem:[#allocation2 + $0x1f8] sm:$0xff]
        %v1420 = vld [vmem:[#allocation2 + $0x200] sm:$0xff]
        %v1421 = vld [vmem:[#allocation2 + $0x208] sm:$0xff]
        %v1422 = vld [vmem:[#allocation2 + $0x210] sm:$0xff]
        %v1423 = vld [vmem:[#allocation2 + $0x218] sm:$0xff]
        %v1424 = vld [vmem:[#allocation2 + $0x220] sm:$0xff]
        %v1425 = vld [vmem:[#allocation2 + $0x228] sm:$0xff]
        %v1426 = vld [vmem:[#allocation2 + $0x230] sm:$0xff]
        %v1427 = vld [vmem:[#allocation2 + $0x238] sm:$0xff]
        %v1428 = vld [vmem:[#allocation2 + $0x240] sm:$0xff]
        %v1429 = vld [vmem:[#allocation2 + $0x248] sm:$0xff]
        %v1430 = vld [vmem:[#allocation2 + $0x250] sm:$0xff]
        %v1431 = vld [vmem:[#allocation2 + $0x258] sm:$0xff]
        %v1432 = vld [vmem:[#allocation2 + $0x260] sm:$0xff]
        %v1433 = vld [vmem:[#allocation2 + $0x268] sm:$0xff]
        %v1434 = vld [vmem:[#allocation2 + $0x270] sm:$0xff]
        %v1435 = vld [vmem:[#allocation2 + $0x278] sm:$0xff]
        %v1436 = vld [vmem:[#allocation2 + $0x280] sm:$0xff]
        %v1437 = vld [vmem:[#allocation2 + $0x288] sm:$0xff]
        %v1438 = vld [vmem:[#allocation2 + $0x290] sm:$0xff]
        %v1439 = vld [vmem:[#allocation2 + $0x298] sm:$0xff]
        %v1440 = vld [vmem:[#allocation2 + $0x2a0] sm:$0xff]
        %v1441 = vld [vmem:[#allocation2 + $0x2a8] sm:$0xff]
        %v1442 = vld [vmem:[#allocation2 + $0x2b0] sm:$0xff]
        %v1443 = vld [vmem:[#allocation2 + $0x2b8] sm:$0xff]
        %v1444 = vld [vmem:[#allocation2 + $0x2c0] sm:$0xff]
        %v1445 = vld [vmem:[#allocation2 + $0x2c8] sm:$0xff]
        %v1446 = vld [vmem:[#allocation2 + $0x2d0] sm:$0xff]
        %v1447 = vld [vmem:[#allocation2 + $0x2d8] sm:$0xff]
        %v1448 = vld [vmem:[#allocation2 + $0x2e0] sm:$0xff]
        %v1449 = vld [vmem:[#allocation2 + $0x2e8] sm:$0xff]
        %v1450 = vld [vmem:[#allocation2 + $0x2f0] sm:$0xff]
        %v1451 = vld [vmem:[#allocation2 + $0x2f8] sm:$0xff]
        %v1452 = vld [vmem:[#allocation2 + $0x300] sm:$0xff]
        %v1453 = vld [vmem:[#allocation2 + $0x308] sm:$0xff]
        %v1454 = vld [vmem:[#allocation2 + $0x310] sm:$0xff]
        %v1455 = vld [vmem:[#allocation2 + $0x318] sm:$0xff]
        %v1456 = vld [vmem:[#allocation2 + $0x320] sm:$0xff]
        %v1457 = vld [vmem:[#allocation2 + $0x328] sm:$0xff]
        %v1458 = vld [vmem:[#allocation2 + $0x330] sm:$0xff]
        %v1459 = vld [vmem:[#allocation2 + $0x338] sm:$0xff]
        %v1460 = vld [vmem:[#allocation2 + $0x340] sm:$0xff]
        %v1461 = vld [vmem:[#allocation2 + $0x348] sm:$0xff]
        %v1462 = vld [vmem:[#allocation2 + $0x350] sm:$0xff]
        %v1463 = vld [vmem:[#allocation2 + $0x358] sm:$0xff]
        %v1464 = vld [vmem:[#allocation2 + $0x360] sm:$0xff]
        %v1465 = vld [vmem:[#allocation2 + $0x368] sm:$0xff]
        %v1466 = vld [vmem:[#allocation2 + $0x370] sm:$0xff]
        %v1467 = vld [vmem:[#allocation2 + $0x378] sm:$0xff]
        %v1500 = vunpack.c.l.b16 %v1324
        %v1501 = vunpack.c.h.b16 %v1324
        %v1502 = vunpack.c.l.b16 %v1325
        %v1503 = vunpack.c.h.b16 %v1325
        %v1504 = vunpack.c.l.b16 %v1326
        %v1505 = vunpack.c.h.b16 %v1326
        %v1506 = vunpack.c.l.b16 %v1327
        %v1507 = vunpack.c.h.b16 %v1327
        %v1508 = vunpack.c.l.b16 %v1328
        %v1509 = vunpack.c.h.b16 %v1328
        %v1510 = vunpack.c.l.b16 %v1329
        %v1511 = vunpack.c.h.b16 %v1329
        %v1512 = vunpack.c.l.b16 %v1330
        %v1513 = vunpack.c.h.b16 %v1330
        %v1514 = vunpack.c.l.b16 %v1331
        %v1515 = vunpack.c.h.b16 %v1331
        %v1516 = vunpack.c.l.b16 %v1332
        %v1517 = vunpack.c.h.b16 %v1332
        %v1518 = vunpack.c.l.b16 %v1333
        %v1519 = vunpack.c.h.b16 %v1333
        %v1520 = vunpack.c.l.b16 %v1334
        %v1521 = vunpack.c.h.b16 %v1334
        %v1522 = vunpack.c.l.b16 %v1335
        %v1523 = vunpack.c.h.b16 %v1335
        %v1524 = vunpack.c.l.b16 %v1336
        %v1525 = vunpack.c.h.b16 %v1336
        %v1526 = vunpack.c.l.b16 %v1337
        %v1527 = vunpack.c.h.b16 %v1337
        %v1528 = vunpack.c.l.b16 %v1338
        %v1529 = vunpack.c.h.b16 %v1338
        %v1530 = vunpack.c.l.b16 %v1339
        %v1531 = vunpack.c.h.b16 %v1339
        %v1532 = vunpack.c.l.b16 %v1340
        %v1533 = vunpack.c.h.b16 %v1340
        %v1534 = vunpack.c.l.b16 %v1341
        %v1535 = vunpack.c.h.b16 %v1341
        %v1536 = vunpack.c.l.b16 %v1342
        %v1537 = vunpack.c.h.b16 %v1342
        %v1538 = vunpack.c.l.b16 %v1343
        %v1539 = vunpack.c.h.b16 %v1343
        %v1540 = vunpack.c.l.b16 %v1344
        %v1541 = vunpack.c.h.b16 %v1344
        %v1542 = vunpack.c.l.b16 %v1345
        %v1543 = vunpack.c.h.b16 %v1345
        %v1544 = vunpack.c.l.b16 %v1346
        %v1545 = vunpack.c.h.b16 %v1346
        %v1546 = vunpack.c.l.b16 %v1347
        %v1547 = vunpack.c.h.b16 %v1347
        %v1548 = vunpack.c.l.b16 %v1348
        %v1549 = vunpack.c.h.b16 %v1348
        %v1550 = vunpack.c.l.b16 %v1349
        %v1551 = vunpack.c.h.b16 %v1349
        %v1552 = vunpack.c.l.b16 %v1350
        %v1553 = vunpack.c.h.b16 %v1350
        %v1554 = vunpack.c.l.b16 %v1351
        %v1555 = vunpack.c.h.b16 %v1351
        %v1556 = vunpack.c.l.b16 %v1352
        %v1557 = vunpack.c.h.b16 %v1352
        %v1558 = vunpack.c.l.b16 %v1353
        %v1559 = vunpack.c.h.b16 %v1353
        %v1560 = vunpack.c.l.b16 %v1354
        %v1561 = vunpack.c.h.b16 %v1354
        %v1562 = vunpack.c.l.b16 %v1355
        %v1563 = vunpack.c.h.b16 %v1355
        %v1564 = vpack.c.b16 %v1502, %v1500
        %v1565 = vpack.c.b16 %v1503, %v1501
        %v1566 = vpack.c.b16 %v1506, %v1504
        %v1567 = vpack.c.b16 %v1507, %v1505
        %v1568 = vpack.c.b16 %v1510, %v1508
        %v1569 = vpack.c.b16 %v1511, %v1509
        %v1570 = vpack.c.b16 %v1514, %v1512
        %v1571 = vpack.c.b16 %v1515, %v1513
        %v1572 = vpack.c.b16 %v1518, %v1516
        %v1573 = vpack.c.b16 %v1519, %v1517
        %v1574 = vpack.c.b16 %v1522, %v1520
        %v1575 = vpack.c.b16 %v1523, %v1521
        %v1576 = vpack.c.b16 %v1526, %v1524
        %v1577 = vpack.c.b16 %v1527, %v1525
        %v1578 = vpack.c.b16 %v1530, %v1528
        %v1579 = vpack.c.b16 %v1531, %v1529
        %v1580 = vpack.c.b16 %v1534, %v1532
        %v1581 = vpack.c.b16 %v1535, %v1533
        %v1582 = vpack.c.b16 %v1538, %v1536
        %v1583 = vpack.c.b16 %v1539, %v1537
        %v1584 = vpack.c.b16 %v1542, %v1540
        %v1585 = vpack.c.b16 %v1543, %v1541
        %v1586 = vpack.c.b16 %v1546, %v1544
        %v1587 = vpack.c.b16 %v1547, %v1545
        %v1588 = vpack.c.b16 %v1550, %v1548
        %v1589 = vpack.c.b16 %v1551, %v1549
        %v1590 = vpack.c.b16 %v1554, %v1552
        %v1591 = vpack.c.b16 %v1555, %v1553
        %v1592 = vpack.c.b16 %v1558, %v1556
        %v1593 = vpack.c.b16 %v1559, %v1557
        %v1594 = vpack.c.b16 %v1562, %v1560
        %v1595 = vpack.c.b16 %v1563, %v1561
        %1628 = vmatprep.subr.bf16.mxu0 %v1357
        %1629 = vmatpush1.bf16.msra.mxu0 %v1356
        %1630 = vmatprep.subr.bf16.mxu0 %v1364
        %1631 = vmatpush1.bf16.msra.mxu0 %v1363
        %1632 = vmatprep.subr.bf16.mxu0 %v1371
        %1633 = vmatpush1.bf16.msra.mxu0 %v1370
        %1634 = vmatprep.subr.bf16.mxu0 %v1378
        %1635 = vmatpush1.bf16.msra.mxu0 %v1377
        %1636 = vmatprep.subr.bf16.mxu0 %v1385
        %1637 = vmatpush1.bf16.msra.mxu0 %v1384
        %1638 = vmatprep.subr.bf16.mxu0 %v1392
        %1639 = vmatpush1.bf16.msra.mxu0 %v1391
        %1640 = vmatprep.subr.bf16.mxu0 %v1399
        %1641 = vmatpush1.bf16.msra.mxu0 %v1398
        %1642 = vmatprep.subr.bf16.mxu0 %v1406
        %1643 = vmatpush1.bf16.msra.mxu0 %v1405
        %1644 = vmatprep.subr.bf16.mxu0 %v1413
        %1645 = vmatpush1.bf16.msra.mxu0 %v1412
        %1646 = vmatprep.subr.bf16.mxu0 %v1420
        %1647 = vmatpush1.bf16.msra.mxu0 %v1419
        %1648 = vmatprep.subr.bf16.mxu0 %v1427
        %1649 = vmatpush1.bf16.msra.mxu0 %v1426
        %1650 = vmatprep.subr.bf16.mxu0 %v1434
        %1651 = vmatpush1.bf16.msra.mxu0 %v1433
        %1652 = vmatprep.subr.bf16.mxu0 %v1441
        %1653 = vmatpush1.bf16.msra.mxu0 %v1440
        %1654 = vmatprep.subr.bf16.mxu0 %v1448
        %1655 = vmatpush1.bf16.msra.mxu0 %v1447
        %1656 = vmatprep.subr.bf16.mxu0 %v1455
        %1657 = vmatpush1.bf16.msra.mxu0 %v1454
        %1658 = vmatprep.subr.bf16.mxu0 %v1462
        %1659 = vmatpush1.bf16.msra.mxu0 %v1461
        %1660 = vmatprep.mubr.bf16.mxu0 %v1565
        %1661 = vmatmul.mubr.bf16.gmra.mrb[0].mxu0 %v1564
        %v1662 = vpop.f32.mrb[0].mxu0
        %v1663 = vadd.f32 0.0, %v1662
        %v1664 = vpop.f32.mrb[0].mxu0
        %v1665 = vadd.f32 0.0, %v1664
        %v1666 = vpop.f32.mrb[0].mxu0
        %v1667 = vadd.f32 0.0, %v1666
        %v1668 = vpop.f32.mrb[0].mxu0
        %v1669 = vadd.f32 0.0, %v1668
        %1670 = vmatprep.mubr.bf16.mxu0 %v1567
        %1671 = vmatmul.mubr.bf16.gmra.mrb[0].mxu0 %v1566
        %v1672 = vpop.f32.mrb[0].mxu0
        %v1673 = vadd.f32 0.0, %v1672
        %v1674 = vpop.f32.mrb[0].mxu0
        %v1675 = vadd.f32 0.0, %v1674
        %v1676 = vpop.f32.mrb[0].mxu0
        %v1677 = vadd.f32 0.0, %v1676
        %v1678 = vpop.f32.mrb[0].mxu0
        %v1679 = vadd.f32 0.0, %v1678
        %1680 = vmatprep.mubr.bf16.mxu0 %v1569
        %1681 = vmatmul.mubr.bf16.gmra.mrb[0].mxu0 %v1568
        %v1682 = vpop.f32.mrb[0].mxu0
        %v1683 = vadd.f32 0.0, %v1682
        %v1684 = vpop.f32.mrb[0].mxu0
        %v1685 = vadd.f32 0.0, %v1684
        %v1686 = vpop.f32.mrb[0].mxu0
        %v1687 = vadd.f32 0.0, %v1686
        %v1688 = vpop.f32.mrb[0].mxu0
        %v1689 = vadd.f32 0.0, %v1688
        %1690 = vmatprep.mubr.bf16.mxu0 %v1571
        %1691 = vmatmul.mubr.bf16.gmra.mrb[0].mxu0 %v1570
        %v1692 = vpop.f32.mrb[0].mxu0
        %v1693 = vadd.f32 0.0, %v1692
        %v1694 = vpop.f32.mrb[0].mxu0
        %v1695 = vadd.f32 0.0, %v1694
        %v1696 = vpop.f32.mrb[0].mxu0
        %v1697 = vadd.f32 0.0, %v1696
        %v1698 = vpop.f32.mrb[0].mxu0
        %v1699 = vadd.f32 0.0, %v1698
        %1700 = vmatprep.mubr.bf16.mxu0 %v1573
        %1701 = vmatmul.mubr.bf16.gmra.mrb[0].mxu0 %v1572
        %v1702 = vpop.f32.mrb[0].mxu0
        %v1703 = vadd.f32 0.0, %v1702
        %v1704 = vpop.f32.mrb[0].mxu0
        %v1705 = vadd.f32 0.0, %v1704
        %v1706 = vpop.f32.mrb[0].mxu0
        %v1707 = vadd.f32 0.0, %v1706
        %v1708 = vpop.f32.mrb[0].mxu0
        %v1709 = vadd.f32 0.0, %v1708
        %1710 = vmatprep.mubr.bf16.mxu0 %v1575
        %1711 = vmatmul.mubr.bf16.gmra.mrb[0].mxu0 %v1574
        %v1712 = vpop.f32.mrb[0].mxu0
        %v1713 = vadd.f32 0.0, %v1712
        %v1714 = vpop.f32.mrb[0].mxu0
        %v1715 = vadd.f32 0.0, %v1714
        %v1716 = vpop.f32.mrb[0].mxu0
        %v1717 = vadd.f32 0.0, %v1716
        %v1718 = vpop.f32.mrb[0].mxu0
        %v1719 = vadd.f32 0.0, %v1718
        %1720 = vmatprep.mubr.bf16.mxu0 %v1577
        %1721 = vmatmul.mubr.bf16.gmra.mrb[0].mxu0 %v1576
        %v1722 = vpop.f32.mrb[0].mxu0
        %v1723 = vadd.f32 0.0, %v1722
        %v1724 = vpop.f32.mrb[0].mxu0
        %v1725 = vadd.f32 0.0, %v1724
        %v1726 = vpop.f32.mrb[0].mxu0
        %v1727 = vadd.f32 0.0, %v1726
        %v1728 = vpop.f32.mrb[0].mxu0
        %v1729 = vadd.f32 0.0, %v1728
        %1730 = vmatprep.mubr.bf16.mxu0 %v1579
        %1731 = vmatmul.mubr.bf16.gmra.mrb[0].mxu0 %v1578
        %v1732 = vpop.f32.mrb[0].mxu0
        %v1733 = vadd.f32 0.0, %v1732
        %v1734 = vpop.f32.mrb[0].mxu0
        %v1735 = vadd.f32 0.0, %v1734
        %v1736 = vpop.f32.mrb[0].mxu0
        %v1737 = vadd.f32 0.0, %v1736
        %v1738 = vpop.f32.mrb[0].mxu0
        %v1739 = vadd.f32 0.0, %v1738
        %1740 = vmatprep.mubr.bf16.mxu0 %v1581
        %1741 = vmatmul.mubr.bf16.gmra.mrb[0].mxu0 %v1580
        %v1742 = vpop.f32.mrb[0].mxu0
        %v1743 = vadd.f32 0.0, %v1742
        %v1744 = vpop.f32.mrb[0].mxu0
        %v1745 = vadd.f32 0.0, %v1744
        %v1746 = vpop.f32.mrb[0].mxu0
        %v1747 = vadd.f32 0.0, %v1746
        %v1748 = vpop.f32.mrb[0].mxu0
        %v1749 = vadd.f32 0.0, %v1748
        %1750 = vmatprep.mubr.bf16.mxu0 %v1583
        %1751 = vmatmul.mubr.bf16.gmra.mrb[0].mxu0 %v1582
        %v1752 = vpop.f32.mrb[0].mxu0
        %v1753 = vadd.f32 0.0, %v1752
        %v1754 = vpop.f32.mrb[0].mxu0
        %v1755 = vadd.f32 0.0, %v1754
        %v1756 = vpop.f32.mrb[0].mxu0
        %v1757 = vadd.f32 0.0, %v1756
        %v1758 = vpop.f32.mrb[0].mxu0
        %v1759 = vadd.f32 0.0, %v1758
        %1760 = vmatprep.mubr.bf16.mxu0 %v1585
        %1761 = vmatmul.mubr.bf16.gmra.mrb[0].mxu0 %v1584
        %v1762 = vpop.f32.mrb[0].mxu0
        %v1763 = vadd.f32 0.0, %v1762
        %v1764 = vpop.f32.mrb[0].mxu0
        %v1765 = vadd.f32 0.0, %v1764
        %v1766 = vpop.f32.mrb[0].mxu0
        %v1767 = vadd.f32 0.0, %v1766
        %v1768 = vpop.f32.mrb[0].mxu0
        %v1769 = vadd.f32 0.0, %v1768
        %1770 = vmatprep.mubr.bf16.mxu0 %v1587
        %1771 = vmatmul.mubr.bf16.gmra.mrb[0].mxu0 %v1586
        %v1772 = vpop.f32.mrb[0].mxu0
        %v1773 = vadd.f32 0.0, %v1772
        %v1774 = vpop.f32.mrb[0].mxu0
        %v1775 = vadd.f32 0.0, %v1774
        %v1776 = vpop.f32.mrb[0].mxu0
        %v1777 = vadd.f32 0.0, %v1776
        %v1778 = vpop.f32.mrb[0].mxu0
        %v1779 = vadd.f32 0.0, %v1778
        %1780 = vmatprep.mubr.bf16.mxu0 %v1589
        %1781 = vmatmul.mubr.bf16.gmra.mrb[0].mxu0 %v1588
        %v1782 = vpop.f32.mrb[0].mxu0
        %v1783 = vadd.f32 0.0, %v1782
        %v1784 = vpop.f32.mrb[0].mxu0
        %v1785 = vadd.f32 0.0, %v1784
        %v1786 = vpop.f32.mrb[0].mxu0
        %v1787 = vadd.f32 0.0, %v1786
        %v1788 = vpop.f32.mrb[0].mxu0
        %v1789 = vadd.f32 0.0, %v1788
        %1790 = vmatprep.mubr.bf16.mxu0 %v1591
        %1791 = vmatmul.mubr.bf16.gmra.mrb[0].mxu0 %v1590
        %v1792 = vpop.f32.mrb[0].mxu0
        %v1793 = vadd.f32 0.0, %v1792
        %v1794 = vpop.f32.mrb[0].mxu0
        %v1795 = vadd.f32 0.0, %v1794
        %v1796 = vpop.f32.mrb[0].mxu0
        %v1797 = vadd.f32 0.0, %v1796
        %v1798 = vpop.f32.mrb[0].mxu0
        %v1799 = vadd.f32 0.0, %v1798
        %1800 = vmatprep.mubr.bf16.mxu0 %v1593
        %1801 = vmatmul.mubr.bf16.gmra.mrb[0].mxu0 %v1592
        %v1802 = vpop.f32.mrb[0].mxu0
        %v1803 = vadd.f32 0.0, %v1802
        %v1804 = vpop.f32.mrb[0].mxu0
        %v1805 = vadd.f32 0.0, %v1804
        %v1806 = vpop.f32.mrb[0].mxu0
        %v1807 = vadd.f32 0.0, %v1806
        %v1808 = vpop.f32.mrb[0].mxu0
        %v1809 = vadd.f32 0.0, %v1808
        %1810 = vmatprep.mubr.bf16.mxu0 %v1595
        %1811 = vmatmul.mubr.bf16.gmra.mrb[0].mxu0 %v1594
        %v1812 = vpop.f32.mrb[0].mxu0
        %v1813 = vadd.f32 0.0, %v1812
        %v1814 = vpop.f32.mrb[0].mxu0
        %v1815 = vadd.f32 0.0, %v1814
        %v1816 = vpop.f32.mrb[0].mxu0
        %v1817 = vadd.f32 0.0, %v1816
        %v1818 = vpop.f32.mrb[0].mxu0
        %v1819 = vadd.f32 0.0, %v1818
        %1820 = vdwg.mxu0
        %1821 = vmatprep.subr.bf16.mxu0 %v1359
        %1822 = vmatpush1.bf16.msra.mxu0 %v1358
        %1823 = vmatprep.subr.bf16.mxu0 %v1366
        %1824 = vmatpush1.bf16.msra.mxu0 %v1365
        %1825 = vmatprep.subr.bf16.mxu0 %v1373
        %1826 = vmatpush1.bf16.msra.mxu0 %v1372
        %1827 = vmatprep.subr.bf16.mxu0 %v1380
        %1828 = vmatpush1.bf16.msra.mxu0 %v1379
        %1829 = vmatprep.subr.bf16.mxu0 %v1387
        %1830 = vmatpush1.bf16.msra.mxu0 %v1386
        %1831 = vmatprep.subr.bf16.mxu0 %v1394
        %1832 = vmatpush1.bf16.msra.mxu0 %v1393
        %1833 = vmatprep.subr.bf16.mxu0 %v1401
        %1834 = vmatpush1.bf16.msra.mxu0 %v1400
        %1835 = vmatprep.subr.bf16.mxu0 %v1408
        %1836 = vmatpush1.bf16.msra.mxu0 %v1407
        %1837 = vmatprep.subr.bf16.mxu0 %v1415
        %1838 = vmatpush1.bf16.msra.mxu0 %v1414
        %1839 = vmatprep.subr.bf16.mxu0 %v1422
        %1840 = vmatpush1.bf16.msra.mxu0 %v1421
        %1841 = vmatprep.subr.bf16.mxu0 %v1429
        %1842 = vmatpush1.bf16.msra.mxu0 %v1428
        %1843 = vmatprep.subr.bf16.mxu0 %v1436
        %1844 = vmatpush1.bf16.msra.mxu0 %v1435
        %1845 = vmatprep.subr.bf16.mxu0 %v1443
        %1846 = vmatpush1.bf16.msra.mxu0 %v1442
        %1847 = vmatprep.subr.bf16.mxu0 %v1450
        %1848 = vmatpush1.bf16.msra.mxu0 %v1449
        %1849 = vmatprep.subr.bf16.mxu0 %v1457
        %1850 = vmatpush1.bf16.msra.mxu0 %v1456
        %1851 = vmatprep.subr.bf16.mxu0 %v1464
        %1852 = vmatpush1.bf16.msra.mxu0 %v1463
        %1853 = vmatprep.mubr.bf16.mxu0 %v1565
        %1854 = vmatmul.mubr.bf16.gmra.mrb[0].mxu0 %v1564
        %v1855 = vpop.f32.mrb[0].mxu0
        %v1856 = vadd.f32 0.0, %v1855
        %v1857 = vpop.f32.mrb[0].mxu0
        %v1858 = vadd.f32 0.0, %v1857
        %v1859 = vpop.f32.mrb[0].mxu0
        %v1860 = vadd.f32 0.0, %v1859
        %v1861 = vpop.f32.mrb[0].mxu0
        %v1862 = vadd.f32 0.0, %v1861
        %1863 = vmatprep.mubr.bf16.mxu0 %v1567
        %1864 = vmatmul.mubr.bf16.gmra.mrb[0].mxu0 %v1566
        %v1865 = vpop.f32.mrb[0].mxu0
        %v1866 = vadd.f32 0.0, %v1865
        %v1867 = vpop.f32.mrb[0].mxu0
        %v1868 = vadd.f32 0.0, %v1867
        %v1869 = vpop.f32.mrb[0].mxu0
        %v1870 = vadd.f32 0.0, %v1869
        %v1871 = vpop.f32.mrb[0].mxu0
        %v1872 = vadd.f32 0.0, %v1871
        %1873 = vmatprep.mubr.bf16.mxu0 %v1569
        %1874 = vmatmul.mubr.bf16.gmra.mrb[0].mxu0 %v1568
        %v1875 = vpop.f32.mrb[0].mxu0
        %v1876 = vadd.f32 0.0, %v1875
        %v1877 = vpop.f32.mrb[0].mxu0
        %v1878 = vadd.f32 0.0, %v1877
        %v1879 = vpop.f32.mrb[0].mxu0
        %v1880 = vadd.f32 0.0, %v1879
        %v1881 = vpop.f32.mrb[0].mxu0
        %v1882 = vadd.f32 0.0, %v1881
        %1883 = vmatprep.mubr.bf16.mxu0 %v1571
        %1884 = vmatmul.mubr.bf16.gmra.mrb[0].mxu0 %v1570
        %v1885 = vpop.f32.mrb[0].mxu0
        %v1886 = vadd.f32 0.0, %v1885
        %v1887 = vpop.f32.mrb[0].mxu0
        %v1888 = vadd.f32 0.0, %v1887
        %v1889 = vpop.f32.mrb[0].mxu0
        %v1890 = vadd.f32 0.0, %v1889
        %v1891 = vpop.f32.mrb[0].mxu0
        %v1892 = vadd.f32 0.0, %v1891
        %1893 = vmatprep.mubr.bf16.mxu0 %v1573
        %1894 = vmatmul.mubr.bf16.gmra.mrb[0].mxu0 %v1572
        %v1895 = vpop.f32.mrb[0].mxu0
        %v1896 = vadd.f32 0.0, %v1895
        %v1897 = vpop.f32.mrb[0].mxu0
        %v1898 = vadd.f32 0.0, %v1897
        %v1899 = vpop.f32.mrb[0].mxu0
        %v1900 = vadd.f32 0.0, %v1899
        %v1901 = vpop.f32.mrb[0].mxu0
        %v1902 = vadd.f32 0.0, %v1901
        %1903 = vmatprep.mubr.bf16.mxu0 %v1575
        %1904 = vmatmul.mubr.bf16.gmra.mrb[0].mxu0 %v1574
        %v1905 = vpop.f32.mrb[0].mxu0
        %v1906 = vadd.f32 0.0, %v1905
        %v1907 = vpop.f32.mrb[0].mxu0
        %v1908 = vadd.f32 0.0, %v1907
        %v1909 = vpop.f32.mrb[0].mxu0
        %v1910 = vadd.f32 0.0, %v1909
        %v1911 = vpop.f32.mrb[0].mxu0
        %v1912 = vadd.f32 0.0, %v1911
        %1913 = vmatprep.mubr.bf16.mxu0 %v1577
        %1914 = vmatmul.mubr.bf16.gmra.mrb[0].mxu0 %v1576
        %v1915 = vpop.f32.mrb[0].mxu0
        %v1916 = vadd.f32 0.0, %v1915
        %v1917 = vpop.f32.mrb[0].mxu0
        %v1918 = vadd.f32 0.0, %v1917
        %v1919 = vpop.f32.mrb[0].mxu0
        %v1920 = vadd.f32 0.0, %v1919
        %v1921 = vpop.f32.mrb[0].mxu0
        %v1922 = vadd.f32 0.0, %v1921
        %1923 = vmatprep.mubr.bf16.mxu0 %v1579
        %1924 = vmatmul.mubr.bf16.gmra.mrb[0].mxu0 %v1578
        %v1925 = vpop.f32.mrb[0].mxu0
        %v1926 = vadd.f32 0.0, %v1925
        %v1927 = vpop.f32.mrb[0].mxu0
        %v1928 = vadd.f32 0.0, %v1927
        %v1929 = vpop.f32.mrb[0].mxu0
        %v1930 = vadd.f32 0.0, %v1929
        %v1931 = vpop.f32.mrb[0].mxu0
        %v1932 = vadd.f32 0.0, %v1931
        %1933 = vmatprep.mubr.bf16.mxu0 %v1581
        %1934 = vmatmul.mubr.bf16.gmra.mrb[0].mxu0 %v1580
        %v1935 = vpop.f32.mrb[0].mxu0
        %v1936 = vadd.f32 0.0, %v1935
        %v1937 = vpop.f32.mrb[0].mxu0
        %v1938 = vadd.f32 0.0, %v1937
        %v1939 = vpop.f32.mrb[0].mxu0
        %v1940 = vadd.f32 0.0, %v1939
        %v1941 = vpop.f32.mrb[0].mxu0
        %v1942 = vadd.f32 0.0, %v1941
        %1943 = vmatprep.mubr.bf16.mxu0 %v1583
        %1944 = vmatmul.mubr.bf16.gmra.mrb[0].mxu0 %v1582
        %v1945 = vpop.f32.mrb[0].mxu0
        %v1946 = vadd.f32 0.0, %v1945
        %v1947 = vpop.f32.mrb[0].mxu0
        %v1948 = vadd.f32 0.0, %v1947
        %v1949 = vpop.f32.mrb[0].mxu0
        %v1950 = vadd.f32 0.0, %v1949
        %v1951 = vpop.f32.mrb[0].mxu0
        %v1952 = vadd.f32 0.0, %v1951
        %1953 = vmatprep.mubr.bf16.mxu0 %v1585
        %1954 = vmatmul.mubr.bf16.gmra.mrb[0].mxu0 %v1584
        %v1955 = vpop.f32.mrb[0].mxu0
        %v1956 = vadd.f32 0.0, %v1955
        %v1957 = vpop.f32.mrb[0].mxu0
        %v1958 = vadd.f32 0.0, %v1957
        %v1959 = vpop.f32.mrb[0].mxu0
        %v1960 = vadd.f32 0.0, %v1959
        %v1961 = vpop.f32.mrb[0].mxu0
        %v1962 = vadd.f32 0.0, %v1961
        %1963 = vmatprep.mubr.bf16.mxu0 %v1587
        %1964 = vmatmul.mubr.bf16.gmra.mrb[0].mxu0 %v1586
        %v1965 = vpop.f32.mrb[0].mxu0
        %v1966 = vadd.f32 0.0, %v1965
        %v1967 = vpop.f32.mrb[0].mxu0
        %v1968 = vadd.f32 0.0, %v1967
        %v1969 = vpop.f32.mrb[0].mxu0
        %v1970 = vadd.f32 0.0, %v1969
        %v1971 = vpop.f32.mrb[0].mxu0
        %v1972 = vadd.f32 0.0, %v1971
        %1973 = vmatprep.mubr.bf16.mxu0 %v1589
        %1974 = vmatmul.mubr.bf16.gmra.mrb[0].mxu0 %v1588
        %v1975 = vpop.f32.mrb[0].mxu0
        %v1976 = vadd.f32 0.0, %v1975
        %v1977 = vpop.f32.mrb[0].mxu0
        %v1978 = vadd.f32 0.0, %v1977
        %v1979 = vpop.f32.mrb[0].mxu0
        %v1980 = vadd.f32 0.0, %v1979
        %v1981 = vpop.f32.mrb[0].mxu0
        %v1982 = vadd.f32 0.0, %v1981
        %1983 = vmatprep.mubr.bf16.mxu0 %v1591
        %1984 = vmatmul.mubr.bf16.gmra.mrb[0].mxu0 %v1590
        %v1985 = vpop.f32.mrb[0].mxu0
        %v1986 = vadd.f32 0.0, %v1985
        %v1987 = vpop.f32.mrb[0].mxu0
        %v1988 = vadd.f32 0.0, %v1987
        %v1989 = vpop.f32.mrb[0].mxu0
        %v1990 = vadd.f32 0.0, %v1989
        %v1991 = vpop.f32.mrb[0].mxu0
        %v1992 = vadd.f32 0.0, %v1991
        %1993 = vmatprep.mubr.bf16.mxu0 %v1593
        %1994 = vmatmul.mubr.bf16.gmra.mrb[0].mxu0 %v1592
        %v1995 = vpop.f32.mrb[0].mxu0
        %v1996 = vadd.f32 0.0, %v1995
        %v1997 = vpop.f32.mrb[0].mxu0
        %v1998 = vadd.f32 0.0, %v1997
        %v1999 = vpop.f32.mrb[0].mxu0
        %v2000 = vadd.f32 0.0, %v1999
        %v2001 = vpop.f32.mrb[0].mxu0
        %v2002 = vadd.f32 0.0, %v2001
        %2003 = vmatprep.mubr.bf16.mxu0 %v1595
        %2004 = vmatmul.mubr.bf16.gmra.mrb[0].mxu0 %v1594
        %v2005 = vpop.f32.mrb[0].mxu0
        %v2006 = vadd.f32 0.0, %v2005
        %v2007 = vpop.f32.mrb[0].mxu0
        %v2008 = vadd.f32 0.0, %v2007
        %v2009 = vpop.f32.mrb[0].mxu0
        %v2010 = vadd.f32 0.0, %v2009
        %v2011 = vpop.f32.mrb[0].mxu0
        %v2012 = vadd.f32 0.0, %v2011
        %2013 = vdwg.mxu0
        %2014 = vmatprep.subr.bf16.mxu0 %v1361
        %2015 = vmatpush1.bf16.msra.mxu0 %v1360
        %2016 = vmatprep.subr.bf16.mxu0 %v1368
        %2017 = vmatpush1.bf16.msra.mxu0 %v1367
        %2018 = vmatprep.subr.bf16.mxu0 %v1375
        %2019 = vmatpush1.bf16.msra.mxu0 %v1374
        %2020 = vmatprep.subr.bf16.mxu0 %v1382
        %2021 = vmatpush1.bf16.msra.mxu0 %v1381
        %2022 = vmatprep.subr.bf16.mxu0 %v1389
        %2023 = vmatpush1.bf16.msra.mxu0 %v1388
        %2024 = vmatprep.subr.bf16.mxu0 %v1396
        %2025 = vmatpush1.bf16.msra.mxu0 %v1395
        %2026 = vmatprep.subr.bf16.mxu0 %v1403
        %2027 = vmatpush1.bf16.msra.mxu0 %v1402
        %2028 = vmatprep.subr.bf16.mxu0 %v1410
        %2029 = vmatpush1.bf16.msra.mxu0 %v1409
        %2030 = vmatprep.subr.bf16.mxu0 %v1417
        %2031 = vmatpush1.bf16.msra.mxu0 %v1416
        %2032 = vmatprep.subr.bf16.mxu0 %v1424
        %2033 = vmatpush1.bf16.msra.mxu0 %v1423
        %2034 = vmatprep.subr.bf16.mxu0 %v1431
        %2035 = vmatpush1.bf16.msra.mxu0 %v1430
        %2036 = vmatprep.subr.bf16.mxu0 %v1438
        %2037 = vmatpush1.bf16.msra.mxu0 %v1437
        %2038 = vmatprep.subr.bf16.mxu0 %v1445
        %2039 = vmatpush1.bf16.msra.mxu0 %v1444
        %2040 = vmatprep.subr.bf16.mxu0 %v1452
        %2041 = vmatpush1.bf16.msra.mxu0 %v1451
        %2042 = vmatprep.subr.bf16.mxu0 %v1459
        %2043 = vmatpush1.bf16.msra.mxu0 %v1458
        %2044 = vmatprep.subr.bf16.mxu0 %v1466
        %2045 = vmatpush1.bf16.msra.mxu0 %v1465
        %2046 = vmatprep.mubr.bf16.mxu0 %v1565
        %2047 = vmatmul.mubr.bf16.gmra.mrb[0].mxu0 %v1564
        %v2048 = vpop.f32.mrb[0].mxu0
        %v2049 = vadd.f32 0.0, %v2048
        %v2050 = vpop.f32.mrb[0].mxu0
        %v2051 = vadd.f32 0.0, %v2050
        %v2052 = vpop.f32.mrb[0].mxu0
        %v2053 = vadd.f32 0.0, %v2052
        %v2054 = vpop.f32.mrb[0].mxu0
        %v2055 = vadd.f32 0.0, %v2054
        %2056 = vmatprep.mubr.bf16.mxu0 %v1567
        %2057 = vmatmul.mubr.bf16.gmra.mrb[0].mxu0 %v1566
        %v2058 = vpop.f32.mrb[0].mxu0
        %v2059 = vadd.f32 0.0, %v2058
        %v2060 = vpop.f32.mrb[0].mxu0
        %v2061 = vadd.f32 0.0, %v2060
        %v2062 = vpop.f32.mrb[0].mxu0
        %v2063 = vadd.f32 0.0, %v2062
        %v2064 = vpop.f32.mrb[0].mxu0
        %v2065 = vadd.f32 0.0, %v2064
        %2066 = vmatprep.mubr.bf16.mxu0 %v1569
        %2067 = vmatmul.mubr.bf16.gmra.mrb[0].mxu0 %v1568
        %v2068 = vpop.f32.mrb[0].mxu0
        %v2069 = vadd.f32 0.0, %v2068
        %v2070 = vpop.f32.mrb[0].mxu0
        %v2071 = vadd.f32 0.0, %v2070
        %v2072 = vpop.f32.mrb[0].mxu0
        %v2073 = vadd.f32 0.0, %v2072
        %v2074 = vpop.f32.mrb[0].mxu0
        %v2075 = vadd.f32 0.0, %v2074
        %2076 = vmatprep.mubr.bf16.mxu0 %v1571
        %2077 = vmatmul.mubr.bf16.gmra.mrb[0].mxu0 %v1570
        %v2078 = vpop.f32.mrb[0].mxu0
        %v2079 = vadd.f32 0.0, %v2078
        %v2080 = vpop.f32.mrb[0].mxu0
        %v2081 = vadd.f32 0.0, %v2080
        %v2082 = vpop.f32.mrb[0].mxu0
        %v2083 = vadd.f32 0.0, %v2082
        %v2084 = vpop.f32.mrb[0].mxu0
        %v2085 = vadd.f32 0.0, %v2084
        %2086 = vmatprep.mubr.bf16.mxu0 %v1573
        %2087 = vmatmul.mubr.bf16.gmra.mrb[0].mxu0 %v1572
        %v2088 = vpop.f32.mrb[0].mxu0
        %v2089 = vadd.f32 0.0, %v2088
        %v2090 = vpop.f32.mrb[0].mxu0
        %v2091 = vadd.f32 0.0, %v2090
        %v2092 = vpop.f32.mrb[0].mxu0
        %v2093 = vadd.f32 0.0, %v2092
        %v2094 = vpop.f32.mrb[0].mxu0
        %v2095 = vadd.f32 0.0, %v2094
        %2096 = vmatprep.mubr.bf16.mxu0 %v1575
        %2097 = vmatmul.mubr.bf16.gmra.mrb[0].mxu0 %v1574
        %v2098 = vpop.f32.mrb[0].mxu0
        %v2099 = vadd.f32 0.0, %v2098
        %v2100 = vpop.f32.mrb[0].mxu0
        %v2101 = vadd.f32 0.0, %v2100
        %v2102 = vpop.f32.mrb[0].mxu0
        %v2103 = vadd.f32 0.0, %v2102
        %v2104 = vpop.f32.mrb[0].mxu0
        %v2105 = vadd.f32 0.0, %v2104
        %2106 = vmatprep.mubr.bf16.mxu0 %v1577
        %2107 = vmatmul.mubr.bf16.gmra.mrb[0].mxu0 %v1576
        %v2108 = vpop.f32.mrb[0].mxu0
        %v2109 = vadd.f32 0.0, %v2108
        %v2110 = vpop.f32.mrb[0].mxu0
        %v2111 = vadd.f32 0.0, %v2110
        %v2112 = vpop.f32.mrb[0].mxu0
        %v2113 = vadd.f32 0.0, %v2112
        %v2114 = vpop.f32.mrb[0].mxu0
        %v2115 = vadd.f32 0.0, %v2114
        %2116 = vmatprep.mubr.bf16.mxu0 %v1579
        %2117 = vmatmul.mubr.bf16.gmra.mrb[0].mxu0 %v1578
        %v2118 = vpop.f32.mrb[0].mxu0
        %v2119 = vadd.f32 0.0, %v2118
        %v2120 = vpop.f32.mrb[0].mxu0
        %v2121 = vadd.f32 0.0, %v2120
        %v2122 = vpop.f32.mrb[0].mxu0
        %v2123 = vadd.f32 0.0, %v2122
        %v2124 = vpop.f32.mrb[0].mxu0
        %v2125 = vadd.f32 0.0, %v2124
        %2126 = vmatprep.mubr.bf16.mxu0 %v1581
        %2127 = vmatmul.mubr.bf16.gmra.mrb[0].mxu0 %v1580
        %v2128 = vpop.f32.mrb[0].mxu0
        %v2129 = vadd.f32 0.0, %v2128
        %v2130 = vpop.f32.mrb[0].mxu0
        %v2131 = vadd.f32 0.0, %v2130
        %v2132 = vpop.f32.mrb[0].mxu0
        %v2133 = vadd.f32 0.0, %v2132
        %v2134 = vpop.f32.mrb[0].mxu0
        %v2135 = vadd.f32 0.0, %v2134
        %2136 = vmatprep.mubr.bf16.mxu0 %v1583
        %2137 = vmatmul.mubr.bf16.gmra.mrb[0].mxu0 %v1582
        %v2138 = vpop.f32.mrb[0].mxu0
        %v2139 = vadd.f32 0.0, %v2138
        %v2140 = vpop.f32.mrb[0].mxu0
        %v2141 = vadd.f32 0.0, %v2140
        %v2142 = vpop.f32.mrb[0].mxu0
        %v2143 = vadd.f32 0.0, %v2142
        %v2144 = vpop.f32.mrb[0].mxu0
        %v2145 = vadd.f32 0.0, %v2144
        %2146 = vmatprep.mubr.bf16.mxu0 %v1585
        %2147 = vmatmul.mubr.bf16.gmra.mrb[0].mxu0 %v1584
        %v2148 = vpop.f32.mrb[0].mxu0
        %v2149 = vadd.f32 0.0, %v2148
        %v2150 = vpop.f32.mrb[0].mxu0
        %v2151 = vadd.f32 0.0, %v2150
        %v2152 = vpop.f32.mrb[0].mxu0
        %v2153 = vadd.f32 0.0, %v2152
        %v2154 = vpop.f32.mrb[0].mxu0
        %v2155 = vadd.f32 0.0, %v2154
        %2156 = vmatprep.mubr.bf16.mxu0 %v1587
        %2157 = vmatmul.mubr.bf16.gmra.mrb[0].mxu0 %v1586
        %v2158 = vpop.f32.mrb[0].mxu0
        %v2159 = vadd.f32 0.0, %v2158
        %v2160 = vpop.f32.mrb[0].mxu0
        %v2161 = vadd.f32 0.0, %v2160
        %v2162 = vpop.f32.mrb[0].mxu0
        %v2163 = vadd.f32 0.0, %v2162
        %v2164 = vpop.f32.mrb[0].mxu0
        %v2165 = vadd.f32 0.0, %v2164
        %2166 = vmatprep.mubr.bf16.mxu0 %v1589
        %2167 = vmatmul.mubr.bf16.gmra.mrb[0].mxu0 %v1588
        %v2168 = vpop.f32.mrb[0].mxu0
        %v2169 = vadd.f32 0.0, %v2168
        %v2170 = vpop.f32.mrb[0].mxu0
        %v2171 = vadd.f32 0.0, %v2170
        %v2172 = vpop.f32.mrb[0].mxu0
        %v2173 = vadd.f32 0.0, %v2172
        %v2174 = vpop.f32.mrb[0].mxu0
        %v2175 = vadd.f32 0.0, %v2174
        %2176 = vmatprep.mubr.bf16.mxu0 %v1591
        %2177 = vmatmul.mubr.bf16.gmra.mrb[0].mxu0 %v1590
        %v2178 = vpop.f32.mrb[0].mxu0
        %v2179 = vadd.f32 0.0, %v2178
        %v2180 = vpop.f32.mrb[0].mxu0
        %v2181 = vadd.f32 0.0, %v2180
        %v2182 = vpop.f32.mrb[0].mxu0
        %v2183 = vadd.f32 0.0, %v2182
        %v2184 = vpop.f32.mrb[0].mxu0
        %v2185 = vadd.f32 0.0, %v2184
        %2186 = vmatprep.mubr.bf16.mxu0 %v1593
        %2187 = vmatmul.mubr.bf16.gmra.mrb[0].mxu0 %v1592
        %v2188 = vpop.f32.mrb[0].mxu0
        %v2189 = vadd.f32 0.0, %v2188
        %v2190 = vpop.f32.mrb[0].mxu0
        %v2191 = vadd.f32 0.0, %v2190
        %v2192 = vpop.f32.mrb[0].mxu0
        %v2193 = vadd.f32 0.0, %v2192
        %v2194 = vpop.f32.mrb[0].mxu0
        %v2195 = vadd.f32 0.0, %v2194
        %2196 = vmatprep.mubr.bf16.mxu0 %v1595
        %2197 = vmatmul.mubr.bf16.gmra.mrb[0].mxu0 %v1594
        %v2198 = vpop.f32.mrb[0].mxu0
        %v2199 = vadd.f32 0.0, %v2198
        %v2200 = vpop.f32.mrb[0].mxu0
        %v2201 = vadd.f32 0.0, %v2200
        %v2202 = vpop.f32.mrb[0].mxu0
        %v2203 = vadd.f32 0.0, %v2202
        %v2204 = vpop.f32.mrb[0].mxu0
        %v2205 = vadd.f32 0.0, %v2204
        %2206 = vdwg.mxu0
        %2207 = vmatprep.subr.bf16.mxu0 0
        %2208 = vmatpush1.bf16.msra.mxu0 %v1362
        %2209 = vmatprep.subr.bf16.mxu0 0
        %2210 = vmatpush1.bf16.msra.mxu0 %v1369
        %2211 = vmatprep.subr.bf16.mxu0 0
        %2212 = vmatpush1.bf16.msra.mxu0 %v1376
        %2213 = vmatprep.subr.bf16.mxu0 0
        %2214 = vmatpush1.bf16.msra.mxu0 %v1383
        %2215 = vmatprep.subr.bf16.mxu0 0
        %2216 = vmatpush1.bf16.msra.mxu0 %v1390
        %2217 = vmatprep.subr.bf16.mxu0 0
        %2218 = vmatpush1.bf16.msra.mxu0 %v1397
        %2219 = vmatprep.subr.bf16.mxu0 0
        %2220 = vmatpush1.bf16.msra.mxu0 %v1404
        %2221 = vmatprep.subr.bf16.mxu0 0
        %2222 = vmatpush1.bf16.msra.mxu0 %v1411
        %2223 = vmatprep.subr.bf16.mxu0 0
        %2224 = vmatpush1.bf16.msra.mxu0 %v1418
        %2225 = vmatprep.subr.bf16.mxu0 0
        %2226 = vmatpush1.bf16.msra.mxu0 %v1425
        %2227 = vmatprep.subr.bf16.mxu0 0
        %2228 = vmatpush1.bf16.msra.mxu0 %v1432
        %2229 = vmatprep.subr.bf16.mxu0 0
        %2230 = vmatpush1.bf16.msra.mxu0 %v1439
        %2231 = vmatprep.subr.bf16.mxu0 0
        %2232 = vmatpush1.bf16.msra.mxu0 %v1446
        %2233 = vmatprep.subr.bf16.mxu0 0
        %2234 = vmatpush1.bf16.msra.mxu0 %v1453
        %2235 = vmatprep.subr.bf16.mxu0 0
        %2236 = vmatpush1.bf16.msra.mxu0 %v1460
        %2237 = vmatprep.subr.bf16.mxu0 0
        %2238 = vmatpush1.bf16.msra.mxu0 %v1467
        %2239 = vmatprep.mubr.bf16.mxu0 %v1565
        %2240 = vmatmul.mubr.bf16.gmra.mrb[0].mxu0 %v1564
        %v2241 = vpop.f32.mrb[0].mxu0
        %v2242 = vadd.f32 0.0, %v2241
        %v2243 = vpop.f32.mrb[0].mxu0
        %v2244 = vpop.f32.mrb[0].mxu0
        %v2245 = vadd.f32 0.0, %v2244
        %v2246 = vpop.f32.mrb[0].mxu0
        %2247 = vmatprep.mubr.bf16.mxu0 %v1567
        %2248 = vmatmul.mubr.bf16.gmra.mrb[0].mxu0 %v1566
        %v2249 = vpop.f32.mrb[0].mxu0
        %v2250 = vadd.f32 0.0, %v2249
        %v2251 = vpop.f32.mrb[0].mxu0
        %v2252 = vpop.f32.mrb[0].mxu0
        %v2253 = vadd.f32 0.0, %v2252
        %v2254 = vpop.f32.mrb[0].mxu0
        %2255 = vmatprep.mubr.bf16.mxu0 %v1569
        %2256 = vmatmul.mubr.bf16.gmra.mrb[0].mxu0 %v1568
        %v2257 = vpop.f32.mrb[0].mxu0
        %v2258 = vadd.f32 0.0, %v2257
        %v2259 = vpop.f32.mrb[0].mxu0
        %v2260 = vpop.f32.mrb[0].mxu0
        %v2261 = vadd.f32 0.0, %v2260
        %v2262 = vpop.f32.mrb[0].mxu0
        %2263 = vmatprep.mubr.bf16.mxu0 %v1571
        %2264 = vmatmul.mubr.bf16.gmra.mrb[0].mxu0 %v1570
        %v2265 = vpop.f32.mrb[0].mxu0
        %v2266 = vadd.f32 0.0, %v2265
        %v2267 = vpop.f32.mrb[0].mxu0
        %v2268 = vpop.f32.mrb[0].mxu0
        %v2269 = vadd.f32 0.0, %v2268
        %v2270 = vpop.f32.mrb[0].mxu0
        %2271 = vmatprep.mubr.bf16.mxu0 %v1573
        %2272 = vmatmul.mubr.bf16.gmra.mrb[0].mxu0 %v1572
        %v2273 = vpop.f32.mrb[0].mxu0
        %v2274 = vadd.f32 0.0, %v2273
        %v2275 = vpop.f32.mrb[0].mxu0
        %v2276 = vpop.f32.mrb[0].mxu0
        %v2277 = vadd.f32 0.0, %v2276
        %v2278 = vpop.f32.mrb[0].mxu0
        %2279 = vmatprep.mubr.bf16.mxu0 %v1575
        %2280 = vmatmul.mubr.bf16.gmra.mrb[0].mxu0 %v1574
        %v2281 = vpop.f32.mrb[0].mxu0
        %v2282 = vadd.f32 0.0, %v2281
        %v2283 = vpop.f32.mrb[0].mxu0
        %v2284 = vpop.f32.mrb[0].mxu0
        %v2285 = vadd.f32 0.0, %v2284
        %v2286 = vpop.f32.mrb[0].mxu0
        %2287 = vmatprep.mubr.bf16.mxu0 %v1577
        %2288 = vmatmul.mubr.bf16.gmra.mrb[0].mxu0 %v1576
        %v2289 = vpop.f32.mrb[0].mxu0
        %v2290 = vadd.f32 0.0, %v2289
        %v2291 = vpop.f32.mrb[0].mxu0
        %v2292 = vpop.f32.mrb[0].mxu0
        %v2293 = vadd.f32 0.0, %v2292
        %v2294 = vpop.f32.mrb[0].mxu0
        %2295 = vmatprep.mubr.bf16.mxu0 %v1579
        %2296 = vmatmul.mubr.bf16.gmra.mrb[0].mxu0 %v1578
        %v2297 = vpop.f32.mrb[0].mxu0
        %v2298 = vadd.f32 0.0, %v2297
        %v2299 = vpop.f32.mrb[0].mxu0
        %v2300 = vpop.f32.mrb[0].mxu0
        %v2301 = vadd.f32 0.0, %v2300
        %v2302 = vpop.f32.mrb[0].mxu0
        %2303 = vmatprep.mubr.bf16.mxu0 %v1581
        %2304 = vmatmul.mubr.bf16.gmra.mrb[0].mxu0 %v1580
        %v2305 = vpop.f32.mrb[0].mxu0
        %v2306 = vadd.f32 0.0, %v2305
        %v2307 = vpop.f32.mrb[0].mxu0
        %v2308 = vpop.f32.mrb[0].mxu0
        %v2309 = vadd.f32 0.0, %v2308
        %v2310 = vpop.f32.mrb[0].mxu0
        %2311 = vmatprep.mubr.bf16.mxu0 %v1583
        %2312 = vmatmul.mubr.bf16.gmra.mrb[0].mxu0 %v1582
        %v2313 = vpop.f32.mrb[0].mxu0
        %v2314 = vadd.f32 0.0, %v2313
        %v2315 = vpop.f32.mrb[0].mxu0
        %v2316 = vpop.f32.mrb[0].mxu0
        %v2317 = vadd.f32 0.0, %v2316
        %v2318 = vpop.f32.mrb[0].mxu0
        %2319 = vmatprep.mubr.bf16.mxu0 %v1585
        %2320 = vmatmul.mubr.bf16.gmra.mrb[0].mxu0 %v1584
        %v2321 = vpop.f32.mrb[0].mxu0
        %v2322 = vadd.f32 0.0, %v2321
        %v2323 = vpop.f32.mrb[0].mxu0
        %v2324 = vpop.f32.mrb[0].mxu0
        %v2325 = vadd.f32 0.0, %v2324
        %v2326 = vpop.f32.mrb[0].mxu0
        %2327 = vmatprep.mubr.bf16.mxu0 %v1587
        %2328 = vmatmul.mubr.bf16.gmra.mrb[0].mxu0 %v1586
        %v2329 = vpop.f32.mrb[0].mxu0
        %v2330 = vadd.f32 0.0, %v2329
        %v2331 = vpop.f32.mrb[0].mxu0
        %v2332 = vpop.f32.mrb[0].mxu0
        %v2333 = vadd.f32 0.0, %v2332
        %v2334 = vpop.f32.mrb[0].mxu0
        %2335 = vmatprep.mubr.bf16.mxu0 %v1589
        %2336 = vmatmul.mubr.bf16.gmra.mrb[0].mxu0 %v1588
        %v2337 = vpop.f32.mrb[0].mxu0
        %v2338 = vadd.f32 0.0, %v2337
        %v2339 = vpop.f32.mrb[0].mxu0
        %v2340 = vpop.f32.mrb[0].mxu0
        %v2341 = vadd.f32 0.0, %v2340
        %v2342 = vpop.f32.mrb[0].mxu0
        %2343 = vmatprep.mubr.bf16.mxu0 %v1591
        %2344 = vmatmul.mubr.bf16.gmra.mrb[0].mxu0 %v1590
        %v2345 = vpop.f32.mrb[0].mxu0
        %v2346 = vadd.f32 0.0, %v2345
        %v2347 = vpop.f32.mrb[0].mxu0
        %v2348 = vpop.f32.mrb[0].mxu0
        %v2349 = vadd.f32 0.0, %v2348
        %v2350 = vpop.f32.mrb[0].mxu0
        %2351 = vmatprep.mubr.bf16.mxu0 %v1593
        %2352 = vmatmul.mubr.bf16.gmra.mrb[0].mxu0 %v1592
        %v2353 = vpop.f32.mrb[0].mxu0
        %v2354 = vadd.f32 0.0, %v2353
        %v2355 = vpop.f32.mrb[0].mxu0
        %v2356 = vpop.f32.mrb[0].mxu0
        %v2357 = vadd.f32 0.0, %v2356
        %v2358 = vpop.f32.mrb[0].mxu0
        %2359 = vmatprep.mubr.bf16.mxu0 %v1595
        %2360 = vmatmul.mubr.bf16.gmra.mrb[0].mxu0 %v1594
        %v2361 = vpop.f32.mrb[0].mxu0
        %v2362 = vadd.f32 0.0, %v2361
        %v2363 = vpop.f32.mrb[0].mxu0
        %v2364 = vpop.f32.mrb[0].mxu0
        %v2365 = vadd.f32 0.0, %v2364
        %v2366 = vpop.f32.mrb[0].mxu0
        %2367 = vdwg.mxu0
        %v2368 = vunpack.c.l.bf16 %v1324
        %v2369 = vunpack.c.h.bf16 %v1324
        %v2370 = vunpack.c.l.bf16 %v1325
        %v2371 = vunpack.c.h.bf16 %v1325
        %v2372 = vunpack.c.l.bf16 %v1326
        %v2373 = vunpack.c.h.bf16 %v1326
        %v2374 = vunpack.c.l.bf16 %v1327
        %v2375 = vunpack.c.h.bf16 %v1327
        %v2376 = vunpack.c.l.bf16 %v1328
        %v2377 = vunpack.c.h.bf16 %v1328
        %v2378 = vunpack.c.l.bf16 %v1329
        %v2379 = vunpack.c.h.bf16 %v1329
        %v2380 = vunpack.c.l.bf16 %v1330
        %v2381 = vunpack.c.h.bf16 %v1330
        %v2382 = vunpack.c.l.bf16 %v1331
        %v2383 = vunpack.c.h.bf16 %v1331
        %v2384 = vunpack.c.l.bf16 %v1332
        %v2385 = vunpack.c.h.bf16 %v1332
        %v2386 = vunpack.c.l.bf16 %v1333
        %v2387 = vunpack.c.h.bf16 %v1333
        %v2388 = vunpack.c.l.bf16 %v1334
        %v2389 = vunpack.c.h.bf16 %v1334
        %v2390 = vunpack.c.l.bf16 %v1335
        %v2391 = vunpack.c.h.bf16 %v1335
        %v2392 = vunpack.c.l.bf16 %v1336
        %v2393 = vunpack.c.h.bf16 %v1336
        %v2394 = vunpack.c.l.bf16 %v1337
        %v2395 = vunpack.c.h.bf16 %v1337
        %v2396 = vunpack.c.l.bf16 %v1338
        %v2397 = vunpack.c.h.bf16 %v1338
        %v2398 = vunpack.c.l.bf16 %v1339
        %v2399 = vunpack.c.h.bf16 %v1339
        %v2400 = vunpack.c.l.bf16 %v1340
        %v2401 = vunpack.c.h.bf16 %v1340
        %v2402 = vunpack.c.l.bf16 %v1341
        %v2403 = vunpack.c.h.bf16 %v1341
        %v2404 = vunpack.c.l.bf16 %v1342
        %v2405 = vunpack.c.h.bf16 %v1342
        %v2406 = vunpack.c.l.bf16 %v1343
        %v2407 = vunpack.c.h.bf16 %v1343
        %v2408 = vunpack.c.l.bf16 %v1344
        %v2409 = vunpack.c.h.bf16 %v1344
        %v2410 = vunpack.c.l.bf16 %v1345
        %v2411 = vunpack.c.h.bf16 %v1345
        %v2412 = vunpack.c.l.bf16 %v1346
        %v2413 = vunpack.c.h.bf16 %v1346
        %v2414 = vunpack.c.l.bf16 %v1347
        %v2415 = vunpack.c.h.bf16 %v1347
        %v2416 = vunpack.c.l.bf16 %v1348
        %v2417 = vunpack.c.h.bf16 %v1348
        %v2418 = vunpack.c.l.bf16 %v1349
        %v2419 = vunpack.c.h.bf16 %v1349
        %v2420 = vunpack.c.l.bf16 %v1350
        %v2421 = vunpack.c.h.bf16 %v1350
        %v2422 = vunpack.c.l.bf16 %v1351
        %v2423 = vunpack.c.h.bf16 %v1351
        %v2424 = vunpack.c.l.bf16 %v1352
        %v2425 = vunpack.c.h.bf16 %v1352
        %v2426 = vunpack.c.l.bf16 %v1353
        %v2427 = vunpack.c.h.bf16 %v1353
        %v2428 = vunpack.c.l.bf16 %v1354
        %v2429 = vunpack.c.h.bf16 %v1354
        %v2430 = vunpack.c.l.bf16 %v1355
        %v2431 = vunpack.c.h.bf16 %v1355
        %v2432 = vld [vmem:[#allocation3] sm:$0xff]
        %v2433 = vld [vmem:[#allocation3 + $0x8] sm:$0xff]
        %v2434 = vld [vmem:[#allocation3 + $0x10] sm:$0xff]
        %v2435 = vld [vmem:[#allocation3 + $0x18] sm:$0xff]
        %v2436 = vld [vmem:[#allocation3 + $0x20] sm:$0xff]
        %v2437 = vld [vmem:[#allocation3 + $0x28] sm:$0xff]
        %v2438 = vld [vmem:[#allocation3 + $0x30] sm:$0xff]
        %v2439 = vld [vmem:[#allocation3 + $0x38] sm:$0xff]
        %v2440 = vld [vmem:[#allocation3 + $0x40] sm:$0xff]
        %v2441 = vld [vmem:[#allocation3 + $0x48] sm:$0xff]
        %v2442 = vld [vmem:[#allocation3 + $0x50] sm:$0xff]
        %v2443 = vld [vmem:[#allocation3 + $0x58] sm:$0xff]
        %v2444 = vld [vmem:[#allocation3 + $0x60] sm:$0xff]
        %v2445 = vld [vmem:[#allocation3 + $0x68] sm:$0xff]
        %v2446 = vld [vmem:[#allocation3 + $0x70] sm:$0xff]
        %v2447 = vld [vmem:[#allocation3 + $0x78] sm:$0xff]
        %v2448 = vld [vmem:[#allocation3 + $0x80] sm:$0xff]
        %v2449 = vld [vmem:[#allocation3 + $0x88] sm:$0xff]
        %v2450 = vld [vmem:[#allocation3 + $0x90] sm:$0xff]
        %v2451 = vld [vmem:[#allocation3 + $0x98] sm:$0xff]
        %v2452 = vld [vmem:[#allocation3 + $0xa0] sm:$0xff]
        %v2453 = vld [vmem:[#allocation3 + $0xa8] sm:$0xff]
        %v2454 = vld [vmem:[#allocation3 + $0xb0] sm:$0xff]
        %v2455 = vld [vmem:[#allocation3 + $0xb8] sm:$0xff]
        %v2456 = vld [vmem:[#allocation3 + $0xc0] sm:$0xff]
        %v2457 = vld [vmem:[#allocation3 + $0xc8] sm:$0xff]
        %v2458 = vld [vmem:[#allocation3 + $0xd0] sm:$0xff]
        %v2459 = vld [vmem:[#allocation3 + $0xd8] sm:$0xff]
        %v2460 = vld [vmem:[#allocation3 + $0xe0] sm:$0xff]
        %v2461 = vld [vmem:[#allocation3 + $0xe8] sm:$0xff]
        %v2462 = vld [vmem:[#allocation3 + $0xf0] sm:$0xff]
        %v2463 = vld [vmem:[#allocation3 + $0xf8] sm:$0xff]
        %2464 = vmatprep.subr.mxu0 0.0
        %2465 = vmatpush1.msra.mxu0 %v2432
        %2466 = vmatprep.subr.mxu0 0.0
        %2467 = vmatpush1.msra.mxu0 %v2433
        %2468 = vmatprep.subr.mxu0 0.0
        %2469 = vmatpush1.msra.mxu0 %v2434
        %2470 = vmatprep.subr.mxu0 0.0
        %2471 = vmatpush1.msra.mxu0 %v2435
        %2472 = vmatprep.subr.mxu0 0.0
        %2473 = vmatpush1.msra.mxu0 %v2436
        %2474 = vmatprep.subr.mxu0 0.0
        %2475 = vmatpush1.msra.mxu0 %v2437
        %2476 = vmatprep.subr.mxu0 0.0
        %2477 = vmatpush1.msra.mxu0 %v2438
        %2478 = vmatprep.subr.mxu0 0.0
        %2479 = vmatpush1.msra.mxu0 %v2439
        %2480 = vmatprep.subr.mxu0 0.0
        %2481 = vmatpush1.msra.mxu0 %v2440
        %2482 = vmatprep.subr.mxu0 0.0
        %2483 = vmatpush1.msra.mxu0 %v2441
        %2484 = vmatprep.subr.mxu0 0.0
        %2485 = vmatpush1.msra.mxu0 %v2442
        %2486 = vmatprep.subr.mxu0 0.0
        %2487 = vmatpush1.msra.mxu0 %v2443
        %2488 = vmatprep.subr.mxu0 0.0
        %2489 = vmatpush1.msra.mxu0 %v2444
        %2490 = vmatprep.subr.mxu0 0.0
        %2491 = vmatpush1.msra.mxu0 %v2445
        %2492 = vmatprep.subr.mxu0 0.0
        %2493 = vmatpush1.msra.mxu0 %v2446
        %2494 = vmatprep.subr.mxu0 0.0
        %2495 = vmatpush1.msra.mxu0 %v2447
        %2496 = vmatprep.subr.mxu0 0.0
        %2497 = vmatpush1.msra.mxu0 %v2448
        %2498 = vmatprep.subr.mxu0 0.0
        %2499 = vmatpush1.msra.mxu0 %v2449
        %2500 = vmatprep.subr.mxu0 0.0
        %2501 = vmatpush1.msra.mxu0 %v2450
        %2502 = vmatprep.subr.mxu0 0.0
        %2503 = vmatpush1.msra.mxu0 %v2451
        %2504 = vmatprep.subr.mxu0 0.0
        %2505 = vmatpush1.msra.mxu0 %v2452
        %2506 = vmatprep.subr.mxu0 0.0
        %2507 = vmatpush1.msra.mxu0 %v2453
        %2508 = vmatprep.subr.mxu0 0.0
        %2509 = vmatpush1.msra.mxu0 %v2454
        %2510 = vmatprep.subr.mxu0 0.0
        %2511 = vmatpush1.msra.mxu0 %v2455
        %2512 = vmatprep.subr.mxu0 0.0
        %2513 = vmatpush1.msra.mxu0 %v2456
        %2514 = vmatprep.subr.mxu0 0.0
        %2515 = vmatpush1.msra.mxu0 %v2457
        %2516 = vmatprep.subr.mxu0 0.0
        %2517 = vmatpush1.msra.mxu0 %v2458
        %2518 = vmatprep.subr.mxu0 0.0
        %2519 = vmatpush1.msra.mxu0 %v2459
        %2520 = vmatprep.subr.mxu0 0.0
        %2521 = vmatpush1.msra.mxu0 %v2460
        %2522 = vmatprep.subr.mxu0 0.0
        %2523 = vmatpush1.msra.mxu0 %v2461
        %2524 = vmatprep.subr.mxu0 0.0
        %2525 = vmatpush1.msra.mxu0 %v2462
        %2526 = vmatprep.subr.mxu0 0.0
        %2527 = vmatpush1.msra.mxu0 %v2463
        %2528 = vmatprep.mubr.f32.mxu0 %v2369
        %2529 = vmatmul.mubr.f32.gmra.mrb[0].mxu0 %v2368
        %v2530 = vpop.f32.mrb[0].mxu0
        %v2531 = vadd.f32 0.0, %v2530
        %v2532 = vpop.f32.mrb[0].mxu0
        %2533 = vmatprep.mubr.f32.mxu0 %v2371
        %2534 = vmatmul.mubr.f32.gmra.mrb[0].mxu0 %v2370
        %v2535 = vpop.f32.mrb[0].mxu0
        %v2536 = vadd.f32 0.0, %v2535
        %v2537 = vpop.f32.mrb[0].mxu0
        %2538 = vmatprep.mubr.f32.mxu0 %v2373
        %2539 = vmatmul.mubr.f32.gmra.mrb[0].mxu0 %v2372
        %v2540 = vpop.f32.mrb[0].mxu0
        %v2541 = vadd.f32 0.0, %v2540
        %v2542 = vpop.f32.mrb[0].mxu0
        %2543 = vmatprep.mubr.f32.mxu0 %v2375
        %2544 = vmatmul.mubr.f32.gmra.mrb[0].mxu0 %v2374
        %v2545 = vpop.f32.mrb[0].mxu0
        %v2546 = vadd.f32 0.0, %v2545
        %v2547 = vpop.f32.mrb[0].mxu0
        %2548 = vmatprep.mubr.f32.mxu0 %v2377
        %2549 = vmatmul.mubr.f32.gmra.mrb[0].mxu0 %v2376
        %v2550 = vpop.f32.mrb[0].mxu0
        %v2551 = vadd.f32 0.0, %v2550
        %v2552 = vpop.f32.mrb[0].mxu0
        %2553 = vmatprep.mubr.f32.mxu0 %v2379
        %2554 = vmatmul.mubr.f32.gmra.mrb[0].mxu0 %v2378
        %v2555 = vpop.f32.mrb[0].mxu0
        %v2556 = vadd.f32 0.0, %v2555
        %v2557 = vpop.f32.mrb[0].mxu0
        %2558 = vmatprep.mubr.f32.mxu0 %v2381
        %2559 = vmatmul.mubr.f32.gmra.mrb[0].mxu0 %v2380
        %v2560 = vpop.f32.mrb[0].mxu0
        %v2561 = vadd.f32 0.0, %v2560
        %v2562 = vpop.f32.mrb[0].mxu0
        %2563 = vmatprep.mubr.f32.mxu0 %v2383
        %2564 = vmatmul.mubr.f32.gmra.mrb[0].mxu0 %v2382
        %v2565 = vpop.f32.mrb[0].mxu0
        %v2566 = vadd.f32 0.0, %v2565
        %v2567 = vpop.f32.mrb[0].mxu0
        %2568 = vmatprep.mubr.f32.mxu0 %v2385
        %2569 = vmatmul.mubr.f32.gmra.mrb[0].mxu0 %v2384
        %v2570 = vpop.f32.mrb[0].mxu0
        %v2571 = vadd.f32 0.0, %v2570
        %v2572 = vpop.f32.mrb[0].mxu0
        %2573 = vmatprep.mubr.f32.mxu0 %v2387
        %2574 = vmatmul.mubr.f32.gmra.mrb[0].mxu0 %v2386
        %v2575 = vpop.f32.mrb[0].mxu0
        %v2576 = vadd.f32 0.0, %v2575
        %v2577 = vpop.f32.mrb[0].mxu0
        %2578 = vmatprep.mubr.f32.mxu0 %v2389
        %2579 = vmatmul.mubr.f32.gmra.mrb[0].mxu0 %v2388
        %v2580 = vpop.f32.mrb[0].mxu0
        %v2581 = vadd.f32 0.0, %v2580
        %v2582 = vpop.f32.mrb[0].mxu0
        %2583 = vmatprep.mubr.f32.mxu0 %v2391
        %2584 = vmatmul.mubr.f32.gmra.mrb[0].mxu0 %v2390
        %v2585 = vpop.f32.mrb[0].mxu0
        %v2586 = vadd.f32 0.0, %v2585
        %v2587 = vpop.f32.mrb[0].mxu0
        %2588 = vmatprep.mubr.f32.mxu0 %v2393
        %2589 = vmatmul.mubr.f32.gmra.mrb[0].mxu0 %v2392
        %v2590 = vpop.f32.mrb[0].mxu0
        %v2591 = vadd.f32 0.0, %v2590
        %v2592 = vpop.f32.mrb[0].mxu0
        %2593 = vmatprep.mubr.f32.mxu0 %v2395
        %2594 = vmatmul.mubr.f32.gmra.mrb[0].mxu0 %v2394
        %v2595 = vpop.f32.mrb[0].mxu0
        %v2596 = vadd.f32 0.0, %v2595
        %v2597 = vpop.f32.mrb[0].mxu0
        %2598 = vmatprep.mubr.f32.mxu0 %v2397
        %2599 = vmatmul.mubr.f32.gmra.mrb[0].mxu0 %v2396
        %v2600 = vpop.f32.mrb[0].mxu0
        %v2601 = vadd.f32 0.0, %v2600
        %v2602 = vpop.f32.mrb[0].mxu0
        %2603 = vmatprep.mubr.f32.mxu0 %v2399
        %2604 = vmatmul.mubr.f32.gmra.mrb[0].mxu0 %v2398
        %v2605 = vpop.f32.mrb[0].mxu0
        %v2606 = vadd.f32 0.0, %v2605
        %v2607 = vpop.f32.mrb[0].mxu0
        %2608 = vmatprep.mubr.f32.mxu0 %v2401
        %2609 = vmatmul.mubr.f32.gmra.mrb[0].mxu0 %v2400
        %v2610 = vpop.f32.mrb[0].mxu0
        %v2611 = vadd.f32 0.0, %v2610
        %v2612 = vpop.f32.mrb[0].mxu0
        %2613 = vmatprep.mubr.f32.mxu0 %v2403
        %2614 = vmatmul.mubr.f32.gmra.mrb[0].mxu0 %v2402
        %v2615 = vpop.f32.mrb[0].mxu0
        %v2616 = vadd.f32 0.0, %v2615
        %v2617 = vpop.f32.mrb[0].mxu0
        %2618 = vmatprep.mubr.f32.mxu0 %v2405
        %2619 = vmatmul.mubr.f32.gmra.mrb[0].mxu0 %v2404
        %v2620 = vpop.f32.mrb[0].mxu0
        %v2621 = vadd.f32 0.0, %v2620
        %v2622 = vpop.f32.mrb[0].mxu0
        %2623 = vmatprep.mubr.f32.mxu0 %v2407
        %2624 = vmatmul.mubr.f32.gmra.mrb[0].mxu0 %v2406
        %v2625 = vpop.f32.mrb[0].mxu0
        %v2626 = vadd.f32 0.0, %v2625
        %v2627 = vpop.f32.mrb[0].mxu0
        %2628 = vmatprep.mubr.f32.mxu0 %v2409
        %2629 = vmatmul.mubr.f32.gmra.mrb[0].mxu0 %v2408
        %v2630 = vpop.f32.mrb[0].mxu0
        %v2631 = vadd.f32 0.0, %v2630
        %v2632 = vpop.f32.mrb[0].mxu0
        %2633 = vmatprep.mubr.f32.mxu0 %v2411
        %2634 = vmatmul.mubr.f32.gmra.mrb[0].mxu0 %v2410
        %v2635 = vpop.f32.mrb[0].mxu0
        %v2636 = vadd.f32 0.0, %v2635
        %v2637 = vpop.f32.mrb[0].mxu0
        %2638 = vmatprep.mubr.f32.mxu0 %v2413
        %2639 = vmatmul.mubr.f32.gmra.mrb[0].mxu0 %v2412
        %v2640 = vpop.f32.mrb[0].mxu0
        %v2641 = vadd.f32 0.0, %v2640
        %v2642 = vpop.f32.mrb[0].mxu0
        %2643 = vmatprep.mubr.f32.mxu0 %v2415
        %2644 = vmatmul.mubr.f32.gmra.mrb[0].mxu0 %v2414
        %v2645 = vpop.f32.mrb[0].mxu0
        %v2646 = vadd.f32 0.0, %v2645
        %v2647 = vpop.f32.mrb[0].mxu0
        %2648 = vmatprep.mubr.f32.mxu0 %v2417
        %2649 = vmatmul.mubr.f32.gmra.mrb[0].mxu0 %v2416
        %v2650 = vpop.f32.mrb[0].mxu0
        %v2651 = vadd.f32 0.0, %v2650
        %v2652 = vpop.f32.mrb[0].mxu0
        %2653 = vmatprep.mubr.f32.mxu0 %v2419
        %2654 = vmatmul.mubr.f32.gmra.mrb[0].mxu0 %v2418
        %v2655 = vpop.f32.mrb[0].mxu0
        %v2656 = vadd.f32 0.0, %v2655
        %v2657 = vpop.f32.mrb[0].mxu0
        %2658 = vmatprep.mubr.f32.mxu0 %v2421
        %2659 = vmatmul.mubr.f32.gmra.mrb[0].mxu0 %v2420
        %v2660 = vpop.f32.mrb[0].mxu0
        %v2661 = vadd.f32 0.0, %v2660
        %v2662 = vpop.f32.mrb[0].mxu0
        %2663 = vmatprep.mubr.f32.mxu0 %v2423
        %2664 = vmatmul.mubr.f32.gmra.mrb[0].mxu0 %v2422
        %v2665 = vpop.f32.mrb[0].mxu0
        %v2666 = vadd.f32 0.0, %v2665
        %v2667 = vpop.f32.mrb[0].mxu0
        %2668 = vmatprep.mubr.f32.mxu0 %v2425
        %2669 = vmatmul.mubr.f32.gmra.mrb[0].mxu0 %v2424
        %v2670 = vpop.f32.mrb[0].mxu0
        %v2671 = vadd.f32 0.0, %v2670
        %v2672 = vpop.f32.mrb[0].mxu0
        %2673 = vmatprep.mubr.f32.mxu0 %v2427
        %2674 = vmatmul.mubr.f32.gmra.mrb[0].mxu0 %v2426
        %v2675 = vpop.f32.mrb[0].mxu0
        %v2676 = vadd.f32 0.0, %v2675
        %v2677 = vpop.f32.mrb[0].mxu0
        %2678 = vmatprep.mubr.f32.mxu0 %v2429
        %2679 = vmatmul.mubr.f32.gmra.mrb[0].mxu0 %v2428
        %v2680 = vpop.f32.mrb[0].mxu0
        %v2681 = vadd.f32 0.0, %v2680
        %v2682 = vpop.f32.mrb[0].mxu0
        %2683 = vmatprep.mubr.f32.mxu0 %v2431
        %2684 = vmatmul.mubr.f32.gmra.mrb[0].mxu0 %v2430
        %v2685 = vpop.f32.mrb[0].mxu0
        %v2686 = vadd.f32 0.0, %v2685
        %v2687 = vpop.f32.mrb[0].mxu0
        %2688 = vdwg.mxu0
        %v2689 = vmul.f32 %v1663, %v1663
        %v2690 = vmul.f32 %v1665, %v1665
        %v2691 = vmul.f32 %v1856, %v1856
        %v2692 = vmul.f32 %v1858, %v1858
        %v2693 = vmul.f32 %v2049, %v2049
        %v2694 = vmul.f32 %v2051, %v2051
        %v2695 = vmul.f32 %v2242, %v2242
        %v2696 = vmul.f32 %v1667, %v1667
        %v2697 = vmul.f32 %v1669, %v1669
        %v2698 = vmul.f32 %v1860, %v1860
        %v2699 = vmul.f32 %v1862, %v1862
        %v2700 = vmul.f32 %v2053, %v2053
        %v2701 = vmul.f32 %v2055, %v2055
        %v2702 = vmul.f32 %v2245, %v2245
        %v2703 = vmul.f32 %v1673, %v1673
        %v2704 = vmul.f32 %v1675, %v1675
        %v2705 = vmul.f32 %v1866, %v1866
        %v2706 = vmul.f32 %v1868, %v1868
        %v2707 = vmul.f32 %v2059, %v2059
        %v2708 = vmul.f32 %v2061, %v2061
        %v2709 = vmul.f32 %v2250, %v2250
        %v2710 = vmul.f32 %v1677, %v1677
        %v2711 = vmul.f32 %v1679, %v1679
        %v2712 = vmul.f32 %v1870, %v1870
        %v2713 = vmul.f32 %v1872, %v1872
        %v2714 = vmul.f32 %v2063, %v2063
        %v2715 = vmul.f32 %v2065, %v2065
        %v2716 = vmul.f32 %v2253, %v2253
        %v2717 = vmul.f32 %v1683, %v1683
        %v2718 = vmul.f32 %v1685, %v1685
        %v2719 = vmul.f32 %v1876, %v1876
        %v2720 = vmul.f32 %v1878, %v1878
        %v2721 = vmul.f32 %v2069, %v2069
        %v2722 = vmul.f32 %v2071, %v2071
        %v2723 = vmul.f32 %v2258, %v2258
        %v2724 = vmul.f32 %v1687, %v1687
        %v2725 = vmul.f32 %v1689, %v1689
        %v2726 = vmul.f32 %v1880, %v1880
        %v2727 = vmul.f32 %v1882, %v1882
        %v2728 = vmul.f32 %v2073, %v2073
        %v2729 = vmul.f32 %v2075, %v2075
        %v2730 = vmul.f32 %v2261, %v2261
        %v2731 = vmul.f32 %v1693, %v1693
        %v2732 = vmul.f32 %v1695, %v1695
        %v2733 = vmul.f32 %v1886, %v1886
        %v2734 = vmul.f32 %v1888, %v1888
        %v2735 = vmul.f32 %v2079, %v2079
        %v2736 = vmul.f32 %v2081, %v2081
        %v2737 = vmul.f32 %v2266, %v2266
        %v2738 = vmul.f32 %v1697, %v1697
        %v2739 = vmul.f32 %v1699, %v1699
        %v2740 = vmul.f32 %v1890, %v1890
        %v2741 = vmul.f32 %v1892, %v1892
        %v2742 = vmul.f32 %v2083, %v2083
        %v2743 = vmul.f32 %v2085, %v2085
        %v2744 = vmul.f32 %v2269, %v2269
        %v2745 = vmul.f32 %v1703, %v1703
        %v2746 = vmul.f32 %v1705, %v1705
        %v2747 = vmul.f32 %v1896, %v1896
        %v2748 = vmul.f32 %v1898, %v1898
        %v2749 = vmul.f32 %v2089, %v2089
        %v2750 = vmul.f32 %v2091, %v2091
        %v2751 = vmul.f32 %v2274, %v2274
        %v2752 = vmul.f32 %v1707, %v1707
        %v2753 = vmul.f32 %v1709, %v1709
        %v2754 = vmul.f32 %v1900, %v1900
        %v2755 = vmul.f32 %v1902, %v1902
        %v2756 = vmul.f32 %v2093, %v2093
        %v2757 = vmul.f32 %v2095, %v2095
        %v2758 = vmul.f32 %v2277, %v2277
        %v2759 = vmul.f32 %v1713, %v1713
        %v2760 = vmul.f32 %v1715, %v1715
        %v2761 = vmul.f32 %v1906, %v1906
        %v2762 = vmul.f32 %v1908, %v1908
        %v2763 = vmul.f32 %v2099, %v2099
        %v2764 = vmul.f32 %v2101, %v2101
        %v2765 = vmul.f32 %v2282, %v2282
        %v2766 = vmul.f32 %v1717, %v1717
        %v2767 = vmul.f32 %v1719, %v1719
        %v2768 = vmul.f32 %v1910, %v1910
        %v2769 = vmul.f32 %v1912, %v1912
        %v2770 = vmul.f32 %v2103, %v2103
        %v2771 = vmul.f32 %v2105, %v2105
        %v2772 = vmul.f32 %v2285, %v2285
        %v2773 = vmul.f32 %v1723, %v1723
        %v2774 = vmul.f32 %v1725, %v1725
        %v2775 = vmul.f32 %v1916, %v1916
        %v2776 = vmul.f32 %v1918, %v1918
        %v2777 = vmul.f32 %v2109, %v2109
        %v2778 = vmul.f32 %v2111, %v2111
        %v2779 = vmul.f32 %v2290, %v2290
        %v2780 = vmul.f32 %v1727, %v1727
        %v2781 = vmul.f32 %v1729, %v1729
        %v2782 = vmul.f32 %v1920, %v1920
        %v2783 = vmul.f32 %v1922, %v1922
        %v2784 = vmul.f32 %v2113, %v2113
        %v2785 = vmul.f32 %v2115, %v2115
        %v2786 = vmul.f32 %v2293, %v2293
        %v2787 = vmul.f32 %v1733, %v1733
        %v2788 = vmul.f32 %v1735, %v1735
        %v2789 = vmul.f32 %v1926, %v1926
        %v2790 = vmul.f32 %v1928, %v1928
        %v2791 = vmul.f32 %v2119, %v2119
        %v2792 = vmul.f32 %v2121, %v2121
        %v2793 = vmul.f32 %v2298, %v2298
        %v2794 = vmul.f32 %v1737, %v1737
        %v2795 = vmul.f32 %v1739, %v1739
        %v2796 = vmul.f32 %v1930, %v1930
        %v2797 = vmul.f32 %v1932, %v1932
        %v2798 = vmul.f32 %v2123, %v2123
        %v2799 = vmul.f32 %v2125, %v2125
        %v2800 = vmul.f32 %v2301, %v2301
        %v2801 = vmul.f32 %v1743, %v1743
        %v2802 = vmul.f32 %v1745, %v1745
        %v2803 = vmul.f32 %v1936, %v1936
        %v2804 = vmul.f32 %v1938, %v1938
        %v2805 = vmul.f32 %v2129, %v2129
        %v2806 = vmul.f32 %v2131, %v2131
        %v2807 = vmul.f32 %v2306, %v2306
        %v2808 = vmul.f32 %v1747, %v1747
        %v2809 = vmul.f32 %v1749, %v1749
        %v2810 = vmul.f32 %v1940, %v1940
        %v2811 = vmul.f32 %v1942, %v1942
        %v2812 = vmul.f32 %v2133, %v2133
        %v2813 = vmul.f32 %v2135, %v2135
        %v2814 = vmul.f32 %v2309, %v2309
        %v2815 = vmul.f32 %v1753, %v1753
        %v2816 = vmul.f32 %v1755, %v1755
        %v2817 = vmul.f32 %v1946, %v1946
        %v2818 = vmul.f32 %v1948, %v1948
        %v2819 = vmul.f32 %v2139, %v2139
        %v2820 = vmul.f32 %v2141, %v2141
        %v2821 = vmul.f32 %v2314, %v2314
        %v2822 = vmul.f32 %v1757, %v1757
        %v2823 = vmul.f32 %v1759, %v1759
        %v2824 = vmul.f32 %v1950, %v1950
        %v2825 = vmul.f32 %v1952, %v1952
        %v2826 = vmul.f32 %v2143, %v2143
        %v2827 = vmul.f32 %v2145, %v2145
        %v2828 = vmul.f32 %v2317, %v2317
        %v2829 = vmul.f32 %v1763, %v1763
        %v2830 = vmul.f32 %v1765, %v1765
        %v2831 = vmul.f32 %v1956, %v1956
        %v2832 = vmul.f32 %v1958, %v1958
        %v2833 = vmul.f32 %v2149, %v2149
        %v2834 = vmul.f32 %v2151, %v2151
        %v2835 = vmul.f32 %v2322, %v2322
        %v2836 = vmul.f32 %v1767, %v1767
        %v2837 = vmul.f32 %v1769, %v1769
        %v2838 = vmul.f32 %v1960, %v1960
        %v2839 = vmul.f32 %v1962, %v1962
        %v2840 = vmul.f32 %v2153, %v2153
        %v2841 = vmul.f32 %v2155, %v2155
        %v2842 = vmul.f32 %v2325, %v2325
        %v2843 = vmul.f32 %v1773, %v1773
        %v2844 = vmul.f32 %v1775, %v1775
        %v2845 = vmul.f32 %v1966, %v1966
        %v2846 = vmul.f32 %v1968, %v1968
        %v2847 = vmul.f32 %v2159, %v2159
        %v2848 = vmul.f32 %v2161, %v2161
        %v2849 = vmul.f32 %v2330, %v2330
        %v2850 = vmul.f32 %v1777, %v1777
        %v2851 = vmul.f32 %v1779, %v1779
        %v2852 = vmul.f32 %v1970, %v1970
        %v2853 = vmul.f32 %v1972, %v1972
        %v2854 = vmul.f32 %v2163, %v2163
        %v2855 = vmul.f32 %v2165, %v2165
        %v2856 = vmul.f32 %v2333, %v2333
        %v2857 = vmul.f32 %v1783, %v1783
        %v2858 = vmul.f32 %v1785, %v1785
        %v2859 = vmul.f32 %v1976, %v1976
        %v2860 = vmul.f32 %v1978, %v1978
        %v2861 = vmul.f32 %v2169, %v2169
        %v2862 = vmul.f32 %v2171, %v2171
        %v2863 = vmul.f32 %v2338, %v2338
        %v2864 = vmul.f32 %v1787, %v1787
        %v2865 = vmul.f32 %v1789, %v1789
        %v2866 = vmul.f32 %v1980, %v1980
        %v2867 = vmul.f32 %v1982, %v1982
        %v2868 = vmul.f32 %v2173, %v2173
        %v2869 = vmul.f32 %v2175, %v2175
        %v2870 = vmul.f32 %v2341, %v2341
        %v2871 = vmul.f32 %v1793, %v1793
        %v2872 = vmul.f32 %v1795, %v1795
        %v2873 = vmul.f32 %v1986, %v1986
        %v2874 = vmul.f32 %v1988, %v1988
        %v2875 = vmul.f32 %v2179, %v2179
        %v2876 = vmul.f32 %v2181, %v2181
        %v2877 = vmul.f32 %v2346, %v2346
        %v2878 = vmul.f32 %v1797, %v1797
        %v2879 = vmul.f32 %v1799, %v1799
        %v2880 = vmul.f32 %v1990, %v1990
        %v2881 = vmul.f32 %v1992, %v1992
        %v2882 = vmul.f32 %v2183, %v2183
        %v2883 = vmul.f32 %v2185, %v2185
        %v2884 = vmul.f32 %v2349, %v2349
        %v2885 = vmul.f32 %v1803, %v1803
        %v2886 = vmul.f32 %v1805, %v1805
        %v2887 = vmul.f32 %v1996, %v1996
        %v2888 = vmul.f32 %v1998, %v1998
        %v2889 = vmul.f32 %v2189, %v2189
        %v2890 = vmul.f32 %v2191, %v2191
        %v2891 = vmul.f32 %v2354, %v2354
        %v2892 = vmul.f32 %v1807, %v1807
        %v2893 = vmul.f32 %v1809, %v1809
        %v2894 = vmul.f32 %v2000, %v2000
        %v2895 = vmul.f32 %v2002, %v2002
        %v2896 = vmul.f32 %v2193, %v2193
        %v2897 = vmul.f32 %v2195, %v2195
        %v2898 = vmul.f32 %v2357, %v2357
        %v2899 = vmul.f32 %v1813, %v1813
        %v2900 = vmul.f32 %v1815, %v1815
        %v2901 = vmul.f32 %v2006, %v2006
        %v2902 = vmul.f32 %v2008, %v2008
        %v2903 = vmul.f32 %v2199, %v2199
        %v2904 = vmul.f32 %v2201, %v2201
        %v2905 = vmul.f32 %v2362, %v2362
        %v2906 = vmul.f32 %v1817, %v1817
        %v2907 = vmul.f32 %v1819, %v1819
        %v2908 = vmul.f32 %v2010, %v2010
        %v2909 = vmul.f32 %v2012, %v2012
        %v2910 = vmul.f32 %v2203, %v2203
        %v2911 = vmul.f32 %v2205, %v2205
        %v2912 = vmul.f32 %v2365, %v2365
        %v2913 = vadd.f32 %v2689, %v2690
        %v2914 = vadd.f32 %v2913, %v2691
        %v2915 = vadd.f32 %v2914, %v2692
        %v2916 = vadd.f32 %v2915, %v2693
        %v2917 = vadd.f32 %v2916, %v2694
        %vm2918 = vcmask 130048
        %v2919 = vsel %vm2918, %v2695, 0.0
        %v2920 = vadd.f32 %v2917, %v2919
        %2921 = vadd.xlane.f32.xlu0 %v2920
        %v2922 = vpop.xlane.xlu0 %2921
        %v2923 = vadd.f32 %v2696, %v2697
        %v2924 = vadd.f32 %v2923, %v2698
        %v2925 = vadd.f32 %v2924, %v2699
        %v2926 = vadd.f32 %v2925, %v2700
        %v2927 = vadd.f32 %v2926, %v2701
        %v2928 = vsel %vm2918, %v2702, 0.0
        %v2929 = vadd.f32 %v2927, %v2928
        %2930 = vadd.xlane.f32.xlu0 %v2929
        %v2931 = vpop.xlane.xlu0 %2930
        %v2932 = vadd.f32 %v2703, %v2704
        %v2933 = vadd.f32 %v2932, %v2705
        %v2934 = vadd.f32 %v2933, %v2706
        %v2935 = vadd.f32 %v2934, %v2707
        %v2936 = vadd.f32 %v2935, %v2708
        %v2937 = vsel %vm2918, %v2709, 0.0
        %v2938 = vadd.f32 %v2936, %v2937
        %2939 = vadd.xlane.f32.xlu0 %v2938
        %v2940 = vpop.xlane.xlu0 %2939
        %v2941 = vadd.f32 %v2710, %v2711
        %v2942 = vadd.f32 %v2941, %v2712
        %v2943 = vadd.f32 %v2942, %v2713
        %v2944 = vadd.f32 %v2943, %v2714
        %v2945 = vadd.f32 %v2944, %v2715
        %v2946 = vsel %vm2918, %v2716, 0.0
        %v2947 = vadd.f32 %v2945, %v2946
        %2948 = vadd.xlane.f32.xlu0 %v2947
        %v2949 = vpop.xlane.xlu0 %2948
        %v2950 = vadd.f32 %v2717, %v2718
        %v2951 = vadd.f32 %v2950, %v2719
        %v2952 = vadd.f32 %v2951, %v2720
        %v2953 = vadd.f32 %v2952, %v2721
        %v2954 = vadd.f32 %v2953, %v2722
        %v2955 = vsel %vm2918, %v2723, 0.0
        %v2956 = vadd.f32 %v2954, %v2955
        %2957 = vadd.xlane.f32.xlu0 %v2956
        %v2958 = vpop.xlane.xlu0 %2957
        %v2959 = vadd.f32 %v2724, %v2725
        %v2960 = vadd.f32 %v2959, %v2726
        %v2961 = vadd.f32 %v2960, %v2727
        %v2962 = vadd.f32 %v2961, %v2728
        %v2963 = vadd.f32 %v2962, %v2729
        %v2964 = vsel %vm2918, %v2730, 0.0
        %v2965 = vadd.f32 %v2963, %v2964
        %2966 = vadd.xlane.f32.xlu0 %v2965
        %v2967 = vpop.xlane.xlu0 %2966
        %v2968 = vadd.f32 %v2731, %v2732
        %v2969 = vadd.f32 %v2968, %v2733
        %v2970 = vadd.f32 %v2969, %v2734
        %v2971 = vadd.f32 %v2970, %v2735
        %v2972 = vadd.f32 %v2971, %v2736
        %v2973 = vsel %vm2918, %v2737, 0.0
        %v2974 = vadd.f32 %v2972, %v2973
        %2975 = vadd.xlane.f32.xlu0 %v2974
        %v2976 = vpop.xlane.xlu0 %2975
        %v2977 = vadd.f32 %v2738, %v2739
        %v2978 = vadd.f32 %v2977, %v2740
        %v2979 = vadd.f32 %v2978, %v2741
        %v2980 = vadd.f32 %v2979, %v2742
        %v2981 = vadd.f32 %v2980, %v2743
        %v2982 = vsel %vm2918, %v2744, 0.0
        %v2983 = vadd.f32 %v2981, %v2982
        %2984 = vadd.xlane.f32.xlu0 %v2983
        %v2985 = vpop.xlane.xlu0 %2984
        %v2986 = vadd.f32 %v2745, %v2746
        %v2987 = vadd.f32 %v2986, %v2747
        %v2988 = vadd.f32 %v2987, %v2748
        %v2989 = vadd.f32 %v2988, %v2749
        %v2990 = vadd.f32 %v2989, %v2750
        %v2991 = vsel %vm2918, %v2751, 0.0
        %v2992 = vadd.f32 %v2990, %v2991
        %2993 = vadd.xlane.f32.xlu0 %v2992
        %v2994 = vpop.xlane.xlu0 %2993
        %v2995 = vadd.f32 %v2752, %v2753
        %v2996 = vadd.f32 %v2995, %v2754
        %v2997 = vadd.f32 %v2996, %v2755
        %v2998 = vadd.f32 %v2997, %v2756
        %v2999 = vadd.f32 %v2998, %v2757
        %v3000 = vsel %vm2918, %v2758, 0.0
        %v3001 = vadd.f32 %v2999, %v3000
        %3002 = vadd.xlane.f32.xlu0 %v3001
        %v3003 = vpop.xlane.xlu0 %3002
        %v3004 = vadd.f32 %v2759, %v2760
        %v3005 = vadd.f32 %v3004, %v2761
        %v3006 = vadd.f32 %v3005, %v2762
        %v3007 = vadd.f32 %v3006, %v2763
        %v3008 = vadd.f32 %v3007, %v2764
        %v3009 = vsel %vm2918, %v2765, 0.0
        %v3010 = vadd.f32 %v3008, %v3009
        %3011 = vadd.xlane.f32.xlu0 %v3010
        %v3012 = vpop.xlane.xlu0 %3011
        %v3013 = vadd.f32 %v2766, %v2767
        %v3014 = vadd.f32 %v3013, %v2768
        %v3015 = vadd.f32 %v3014, %v2769
        %v3016 = vadd.f32 %v3015, %v2770
        %v3017 = vadd.f32 %v3016, %v2771
        %v3018 = vsel %vm2918, %v2772, 0.0
        %v3019 = vadd.f32 %v3017, %v3018
        %3020 = vadd.xlane.f32.xlu0 %v3019
        %v3021 = vpop.xlane.xlu0 %3020
        %v3022 = vadd.f32 %v2773, %v2774
        %v3023 = vadd.f32 %v3022, %v2775
        %v3024 = vadd.f32 %v3023, %v2776
        %v3025 = vadd.f32 %v3024, %v2777
        %v3026 = vadd.f32 %v3025, %v2778
        %v3027 = vsel %vm2918, %v2779, 0.0
        %v3028 = vadd.f32 %v3026, %v3027
        %3029 = vadd.xlane.f32.xlu0 %v3028
        %v3030 = vpop.xlane.xlu0 %3029
        %v3031 = vadd.f32 %v2780, %v2781
        %v3032 = vadd.f32 %v3031, %v2782
        %v3033 = vadd.f32 %v3032, %v2783
        %v3034 = vadd.f32 %v3033, %v2784
        %v3035 = vadd.f32 %v3034, %v2785
        %v3036 = vsel %vm2918, %v2786, 0.0
        %v3037 = vadd.f32 %v3035, %v3036
        %3038 = vadd.xlane.f32.xlu0 %v3037
        %v3039 = vpop.xlane.xlu0 %3038
        %v3040 = vadd.f32 %v2787, %v2788
        %v3041 = vadd.f32 %v3040, %v2789
        %v3042 = vadd.f32 %v3041, %v2790
        %v3043 = vadd.f32 %v3042, %v2791
        %v3044 = vadd.f32 %v3043, %v2792
        %v3045 = vsel %vm2918, %v2793, 0.0
        %v3046 = vadd.f32 %v3044, %v3045
        %3047 = vadd.xlane.f32.xlu0 %v3046
        %v3048 = vpop.xlane.xlu0 %3047
        %v3049 = vadd.f32 %v2794, %v2795
        %v3050 = vadd.f32 %v3049, %v2796
        %v3051 = vadd.f32 %v3050, %v2797
        %v3052 = vadd.f32 %v3051, %v2798
        %v3053 = vadd.f32 %v3052, %v2799
        %v3054 = vsel %vm2918, %v2800, 0.0
        %v3055 = vadd.f32 %v3053, %v3054
        %3056 = vadd.xlane.f32.xlu0 %v3055
        %v3057 = vpop.xlane.xlu0 %3056
        %v3058 = vadd.f32 %v2801, %v2802
        %v3059 = vadd.f32 %v3058, %v2803
        %v3060 = vadd.f32 %v3059, %v2804
        %v3061 = vadd.f32 %v3060, %v2805
        %v3062 = vadd.f32 %v3061, %v2806
        %v3063 = vsel %vm2918, %v2807, 0.0
        %v3064 = vadd.f32 %v3062, %v3063
        %3065 = vadd.xlane.f32.xlu0 %v3064
        %v3066 = vpop.xlane.xlu0 %3065
        %v3067 = vadd.f32 %v2808, %v2809
        %v3068 = vadd.f32 %v3067, %v2810
        %v3069 = vadd.f32 %v3068, %v2811
        %v3070 = vadd.f32 %v3069, %v2812
        %v3071 = vadd.f32 %v3070, %v2813
        %v3072 = vsel %vm2918, %v2814, 0.0
        %v3073 = vadd.f32 %v3071, %v3072
        %3074 = vadd.xlane.f32.xlu0 %v3073
        %v3075 = vpop.xlane.xlu0 %3074
        %v3076 = vadd.f32 %v2815, %v2816
        %v3077 = vadd.f32 %v3076, %v2817
        %v3078 = vadd.f32 %v3077, %v2818
        %v3079 = vadd.f32 %v3078, %v2819
        %v3080 = vadd.f32 %v3079, %v2820
        %v3081 = vsel %vm2918, %v2821, 0.0
        %v3082 = vadd.f32 %v3080, %v3081
        %3083 = vadd.xlane.f32.xlu0 %v3082
        %v3084 = vpop.xlane.xlu0 %3083
        %v3085 = vadd.f32 %v2822, %v2823
        %v3086 = vadd.f32 %v3085, %v2824
        %v3087 = vadd.f32 %v3086, %v2825
        %v3088 = vadd.f32 %v3087, %v2826
        %v3089 = vadd.f32 %v3088, %v2827
        %v3090 = vsel %vm2918, %v2828, 0.0
        %v3091 = vadd.f32 %v3089, %v3090
        %3092 = vadd.xlane.f32.xlu0 %v3091
        %v3093 = vpop.xlane.xlu0 %3092
        %v3094 = vadd.f32 %v2829, %v2830
        %v3095 = vadd.f32 %v3094, %v2831
        %v3096 = vadd.f32 %v3095, %v2832
        %v3097 = vadd.f32 %v3096, %v2833
        %v3098 = vadd.f32 %v3097, %v2834
        %v3099 = vsel %vm2918, %v2835, 0.0
        %v3100 = vadd.f32 %v3098, %v3099
        %3101 = vadd.xlane.f32.xlu0 %v3100
        %v3102 = vpop.xlane.xlu0 %3101
        %v3103 = vadd.f32 %v2836, %v2837
        %v3104 = vadd.f32 %v3103, %v2838
        %v3105 = vadd.f32 %v3104, %v2839
        %v3106 = vadd.f32 %v3105, %v2840
        %v3107 = vadd.f32 %v3106, %v2841
        %v3108 = vsel %vm2918, %v2842, 0.0
        %v3109 = vadd.f32 %v3107, %v3108
        %3110 = vadd.xlane.f32.xlu0 %v3109
        %v3111 = vpop.xlane.xlu0 %3110
        %v3112 = vadd.f32 %v2843, %v2844
        %v3113 = vadd.f32 %v3112, %v2845
        %v3114 = vadd.f32 %v3113, %v2846
        %v3115 = vadd.f32 %v3114, %v2847
        %v3116 = vadd.f32 %v3115, %v2848
        %v3117 = vsel %vm2918, %v2849, 0.0
        %v3118 = vadd.f32 %v3116, %v3117
        %3119 = vadd.xlane.f32.xlu0 %v3118
        %v3120 = vpop.xlane.xlu0 %3119
        %v3121 = vadd.f32 %v2850, %v2851
        %v3122 = vadd.f32 %v3121, %v2852
        %v3123 = vadd.f32 %v3122, %v2853
        %v3124 = vadd.f32 %v3123, %v2854
        %v3125 = vadd.f32 %v3124, %v2855
        %v3126 = vsel %vm2918, %v2856, 0.0
        %v3127 = vadd.f32 %v3125, %v3126
        %3128 = vadd.xlane.f32.xlu0 %v3127
        %v3129 = vpop.xlane.xlu0 %3128
        %v3130 = vadd.f32 %v2857, %v2858
        %v3131 = vadd.f32 %v3130, %v2859
        %v3132 = vadd.f32 %v3131, %v2860
        %v3133 = vadd.f32 %v3132, %v2861
        %v3134 = vadd.f32 %v3133, %v2862
        %v3135 = vsel %vm2918, %v2863, 0.0
        %v3136 = vadd.f32 %v3134, %v3135
        %3137 = vadd.xlane.f32.xlu0 %v3136
        %v3138 = vpop.xlane.xlu0 %3137
        %v3139 = vadd.f32 %v2864, %v2865
        %v3140 = vadd.f32 %v3139, %v2866
        %v3141 = vadd.f32 %v3140, %v2867
        %v3142 = vadd.f32 %v3141, %v2868
        %v3143 = vadd.f32 %v3142, %v2869
        %v3144 = vsel %vm2918, %v2870, 0.0
        %v3145 = vadd.f32 %v3143, %v3144
        %3146 = vadd.xlane.f32.xlu0 %v3145
        %v3147 = vpop.xlane.xlu0 %3146
        %v3148 = vadd.f32 %v2871, %v2872
        %v3149 = vadd.f32 %v3148, %v2873
        %v3150 = vadd.f32 %v3149, %v2874
        %v3151 = vadd.f32 %v3150, %v2875
        %v3152 = vadd.f32 %v3151, %v2876
        %v3153 = vsel %vm2918, %v2877, 0.0
        %v3154 = vadd.f32 %v3152, %v3153
        %3155 = vadd.xlane.f32.xlu0 %v3154
        %v3156 = vpop.xlane.xlu0 %3155
        %v3157 = vadd.f32 %v2878, %v2879
        %v3158 = vadd.f32 %v3157, %v2880
        %v3159 = vadd.f32 %v3158, %v2881
        %v3160 = vadd.f32 %v3159, %v2882
        %v3161 = vadd.f32 %v3160, %v2883
        %v3162 = vsel %vm2918, %v2884, 0.0
        %v3163 = vadd.f32 %v3161, %v3162
        %3164 = vadd.xlane.f32.xlu0 %v3163
        %v3165 = vpop.xlane.xlu0 %3164
        %v3166 = vadd.f32 %v2885, %v2886
        %v3167 = vadd.f32 %v3166, %v2887
        %v3168 = vadd.f32 %v3167, %v2888
        %v3169 = vadd.f32 %v3168, %v2889
        %v3170 = vadd.f32 %v3169, %v2890
        %v3171 = vsel %vm2918, %v2891, 0.0
        %v3172 = vadd.f32 %v3170, %v3171
        %3173 = vadd.xlane.f32.xlu0 %v3172
        %v3174 = vpop.xlane.xlu0 %3173
        %v3175 = vadd.f32 %v2892, %v2893
        %v3176 = vadd.f32 %v3175, %v2894
        %v3177 = vadd.f32 %v3176, %v2895
        %v3178 = vadd.f32 %v3177, %v2896
        %v3179 = vadd.f32 %v3178, %v2897
        %v3180 = vsel %vm2918, %v2898, 0.0
        %v3181 = vadd.f32 %v3179, %v3180
        %3182 = vadd.xlane.f32.xlu0 %v3181
        %v3183 = vpop.xlane.xlu0 %3182
        %v3184 = vadd.f32 %v2899, %v2900
        %v3185 = vadd.f32 %v3184, %v2901
        %v3186 = vadd.f32 %v3185, %v2902
        %v3187 = vadd.f32 %v3186, %v2903
        %v3188 = vadd.f32 %v3187, %v2904
        %v3189 = vsel %vm2918, %v2905, 0.0
        %v3190 = vadd.f32 %v3188, %v3189
        %3191 = vadd.xlane.f32.xlu0 %v3190
        %v3192 = vpop.xlane.xlu0 %3191
        %v3193 = vadd.f32 %v2906, %v2907
        %v3194 = vadd.f32 %v3193, %v2908
        %v3195 = vadd.f32 %v3194, %v2909
        %v3196 = vadd.f32 %v3195, %v2910
        %v3197 = vadd.f32 %v3196, %v2911
        %v3198 = vsel %vm2918, %v2912, 0.0
        %v3199 = vadd.f32 %v3197, %v3198
        %3200 = vadd.xlane.f32.xlu0 %v3199
        %v3201 = vpop.xlane.xlu0 %3200
        %v3202 = vmul.f32 %v2531, 0.0012755102
        %v3203 = vmul.f32 %v2536, 0.0012755102
        %v3204 = vmul.f32 %v2541, 0.0012755102
        %v3205 = vmul.f32 %v2546, 0.0012755102
        %v3206 = vmul.f32 %v2551, 0.0012755102
        %v3207 = vmul.f32 %v2556, 0.0012755102
        %v3208 = vmul.f32 %v2561, 0.0012755102
        %v3209 = vmul.f32 %v2566, 0.0012755102
        %v3210 = vmul.f32 %v2571, 0.0012755102
        %v3211 = vmul.f32 %v2576, 0.0012755102
        %v3212 = vmul.f32 %v2581, 0.0012755102
        %v3213 = vmul.f32 %v2586, 0.0012755102
        %v3214 = vmul.f32 %v2591, 0.0012755102
        %v3215 = vmul.f32 %v2596, 0.0012755102
        %v3216 = vmul.f32 %v2601, 0.0012755102
        %v3217 = vmul.f32 %v2606, 0.0012755102
        %v3218 = vmul.f32 %v2611, 0.0012755102
        %v3219 = vmul.f32 %v2616, 0.0012755102
        %v3220 = vmul.f32 %v2621, 0.0012755102
        %v3221 = vmul.f32 %v2626, 0.0012755102
        %v3222 = vmul.f32 %v2631, 0.0012755102
        %v3223 = vmul.f32 %v2636, 0.0012755102
        %v3224 = vmul.f32 %v2641, 0.0012755102
        %v3225 = vmul.f32 %v2646, 0.0012755102
        %v3226 = vmul.f32 %v2651, 0.0012755102
        %v3227 = vmul.f32 %v2656, 0.0012755102
        %v3228 = vmul.f32 %v2661, 0.0012755102
        %v3229 = vmul.f32 %v2666, 0.0012755102
        %v3230 = vmul.f32 %v2671, 0.0012755102
        %v3231 = vmul.f32 %v2676, 0.0012755102
        %v3232 = vmul.f32 %v2681, 0.0012755102
        %v3233 = vmul.f32 %v2686, 0.0012755102
        %v3234 = vmul.f32 %v2922, 0.0012755102
        %v3235 = vmul.f32 %v2931, 0.0012755102
        %v3236 = vmul.f32 %v2940, 0.0012755102
        %v3237 = vmul.f32 %v2949, 0.0012755102
        %v3238 = vmul.f32 %v2958, 0.0012755102
        %v3239 = vmul.f32 %v2967, 0.0012755102
        %v3240 = vmul.f32 %v2976, 0.0012755102
        %v3241 = vmul.f32 %v2985, 0.0012755102
        %v3242 = vmul.f32 %v2994, 0.0012755102
        %v3243 = vmul.f32 %v3003, 0.0012755102
        %v3244 = vmul.f32 %v3012, 0.0012755102
        %v3245 = vmul.f32 %v3021, 0.0012755102
        %v3246 = vmul.f32 %v3030, 0.0012755102
        %v3247 = vmul.f32 %v3039, 0.0012755102
        %v3248 = vmul.f32 %v3048, 0.0012755102
        %v3249 = vmul.f32 %v3057, 0.0012755102
        %v3250 = vmul.f32 %v3066, 0.0012755102
        %v3251 = vmul.f32 %v3075, 0.0012755102
        %v3252 = vmul.f32 %v3084, 0.0012755102
        %v3253 = vmul.f32 %v3093, 0.0012755102
        %v3254 = vmul.f32 %v3102, 0.0012755102
        %v3255 = vmul.f32 %v3111, 0.0012755102
        %v3256 = vmul.f32 %v3120, 0.0012755102
        %v3257 = vmul.f32 %v3129, 0.0012755102
        %v3258 = vmul.f32 %v3138, 0.0012755102
        %v3259 = vmul.f32 %v3147, 0.0012755102
        %v3260 = vmul.f32 %v3156, 0.0012755102
        %v3261 = vmul.f32 %v3165, 0.0012755102
        %v3262 = vmul.f32 %v3174, 0.0012755102
        %v3263 = vmul.f32 %v3183, 0.0012755102
        %v3264 = vmul.f32 %v3192, 0.0012755102
        %v3265 = vmul.f32 %v3201, 0.0012755102
        %v3266 = vmul.f32 %v3202, %v3202
        %v3267 = vmul.f32 %v3203, %v3203
        %v3268 = vmul.f32 %v3204, %v3204
        %v3269 = vmul.f32 %v3205, %v3205
        %v3270 = vmul.f32 %v3206, %v3206
        %v3271 = vmul.f32 %v3207, %v3207
        %v3272 = vmul.f32 %v3208, %v3208
        %v3273 = vmul.f32 %v3209, %v3209
        %v3274 = vmul.f32 %v3210, %v3210
        %v3275 = vmul.f32 %v3211, %v3211
        %v3276 = vmul.f32 %v3212, %v3212
        %v3277 = vmul.f32 %v3213, %v3213
        %v3278 = vmul.f32 %v3214, %v3214
        %v3279 = vmul.f32 %v3215, %v3215
        %v3280 = vmul.f32 %v3216, %v3216
        %v3281 = vmul.f32 %v3217, %v3217
        %v3282 = vmul.f32 %v3218, %v3218
        %v3283 = vmul.f32 %v3219, %v3219
        %v3284 = vmul.f32 %v3220, %v3220
        %v3285 = vmul.f32 %v3221, %v3221
        %v3286 = vmul.f32 %v3222, %v3222
        %v3287 = vmul.f32 %v3223, %v3223
        %v3288 = vmul.f32 %v3224, %v3224
        %v3289 = vmul.f32 %v3225, %v3225
        %v3290 = vmul.f32 %v3226, %v3226
        %v3291 = vmul.f32 %v3227, %v3227
        %v3292 = vmul.f32 %v3228, %v3228
        %v3293 = vmul.f32 %v3229, %v3229
        %v3294 = vmul.f32 %v3230, %v3230
        %v3295 = vmul.f32 %v3231, %v3231
        %v3296 = vmul.f32 %v3232, %v3232
        %v3297 = vmul.f32 %v3233, %v3233
        %v3298 = vsub.f32 %v3234, %v3266
        %v3299 = vsub.f32 %v3235, %v3267
        %v3300 = vsub.f32 %v3236, %v3268
        %v3301 = vsub.f32 %v3237, %v3269
        %v3302 = vsub.f32 %v3238, %v3270
        %v3303 = vsub.f32 %v3239, %v3271
        %v3304 = vsub.f32 %v3240, %v3272
        %v3305 = vsub.f32 %v3241, %v3273
        %v3306 = vsub.f32 %v3242, %v3274
        %v3307 = vsub.f32 %v3243, %v3275
        %v3308 = vsub.f32 %v3244, %v3276
        %v3309 = vsub.f32 %v3245, %v3277
        %v3310 = vsub.f32 %v3246, %v3278
        %v3311 = vsub.f32 %v3247, %v3279
        %v3312 = vsub.f32 %v3248, %v3280
        %v3313 = vsub.f32 %v3249, %v3281
        %v3314 = vsub.f32 %v3250, %v3282
        %v3315 = vsub.f32 %v3251, %v3283
        %v3316 = vsub.f32 %v3252, %v3284
        %v3317 = vsub.f32 %v3253, %v3285
        %v3318 = vsub.f32 %v3254, %v3286
        %v3319 = vsub.f32 %v3255, %v3287
        %v3320 = vsub.f32 %v3256, %v3288
        %v3321 = vsub.f32 %v3257, %v3289
        %v3322 = vsub.f32 %v3258, %v3290
        %v3323 = vsub.f32 %v3259, %v3291
        %v3324 = vsub.f32 %v3260, %v3292
        %v3325 = vsub.f32 %v3261, %v3293
        %v3326 = vsub.f32 %v3262, %v3294
        %v3327 = vsub.f32 %v3263, %v3295
        %v3328 = vsub.f32 %v3264, %v3296
        %v3329 = vsub.f32 %v3265, %v3297
        %v3330 = vld [vmem:[%s300] sm:$0xff]
        %v3331 = vld [vmem:[%s300 + $0x8] sm:$0xff]
        %v3332 = vld [vmem:[%s300 + $0x10] sm:$0xff]
        %v3333 = vld [vmem:[%s300 + $0x18] sm:$0xff]
        %v3334 = vld [vmem:[%s300 + $0x20] sm:$0xff]
        %v3335 = vld [vmem:[%s300 + $0x28] sm:$0xff]
        %v3336 = vld [vmem:[%s300 + $0x30] sm:$0xff]
        %v3337 = vld [vmem:[%s300 + $0x38] sm:$0xff]
        %v3338 = vld [vmem:[%s300 + $0x40] sm:$0xff]
        %v3339 = vld [vmem:[%s300 + $0x48] sm:$0xff]
        %v3340 = vld [vmem:[%s300 + $0x50] sm:$0xff]
        %v3341 = vld [vmem:[%s300 + $0x58] sm:$0xff]
        %v3342 = vld [vmem:[%s300 + $0x60] sm:$0xff]
        %v3343 = vld [vmem:[%s300 + $0x68] sm:$0xff]
        %v3344 = vld [vmem:[%s300 + $0x70] sm:$0xff]
        %v3345 = vld [vmem:[%s300 + $0x78] sm:$0xff]
        %v3346 = vld [vmem:[%s300 + $0x80] sm:$0xff]
        %v3347 = vld [vmem:[%s300 + $0x88] sm:$0xff]
        %v3348 = vld [vmem:[%s300 + $0x90] sm:$0xff]
        %v3349 = vld [vmem:[%s300 + $0x98] sm:$0xff]
        %v3350 = vld [vmem:[%s300 + $0xa0] sm:$0xff]
        %v3351 = vld [vmem:[%s300 + $0xa8] sm:$0xff]
        %v3352 = vld [vmem:[%s300 + $0xb0] sm:$0xff]
        %v3353 = vld [vmem:[%s300 + $0xb8] sm:$0xff]
        %v3354 = vld [vmem:[%s300 + $0xc0] sm:$0xff]
        %v3355 = vld [vmem:[%s300 + $0xc8] sm:$0xff]
        %v3356 = vld [vmem:[%s300 + $0xd0] sm:$0xff]
        %v3357 = vld [vmem:[%s300 + $0xd8] sm:$0xff]
        %v3358 = vld [vmem:[%s300 + $0xe0] sm:$0xff]
        %v3359 = vld [vmem:[%s300 + $0xe8] sm:$0xff]
        %v3360 = vld [vmem:[%s300 + $0xf0] sm:$0xff]
        %v3361 = vld [vmem:[%s300 + $0xf8] sm:$0xff]
        %v3362 = vadd.f32 %v3298, 1e-05
        %v3363 = vadd.f32 %v3299, 1e-05
        %v3364 = vadd.f32 %v3300, 1e-05
        %v3365 = vadd.f32 %v3301, 1e-05
        %v3366 = vadd.f32 %v3302, 1e-05
        %v3367 = vadd.f32 %v3303, 1e-05
        %v3368 = vadd.f32 %v3304, 1e-05
        %v3369 = vadd.f32 %v3305, 1e-05
        %v3370 = vadd.f32 %v3306, 1e-05
        %v3371 = vadd.f32 %v3307, 1e-05
        %v3372 = vadd.f32 %v3308, 1e-05
        %v3373 = vadd.f32 %v3309, 1e-05
        %v3374 = vadd.f32 %v3310, 1e-05
        %v3375 = vadd.f32 %v3311, 1e-05
        %v3376 = vadd.f32 %v3312, 1e-05
        %v3377 = vadd.f32 %v3313, 1e-05
        %v3378 = vadd.f32 %v3314, 1e-05
        %v3379 = vadd.f32 %v3315, 1e-05
        %v3380 = vadd.f32 %v3316, 1e-05
        %v3381 = vadd.f32 %v3317, 1e-05
        %v3382 = vadd.f32 %v3318, 1e-05
        %v3383 = vadd.f32 %v3319, 1e-05
        %v3384 = vadd.f32 %v3320, 1e-05
        %v3385 = vadd.f32 %v3321, 1e-05
        %v3386 = vadd.f32 %v3322, 1e-05
        %v3387 = vadd.f32 %v3323, 1e-05
        %v3388 = vadd.f32 %v3324, 1e-05
        %v3389 = vadd.f32 %v3325, 1e-05
        %v3390 = vadd.f32 %v3326, 1e-05
        %v3391 = vadd.f32 %v3327, 1e-05
        %v3392 = vadd.f32 %v3328, 1e-05
        %v3393 = vadd.f32 %v3329, 1e-05
        %v3394 = vrsqrt.pop %v3362
        %v3395 = vrsqrt.pop %v3363
        %v3396 = vrsqrt.pop %v3364
        %v3397 = vrsqrt.pop %v3365
        %v3398 = vrsqrt.pop %v3366
        %v3399 = vrsqrt.pop %v3367
        %v3400 = vrsqrt.pop %v3368
        %v3401 = vrsqrt.pop %v3369
        %v3402 = vrsqrt.pop %v3370
        %v3403 = vrsqrt.pop %v3371
        %v3404 = vrsqrt.pop %v3372
        %v3405 = vrsqrt.pop %v3373
        %v3406 = vrsqrt.pop %v3374
        %v3407 = vrsqrt.pop %v3375
        %v3408 = vrsqrt.pop %v3376
        %v3409 = vrsqrt.pop %v3377
        %v3410 = vrsqrt.pop %v3378
        %v3411 = vrsqrt.pop %v3379
        %v3412 = vrsqrt.pop %v3380
        %v3413 = vrsqrt.pop %v3381
        %v3414 = vrsqrt.pop %v3382
        %v3415 = vrsqrt.pop %v3383
        %v3416 = vrsqrt.pop %v3384
        %v3417 = vrsqrt.pop %v3385
        %v3418 = vrsqrt.pop %v3386
        %v3419 = vrsqrt.pop %v3387
        %v3420 = vrsqrt.pop %v3388
        %v3421 = vrsqrt.pop %v3389
        %v3422 = vrsqrt.pop %v3390
        %v3423 = vrsqrt.pop %v3391
        %v3424 = vrsqrt.pop %v3392
        %v3425 = vrsqrt.pop %v3393
        %v3426 = vmul.f32 %v3330, %v3394
        %v3427 = vmul.f32 %v3331, %v3395
        %v3428 = vmul.f32 %v3332, %v3396
        %v3429 = vmul.f32 %v3333, %v3397
        %v3430 = vmul.f32 %v3334, %v3398
        %v3431 = vmul.f32 %v3335, %v3399
        %v3432 = vmul.f32 %v3336, %v3400
        %v3433 = vmul.f32 %v3337, %v3401
        %v3434 = vmul.f32 %v3338, %v3402
        %v3435 = vmul.f32 %v3339, %v3403
        %v3436 = vmul.f32 %v3340, %v3404
        %v3437 = vmul.f32 %v3341, %v3405
        %v3438 = vmul.f32 %v3342, %v3406
        %v3439 = vmul.f32 %v3343, %v3407
        %v3440 = vmul.f32 %v3344, %v3408
        %v3441 = vmul.f32 %v3345, %v3409
        %v3442 = vmul.f32 %v3346, %v3410
        %v3443 = vmul.f32 %v3347, %v3411
        %v3444 = vmul.f32 %v3348, %v3412
        %v3445 = vmul.f32 %v3349, %v3413
        %v3446 = vmul.f32 %v3350, %v3414
        %v3447 = vmul.f32 %v3351, %v3415
        %v3448 = vmul.f32 %v3352, %v3416
        %v3449 = vmul.f32 %v3353, %v3417
        %v3450 = vmul.f32 %v3354, %v3418
        %v3451 = vmul.f32 %v3355, %v3419
        %v3452 = vmul.f32 %v3356, %v3420
        %v3453 = vmul.f32 %v3357, %v3421
        %v3454 = vmul.f32 %v3358, %v3422
        %v3455 = vmul.f32 %v3359, %v3423
        %v3456 = vmul.f32 %v3360, %v3424
        %v3457 = vmul.f32 %v3361, %v3425
        %v3458 = vld [vmem:[%s310] sm:$0xff]
        %v3459 = vld [vmem:[%s310 + $0x8] sm:$0xff]
        %v3460 = vld [vmem:[%s310 + $0x10] sm:$0xff]
        %v3461 = vld [vmem:[%s310 + $0x18] sm:$0xff]
        %v3462 = vld [vmem:[%s310 + $0x20] sm:$0xff]
        %v3463 = vld [vmem:[%s310 + $0x28] sm:$0xff]
        %v3464 = vld [vmem:[%s310 + $0x30] sm:$0xff]
        %v3465 = vld [vmem:[%s310 + $0x38] sm:$0xff]
        %v3466 = vld [vmem:[%s310 + $0x40] sm:$0xff]
        %v3467 = vld [vmem:[%s310 + $0x48] sm:$0xff]
        %v3468 = vld [vmem:[%s310 + $0x50] sm:$0xff]
        %v3469 = vld [vmem:[%s310 + $0x58] sm:$0xff]
        %v3470 = vld [vmem:[%s310 + $0x60] sm:$0xff]
        %v3471 = vld [vmem:[%s310 + $0x68] sm:$0xff]
        %v3472 = vld [vmem:[%s310 + $0x70] sm:$0xff]
        %v3473 = vld [vmem:[%s310 + $0x78] sm:$0xff]
        %v3474 = vld [vmem:[%s310 + $0x80] sm:$0xff]
        %v3475 = vld [vmem:[%s310 + $0x88] sm:$0xff]
        %v3476 = vld [vmem:[%s310 + $0x90] sm:$0xff]
        %v3477 = vld [vmem:[%s310 + $0x98] sm:$0xff]
        %v3478 = vld [vmem:[%s310 + $0xa0] sm:$0xff]
        %v3479 = vld [vmem:[%s310 + $0xa8] sm:$0xff]
        %v3480 = vld [vmem:[%s310 + $0xb0] sm:$0xff]
        %v3481 = vld [vmem:[%s310 + $0xb8] sm:$0xff]
        %v3482 = vld [vmem:[%s310 + $0xc0] sm:$0xff]
        %v3483 = vld [vmem:[%s310 + $0xc8] sm:$0xff]
        %v3484 = vld [vmem:[%s310 + $0xd0] sm:$0xff]
        %v3485 = vld [vmem:[%s310 + $0xd8] sm:$0xff]
        %v3486 = vld [vmem:[%s310 + $0xe0] sm:$0xff]
        %v3487 = vld [vmem:[%s310 + $0xe8] sm:$0xff]
        %v3488 = vld [vmem:[%s310 + $0xf0] sm:$0xff]
        %v3489 = vld [vmem:[%s310 + $0xf8] sm:$0xff]
        %v3490 = vmul.f32 %v3202, %v3426
        %v3491 = vmul.f32 %v3203, %v3427
        %v3492 = vmul.f32 %v3204, %v3428
        %v3493 = vmul.f32 %v3205, %v3429
        %v3494 = vmul.f32 %v3206, %v3430
        %v3495 = vmul.f32 %v3207, %v3431
        %v3496 = vmul.f32 %v3208, %v3432
        %v3497 = vmul.f32 %v3209, %v3433
        %v3498 = vmul.f32 %v3210, %v3434
        %v3499 = vmul.f32 %v3211, %v3435
        %v3500 = vmul.f32 %v3212, %v3436
        %v3501 = vmul.f32 %v3213, %v3437
        %v3502 = vmul.f32 %v3214, %v3438
        %v3503 = vmul.f32 %v3215, %v3439
        %v3504 = vmul.f32 %v3216, %v3440
        %v3505 = vmul.f32 %v3217, %v3441
        %v3506 = vmul.f32 %v3218, %v3442
        %v3507 = vmul.f32 %v3219, %v3443
        %v3508 = vmul.f32 %v3220, %v3444
        %v3509 = vmul.f32 %v3221, %v3445
        %v3510 = vmul.f32 %v3222, %v3446
        %v3511 = vmul.f32 %v3223, %v3447
        %v3512 = vmul.f32 %v3224, %v3448
        %v3513 = vmul.f32 %v3225, %v3449
        %v3514 = vmul.f32 %v3226, %v3450
        %v3515 = vmul.f32 %v3227, %v3451
        %v3516 = vmul.f32 %v3228, %v3452
        %v3517 = vmul.f32 %v3229, %v3453
        %v3518 = vmul.f32 %v3230, %v3454
        %v3519 = vmul.f32 %v3231, %v3455
        %v3520 = vmul.f32 %v3232, %v3456
        %v3521 = vmul.f32 %v3233, %v3457
        %v3522 = vsub.f32 %v3458, %v3490
        %v3523 = vsub.f32 %v3459, %v3491
        %v3524 = vsub.f32 %v3460, %v3492
        %v3525 = vsub.f32 %v3461, %v3493
        %v3526 = vsub.f32 %v3462, %v3494
        %v3527 = vsub.f32 %v3463, %v3495
        %v3528 = vsub.f32 %v3464, %v3496
        %v3529 = vsub.f32 %v3465, %v3497
        %v3530 = vsub.f32 %v3466, %v3498
        %v3531 = vsub.f32 %v3467, %v3499
        %v3532 = vsub.f32 %v3468, %v3500
        %v3533 = vsub.f32 %v3469, %v3501
        %v3534 = vsub.f32 %v3470, %v3502
        %v3535 = vsub.f32 %v3471, %v3503
        %v3536 = vsub.f32 %v3472, %v3504
        %v3537 = vsub.f32 %v3473, %v3505
        %v3538 = vsub.f32 %v3474, %v3506
        %v3539 = vsub.f32 %v3475, %v3507
        %v3540 = vsub.f32 %v3476, %v3508
        %v3541 = vsub.f32 %v3477, %v3509
        %v3542 = vsub.f32 %v3478, %v3510
        %v3543 = vsub.f32 %v3479, %v3511
        %v3544 = vsub.f32 %v3480, %v3512
        %v3545 = vsub.f32 %v3481, %v3513
        %v3546 = vsub.f32 %v3482, %v3514
        %v3547 = vsub.f32 %v3483, %v3515
        %v3548 = vsub.f32 %v3484, %v3516
        %v3549 = vsub.f32 %v3485, %v3517
        %v3550 = vsub.f32 %v3486, %v3518
        %v3551 = vsub.f32 %v3487, %v3519
        %v3552 = vsub.f32 %v3488, %v3520
        %v3553 = vsub.f32 %v3489, %v3521
        %3555 = vset.pattern.permute.xlu0 0
        %3556 = vperm.xlu0 %3555, %v3426
        %v3557 = vpop.permute.xlu0 %3556
        %3560 = vset.pattern.permute.xlu0 0
        %3561 = vperm.xlu0 %3560, %v3427
        %v3562 = vpop.permute.xlu0 %3561
        %3565 = vset.pattern.permute.xlu0 0
        %3566 = vperm.xlu0 %3565, %v3428
        %v3567 = vpop.permute.xlu0 %3566
        %3570 = vset.pattern.permute.xlu0 0
        %3571 = vperm.xlu0 %3570, %v3429
        %v3572 = vpop.permute.xlu0 %3571
        %3575 = vset.pattern.permute.xlu0 0
        %3576 = vperm.xlu0 %3575, %v3430
        %v3577 = vpop.permute.xlu0 %3576
        %3580 = vset.pattern.permute.xlu0 0
        %3581 = vperm.xlu0 %3580, %v3431
        %v3582 = vpop.permute.xlu0 %3581
        %3585 = vset.pattern.permute.xlu0 0
        %3586 = vperm.xlu0 %3585, %v3432
        %v3587 = vpop.permute.xlu0 %3586
        %3590 = vset.pattern.permute.xlu0 0
        %3591 = vperm.xlu0 %3590, %v3433
        %v3592 = vpop.permute.xlu0 %3591
        %3595 = vset.pattern.permute.xlu0 0
        %3596 = vperm.xlu0 %3595, %v3434
        %v3597 = vpop.permute.xlu0 %3596
        %3600 = vset.pattern.permute.xlu0 0
        %3601 = vperm.xlu0 %3600, %v3435
        %v3602 = vpop.permute.xlu0 %3601
        %3605 = vset.pattern.permute.xlu0 0
        %3606 = vperm.xlu0 %3605, %v3436
        %v3607 = vpop.permute.xlu0 %3606
        %3610 = vset.pattern.permute.xlu0 0
        %3611 = vperm.xlu0 %3610, %v3437
        %v3612 = vpop.permute.xlu0 %3611
        %3615 = vset.pattern.permute.xlu0 0
        %3616 = vperm.xlu0 %3615, %v3438
        %v3617 = vpop.permute.xlu0 %3616
        %3620 = vset.pattern.permute.xlu0 0
        %3621 = vperm.xlu0 %3620, %v3439
        %v3622 = vpop.permute.xlu0 %3621
        %3625 = vset.pattern.permute.xlu0 0
        %3626 = vperm.xlu0 %3625, %v3440
        %v3627 = vpop.permute.xlu0 %3626
        %3630 = vset.pattern.permute.xlu0 0
        %3631 = vperm.xlu0 %3630, %v3441
        %v3632 = vpop.permute.xlu0 %3631
        %3635 = vset.pattern.permute.xlu0 0
        %3636 = vperm.xlu0 %3635, %v3442
        %v3637 = vpop.permute.xlu0 %3636
        %3640 = vset.pattern.permute.xlu0 0
        %3641 = vperm.xlu0 %3640, %v3443
        %v3642 = vpop.permute.xlu0 %3641
        %3645 = vset.pattern.permute.xlu0 0
        %3646 = vperm.xlu0 %3645, %v3444
        %v3647 = vpop.permute.xlu0 %3646
        %3650 = vset.pattern.permute.xlu0 0
        %3651 = vperm.xlu0 %3650, %v3445
        %v3652 = vpop.permute.xlu0 %3651
        %3655 = vset.pattern.permute.xlu0 0
        %3656 = vperm.xlu0 %3655, %v3446
        %v3657 = vpop.permute.xlu0 %3656
        %3660 = vset.pattern.permute.xlu0 0
        %3661 = vperm.xlu0 %3660, %v3447
        %v3662 = vpop.permute.xlu0 %3661
        %3665 = vset.pattern.permute.xlu0 0
        %3666 = vperm.xlu0 %3665, %v3448
        %v3667 = vpop.permute.xlu0 %3666
        %3670 = vset.pattern.permute.xlu0 0
        %3671 = vperm.xlu0 %3670, %v3449
        %v3672 = vpop.permute.xlu0 %3671
        %3675 = vset.pattern.permute.xlu0 0
        %3676 = vperm.xlu0 %3675, %v3450
        %v3677 = vpop.permute.xlu0 %3676
        %3680 = vset.pattern.permute.xlu0 0
        %3681 = vperm.xlu0 %3680, %v3451
        %v3682 = vpop.permute.xlu0 %3681
        %3685 = vset.pattern.permute.xlu0 0
        %3686 = vperm.xlu0 %3685, %v3452
        %v3687 = vpop.permute.xlu0 %3686
        %3690 = vset.pattern.permute.xlu0 0
        %3691 = vperm.xlu0 %3690, %v3453
        %v3692 = vpop.permute.xlu0 %3691
        %3695 = vset.pattern.permute.xlu0 0
        %3696 = vperm.xlu0 %3695, %v3454
        %v3697 = vpop.permute.xlu0 %3696
        %3700 = vset.pattern.permute.xlu0 0
        %3701 = vperm.xlu0 %3700, %v3455
        %v3702 = vpop.permute.xlu0 %3701
        %3705 = vset.pattern.permute.xlu0 0
        %3706 = vperm.xlu0 %3705, %v3456
        %v3707 = vpop.permute.xlu0 %3706
        %3710 = vset.pattern.permute.xlu0 0
        %3711 = vperm.xlu0 %3710, %v3457
        %v3712 = vpop.permute.xlu0 %3711
        %v3714 = vmul.f32 %v1663, %v3557
        %v3715 = vmul.f32 %v1665, %v3557
        %v3716 = vmul.f32 %v1856, %v3557
        %v3717 = vmul.f32 %v1858, %v3557
        %v3718 = vmul.f32 %v2049, %v3557
        %v3719 = vmul.f32 %v2051, %v3557
        %v3720 = vmul.f32 %v2242, %v3557
        %v3721 = vmul.f32 %v1667, %v3562
        %v3722 = vmul.f32 %v1669, %v3562
        %v3723 = vmul.f32 %v1860, %v3562
        %v3724 = vmul.f32 %v1862, %v3562
        %v3725 = vmul.f32 %v2053, %v3562
        %v3726 = vmul.f32 %v2055, %v3562
        %v3727 = vmul.f32 %v2245, %v3562
        %v3728 = vmul.f32 %v1673, %v3567
        %v3729 = vmul.f32 %v1675, %v3567
        %v3730 = vmul.f32 %v1866, %v3567
        %v3731 = vmul.f32 %v1868, %v3567
        %v3732 = vmul.f32 %v2059, %v3567
        %v3733 = vmul.f32 %v2061, %v3567
        %v3734 = vmul.f32 %v2250, %v3567
        %v3735 = vmul.f32 %v1677, %v3572
        %v3736 = vmul.f32 %v1679, %v3572
        %v3737 = vmul.f32 %v1870, %v3572
        %v3738 = vmul.f32 %v1872, %v3572
        %v3739 = vmul.f32 %v2063, %v3572
        %v3740 = vmul.f32 %v2065, %v3572
        %v3741 = vmul.f32 %v2253, %v3572
        %v3742 = vmul.f32 %v1683, %v3577
        %v3743 = vmul.f32 %v1685, %v3577
        %v3744 = vmul.f32 %v1876, %v3577
        %v3745 = vmul.f32 %v1878, %v3577
        %v3746 = vmul.f32 %v2069, %v3577
        %v3747 = vmul.f32 %v2071, %v3577
        %v3748 = vmul.f32 %v2258, %v3577
        %v3749 = vmul.f32 %v1687, %v3582
        %v3750 = vmul.f32 %v1689, %v3582
        %v3751 = vmul.f32 %v1880, %v3582
        %v3752 = vmul.f32 %v1882, %v3582
        %v3753 = vmul.f32 %v2073, %v3582
        %v3754 = vmul.f32 %v2075, %v3582
        %v3755 = vmul.f32 %v2261, %v3582
        %v3756 = vmul.f32 %v1693, %v3587
        %v3757 = vmul.f32 %v1695, %v3587
        %v3758 = vmul.f32 %v1886, %v3587
        %v3759 = vmul.f32 %v1888, %v3587
        %v3760 = vmul.f32 %v2079, %v3587
        %v3761 = vmul.f32 %v2081, %v3587
        %v3762 = vmul.f32 %v2266, %v3587
        %v3763 = vmul.f32 %v1697, %v3592
        %v3764 = vmul.f32 %v1699, %v3592
        %v3765 = vmul.f32 %v1890, %v3592
        %v3766 = vmul.f32 %v1892, %v3592
        %v3767 = vmul.f32 %v2083, %v3592
        %v3768 = vmul.f32 %v2085, %v3592
        %v3769 = vmul.f32 %v2269, %v3592
        %v3770 = vmul.f32 %v1703, %v3597
        %v3771 = vmul.f32 %v1705, %v3597
        %v3772 = vmul.f32 %v1896, %v3597
        %v3773 = vmul.f32 %v1898, %v3597
        %v3774 = vmul.f32 %v2089, %v3597
        %v3775 = vmul.f32 %v2091, %v3597
        %v3776 = vmul.f32 %v2274, %v3597
        %v3777 = vmul.f32 %v1707, %v3602
        %v3778 = vmul.f32 %v1709, %v3602
        %v3779 = vmul.f32 %v1900, %v3602
        %v3780 = vmul.f32 %v1902, %v3602
        %v3781 = vmul.f32 %v2093, %v3602
        %v3782 = vmul.f32 %v2095, %v3602
        %v3783 = vmul.f32 %v2277, %v3602
        %v3784 = vmul.f32 %v1713, %v3607
        %v3785 = vmul.f32 %v1715, %v3607
        %v3786 = vmul.f32 %v1906, %v3607
        %v3787 = vmul.f32 %v1908, %v3607
        %v3788 = vmul.f32 %v2099, %v3607
        %v3789 = vmul.f32 %v2101, %v3607
        %v3790 = vmul.f32 %v2282, %v3607
        %v3791 = vmul.f32 %v1717, %v3612
        %v3792 = vmul.f32 %v1719, %v3612
        %v3793 = vmul.f32 %v1910, %v3612
        %v3794 = vmul.f32 %v1912, %v3612
        %v3795 = vmul.f32 %v2103, %v3612
        %v3796 = vmul.f32 %v2105, %v3612
        %v3797 = vmul.f32 %v2285, %v3612
        %v3798 = vmul.f32 %v1723, %v3617
        %v3799 = vmul.f32 %v1725, %v3617
        %v3800 = vmul.f32 %v1916, %v3617
        %v3801 = vmul.f32 %v1918, %v3617
        %v3802 = vmul.f32 %v2109, %v3617
        %v3803 = vmul.f32 %v2111, %v3617
        %v3804 = vmul.f32 %v2290, %v3617
        %v3805 = vmul.f32 %v1727, %v3622
        %v3806 = vmul.f32 %v1729, %v3622
        %v3807 = vmul.f32 %v1920, %v3622
        %v3808 = vmul.f32 %v1922, %v3622
        %v3809 = vmul.f32 %v2113, %v3622
        %v3810 = vmul.f32 %v2115, %v3622
        %v3811 = vmul.f32 %v2293, %v3622
        %v3812 = vmul.f32 %v1733, %v3627
        %v3813 = vmul.f32 %v1735, %v3627
        %v3814 = vmul.f32 %v1926, %v3627
        %v3815 = vmul.f32 %v1928, %v3627
        %v3816 = vmul.f32 %v2119, %v3627
        %v3817 = vmul.f32 %v2121, %v3627
        %v3818 = vmul.f32 %v2298, %v3627
        %v3819 = vmul.f32 %v1737, %v3632
        %v3820 = vmul.f32 %v1739, %v3632
        %v3821 = vmul.f32 %v1930, %v3632
        %v3822 = vmul.f32 %v1932, %v3632
        %v3823 = vmul.f32 %v2123, %v3632
        %v3824 = vmul.f32 %v2125, %v3632
        %v3825 = vmul.f32 %v2301, %v3632
        %v3826 = vmul.f32 %v1743, %v3637
        %v3827 = vmul.f32 %v1745, %v3637
        %v3828 = vmul.f32 %v1936, %v3637
        %v3829 = vmul.f32 %v1938, %v3637
        %v3830 = vmul.f32 %v2129, %v3637
        %v3831 = vmul.f32 %v2131, %v3637
        %v3832 = vmul.f32 %v2306, %v3637
        %v3833 = vmul.f32 %v1747, %v3642
        %v3834 = vmul.f32 %v1749, %v3642
        %v3835 = vmul.f32 %v1940, %v3642
        %v3836 = vmul.f32 %v1942, %v3642
        %v3837 = vmul.f32 %v2133, %v3642
        %v3838 = vmul.f32 %v2135, %v3642
        %v3839 = vmul.f32 %v2309, %v3642
        %v3840 = vmul.f32 %v1753, %v3647
        %v3841 = vmul.f32 %v1755, %v3647
        %v3842 = vmul.f32 %v1946, %v3647
        %v3843 = vmul.f32 %v1948, %v3647
        %v3844 = vmul.f32 %v2139, %v3647
        %v3845 = vmul.f32 %v2141, %v3647
        %v3846 = vmul.f32 %v2314, %v3647
        %v3847 = vmul.f32 %v1757, %v3652
        %v3848 = vmul.f32 %v1759, %v3652
        %v3849 = vmul.f32 %v1950, %v3652
        %v3850 = vmul.f32 %v1952, %v3652
        %v3851 = vmul.f32 %v2143, %v3652
        %v3852 = vmul.f32 %v2145, %v3652
        %v3853 = vmul.f32 %v2317, %v3652
        %v3854 = vmul.f32 %v1763, %v3657
        %v3855 = vmul.f32 %v1765, %v3657
        %v3856 = vmul.f32 %v1956, %v3657
        %v3857 = vmul.f32 %v1958, %v3657
        %v3858 = vmul.f32 %v2149, %v3657
        %v3859 = vmul.f32 %v2151, %v3657
        %v3860 = vmul.f32 %v2322, %v3657
        %v3861 = vmul.f32 %v1767, %v3662
        %v3862 = vmul.f32 %v1769, %v3662
        %v3863 = vmul.f32 %v1960, %v3662
        %v3864 = vmul.f32 %v1962, %v3662
        %v3865 = vmul.f32 %v2153, %v3662
        %v3866 = vmul.f32 %v2155, %v3662
        %v3867 = vmul.f32 %v2325, %v3662
        %v3868 = vmul.f32 %v1773, %v3667
        %v3869 = vmul.f32 %v1775, %v3667
        %v3870 = vmul.f32 %v1966, %v3667
        %v3871 = vmul.f32 %v1968, %v3667
        %v3872 = vmul.f32 %v2159, %v3667
        %v3873 = vmul.f32 %v2161, %v3667
        %v3874 = vmul.f32 %v2330, %v3667
        %v3875 = vmul.f32 %v1777, %v3672
        %v3876 = vmul.f32 %v1779, %v3672
        %v3877 = vmul.f32 %v1970, %v3672
        %v3878 = vmul.f32 %v1972, %v3672
        %v3879 = vmul.f32 %v2163, %v3672
        %v3880 = vmul.f32 %v2165, %v3672
        %v3881 = vmul.f32 %v2333, %v3672
        %v3882 = vmul.f32 %v1783, %v3677
        %v3883 = vmul.f32 %v1785, %v3677
        %v3884 = vmul.f32 %v1976, %v3677
        %v3885 = vmul.f32 %v1978, %v3677
        %v3886 = vmul.f32 %v2169, %v3677
        %v3887 = vmul.f32 %v2171, %v3677
        %v3888 = vmul.f32 %v2338, %v3677
        %v3889 = vmul.f32 %v1787, %v3682
        %v3890 = vmul.f32 %v1789, %v3682
        %v3891 = vmul.f32 %v1980, %v3682
        %v3892 = vmul.f32 %v1982, %v3682
        %v3893 = vmul.f32 %v2173, %v3682
        %v3894 = vmul.f32 %v2175, %v3682
        %v3895 = vmul.f32 %v2341, %v3682
        %v3896 = vmul.f32 %v1793, %v3687
        %v3897 = vmul.f32 %v1795, %v3687
        %v3898 = vmul.f32 %v1986, %v3687
        %v3899 = vmul.f32 %v1988, %v3687
        %v3900 = vmul.f32 %v2179, %v3687
        %v3901 = vmul.f32 %v2181, %v3687
        %v3902 = vmul.f32 %v2346, %v3687
        %v3903 = vmul.f32 %v1797, %v3692
        %v3904 = vmul.f32 %v1799, %v3692
        %v3905 = vmul.f32 %v1990, %v3692
        %v3906 = vmul.f32 %v1992, %v3692
        %v3907 = vmul.f32 %v2183, %v3692
        %v3908 = vmul.f32 %v2185, %v3692
        %v3909 = vmul.f32 %v2349, %v3692
        %v3910 = vmul.f32 %v1803, %v3697
        %v3911 = vmul.f32 %v1805, %v3697
        %v3912 = vmul.f32 %v1996, %v3697
        %v3913 = vmul.f32 %v1998, %v3697
        %v3914 = vmul.f32 %v2189, %v3697
        %v3915 = vmul.f32 %v2191, %v3697
        %v3916 = vmul.f32 %v2354, %v3697
        %v3917 = vmul.f32 %v1807, %v3702
        %v3918 = vmul.f32 %v1809, %v3702
        %v3919 = vmul.f32 %v2000, %v3702
        %v3920 = vmul.f32 %v2002, %v3702
        %v3921 = vmul.f32 %v2193, %v3702
        %v3922 = vmul.f32 %v2195, %v3702
        %v3923 = vmul.f32 %v2357, %v3702
        %v3924 = vmul.f32 %v1813, %v3707
        %v3925 = vmul.f32 %v1815, %v3707
        %v3926 = vmul.f32 %v2006, %v3707
        %v3927 = vmul.f32 %v2008, %v3707
        %v3928 = vmul.f32 %v2199, %v3707
        %v3929 = vmul.f32 %v2201, %v3707
        %v3930 = vmul.f32 %v2362, %v3707
        %v3931 = vmul.f32 %v1817, %v3712
        %v3932 = vmul.f32 %v1819, %v3712
        %v3933 = vmul.f32 %v2010, %v3712
        %v3934 = vmul.f32 %v2012, %v3712
        %v3935 = vmul.f32 %v2203, %v3712
        %v3936 = vmul.f32 %v2205, %v3712
        %v3937 = vmul.f32 %v2365, %v3712
        %3939 = vset.pattern.permute.xlu0 0
        %3940 = vperm.xlu0 %3939, %v3522
        %v3941 = vpop.permute.xlu0 %3940
        %3944 = vset.pattern.permute.xlu0 0
        %3945 = vperm.xlu0 %3944, %v3523
        %v3946 = vpop.permute.xlu0 %3945
        %3949 = vset.pattern.permute.xlu0 0
        %3950 = vperm.xlu0 %3949, %v3524
        %v3951 = vpop.permute.xlu0 %3950
        %3954 = vset.pattern.permute.xlu0 0
        %3955 = vperm.xlu0 %3954, %v3525
        %v3956 = vpop.permute.xlu0 %3955
        %3959 = vset.pattern.permute.xlu0 0
        %3960 = vperm.xlu0 %3959, %v3526
        %v3961 = vpop.permute.xlu0 %3960
        %3964 = vset.pattern.permute.xlu0 0
        %3965 = vperm.xlu0 %3964, %v3527
        %v3966 = vpop.permute.xlu0 %3965
        %3969 = vset.pattern.permute.xlu0 0
        %3970 = vperm.xlu0 %3969, %v3528
        %v3971 = vpop.permute.xlu0 %3970
        %3974 = vset.pattern.permute.xlu0 0
        %3975 = vperm.xlu0 %3974, %v3529
        %v3976 = vpop.permute.xlu0 %3975
        %3979 = vset.pattern.permute.xlu0 0
        %3980 = vperm.xlu0 %3979, %v3530
        %v3981 = vpop.permute.xlu0 %3980
        %3984 = vset.pattern.permute.xlu0 0
        %3985 = vperm.xlu0 %3984, %v3531
        %v3986 = vpop.permute.xlu0 %3985
        %3989 = vset.pattern.permute.xlu0 0
        %3990 = vperm.xlu0 %3989, %v3532
        %v3991 = vpop.permute.xlu0 %3990
        %3994 = vset.pattern.permute.xlu0 0
        %3995 = vperm.xlu0 %3994, %v3533
        %v3996 = vpop.permute.xlu0 %3995
        %3999 = vset.pattern.permute.xlu0 0
        %4000 = vperm.xlu0 %3999, %v3534
        %v4001 = vpop.permute.xlu0 %4000
        %4004 = vset.pattern.permute.xlu0 0
        %4005 = vperm.xlu0 %4004, %v3535
        %v4006 = vpop.permute.xlu0 %4005
        %4009 = vset.pattern.permute.xlu0 0
        %4010 = vperm.xlu0 %4009, %v3536
        %v4011 = vpop.permute.xlu0 %4010
        %4014 = vset.pattern.permute.xlu0 0
        %4015 = vperm.xlu0 %4014, %v3537
        %v4016 = vpop.permute.xlu0 %4015
        %4019 = vset.pattern.permute.xlu0 0
        %4020 = vperm.xlu0 %4019, %v3538
        %v4021 = vpop.permute.xlu0 %4020
        %4024 = vset.pattern.permute.xlu0 0
        %4025 = vperm.xlu0 %4024, %v3539
        %v4026 = vpop.permute.xlu0 %4025
        %4029 = vset.pattern.permute.xlu0 0
        %4030 = vperm.xlu0 %4029, %v3540
        %v4031 = vpop.permute.xlu0 %4030
        %4034 = vset.pattern.permute.xlu0 0
        %4035 = vperm.xlu0 %4034, %v3541
        %v4036 = vpop.permute.xlu0 %4035
        %4039 = vset.pattern.permute.xlu0 0
        %4040 = vperm.xlu0 %4039, %v3542
        %v4041 = vpop.permute.xlu0 %4040
        %4044 = vset.pattern.permute.xlu0 0
        %4045 = vperm.xlu0 %4044, %v3543
        %v4046 = vpop.permute.xlu0 %4045
        %4049 = vset.pattern.permute.xlu0 0
        %4050 = vperm.xlu0 %4049, %v3544
        %v4051 = vpop.permute.xlu0 %4050
        %4054 = vset.pattern.permute.xlu0 0
        %4055 = vperm.xlu0 %4054, %v3545
        %v4056 = vpop.permute.xlu0 %4055
        %4059 = vset.pattern.permute.xlu0 0
        %4060 = vperm.xlu0 %4059, %v3546
        %v4061 = vpop.permute.xlu0 %4060
        %4064 = vset.pattern.permute.xlu0 0
        %4065 = vperm.xlu0 %4064, %v3547
        %v4066 = vpop.permute.xlu0 %4065
        %4069 = vset.pattern.permute.xlu0 0
        %4070 = vperm.xlu0 %4069, %v3548
        %v4071 = vpop.permute.xlu0 %4070
        %4074 = vset.pattern.permute.xlu0 0
        %4075 = vperm.xlu0 %4074, %v3549
        %v4076 = vpop.permute.xlu0 %4075
        %4079 = vset.pattern.permute.xlu0 0
        %4080 = vperm.xlu0 %4079, %v3550
        %v4081 = vpop.permute.xlu0 %4080
        %4084 = vset.pattern.permute.xlu0 0
        %4085 = vperm.xlu0 %4084, %v3551
        %v4086 = vpop.permute.xlu0 %4085
        %4089 = vset.pattern.permute.xlu0 0
        %4090 = vperm.xlu0 %4089, %v3552
        %v4091 = vpop.permute.xlu0 %4090
        %4094 = vset.pattern.permute.xlu0 0
        %4095 = vperm.xlu0 %4094, %v3553
        %v4096 = vpop.permute.xlu0 %4095
        %v4098 = vadd.f32 %v3714, %v3941
        %v4099 = vadd.f32 %v3715, %v3941
        %v4100 = vadd.f32 %v3716, %v3941
        %v4101 = vadd.f32 %v3717, %v3941
        %v4102 = vadd.f32 %v3718, %v3941
        %v4103 = vadd.f32 %v3719, %v3941
        %v4104 = vadd.f32 %v3720, %v3941
        %v4105 = vadd.f32 %v3721, %v3946
        %v4106 = vadd.f32 %v3722, %v3946
        %v4107 = vadd.f32 %v3723, %v3946
        %v4108 = vadd.f32 %v3724, %v3946
        %v4109 = vadd.f32 %v3725, %v3946
        %v4110 = vadd.f32 %v3726, %v3946
        %v4111 = vadd.f32 %v3727, %v3946
        %v4112 = vadd.f32 %v3728, %v3951
        %v4113 = vadd.f32 %v3729, %v3951
        %v4114 = vadd.f32 %v3730, %v3951
        %v4115 = vadd.f32 %v3731, %v3951
        %v4116 = vadd.f32 %v3732, %v3951
        %v4117 = vadd.f32 %v3733, %v3951
        %v4118 = vadd.f32 %v3734, %v3951
        %v4119 = vadd.f32 %v3735, %v3956
        %v4120 = vadd.f32 %v3736, %v3956
        %v4121 = vadd.f32 %v3737, %v3956
        %v4122 = vadd.f32 %v3738, %v3956
        %v4123 = vadd.f32 %v3739, %v3956
        %v4124 = vadd.f32 %v3740, %v3956
        %v4125 = vadd.f32 %v3741, %v3956
        %v4126 = vadd.f32 %v3742, %v3961
        %v4127 = vadd.f32 %v3743, %v3961
        %v4128 = vadd.f32 %v3744, %v3961
        %v4129 = vadd.f32 %v3745, %v3961
        %v4130 = vadd.f32 %v3746, %v3961
        %v4131 = vadd.f32 %v3747, %v3961
        %v4132 = vadd.f32 %v3748, %v3961
        %v4133 = vadd.f32 %v3749, %v3966
        %v4134 = vadd.f32 %v3750, %v3966
        %v4135 = vadd.f32 %v3751, %v3966
        %v4136 = vadd.f32 %v3752, %v3966
        %v4137 = vadd.f32 %v3753, %v3966
        %v4138 = vadd.f32 %v3754, %v3966
        %v4139 = vadd.f32 %v3755, %v3966
        %v4140 = vadd.f32 %v3756, %v3971
        %v4141 = vadd.f32 %v3757, %v3971
        %v4142 = vadd.f32 %v3758, %v3971
        %v4143 = vadd.f32 %v3759, %v3971
        %v4144 = vadd.f32 %v3760, %v3971
        %v4145 = vadd.f32 %v3761, %v3971
        %v4146 = vadd.f32 %v3762, %v3971
        %v4147 = vadd.f32 %v3763, %v3976
        %v4148 = vadd.f32 %v3764, %v3976
        %v4149 = vadd.f32 %v3765, %v3976
        %v4150 = vadd.f32 %v3766, %v3976
        %v4151 = vadd.f32 %v3767, %v3976
        %v4152 = vadd.f32 %v3768, %v3976
        %v4153 = vadd.f32 %v3769, %v3976
        %v4154 = vadd.f32 %v3770, %v3981
        %v4155 = vadd.f32 %v3771, %v3981
        %v4156 = vadd.f32 %v3772, %v3981
        %v4157 = vadd.f32 %v3773, %v3981
        %v4158 = vadd.f32 %v3774, %v3981
        %v4159 = vadd.f32 %v3775, %v3981
        %v4160 = vadd.f32 %v3776, %v3981
        %v4161 = vadd.f32 %v3777, %v3986
        %v4162 = vadd.f32 %v3778, %v3986
        %v4163 = vadd.f32 %v3779, %v3986
        %v4164 = vadd.f32 %v3780, %v3986
        %v4165 = vadd.f32 %v3781, %v3986
        %v4166 = vadd.f32 %v3782, %v3986
        %v4167 = vadd.f32 %v3783, %v3986
        %v4168 = vadd.f32 %v3784, %v3991
        %v4169 = vadd.f32 %v3785, %v3991
        %v4170 = vadd.f32 %v3786, %v3991
        %v4171 = vadd.f32 %v3787, %v3991
        %v4172 = vadd.f32 %v3788, %v3991
        %v4173 = vadd.f32 %v3789, %v3991
        %v4174 = vadd.f32 %v3790, %v3991
        %v4175 = vadd.f32 %v3791, %v3996
        %v4176 = vadd.f32 %v3792, %v3996
        %v4177 = vadd.f32 %v3793, %v3996
        %v4178 = vadd.f32 %v3794, %v3996
        %v4179 = vadd.f32 %v3795, %v3996
        %v4180 = vadd.f32 %v3796, %v3996
        %v4181 = vadd.f32 %v3797, %v3996
        %v4182 = vadd.f32 %v3798, %v4001
        %v4183 = vadd.f32 %v3799, %v4001
        %v4184 = vadd.f32 %v3800, %v4001
        %v4185 = vadd.f32 %v3801, %v4001
        %v4186 = vadd.f32 %v3802, %v4001
        %v4187 = vadd.f32 %v3803, %v4001
        %v4188 = vadd.f32 %v3804, %v4001
        %v4189 = vadd.f32 %v3805, %v4006
        %v4190 = vadd.f32 %v3806, %v4006
        %v4191 = vadd.f32 %v3807, %v4006
        %v4192 = vadd.f32 %v3808, %v4006
        %v4193 = vadd.f32 %v3809, %v4006
        %v4194 = vadd.f32 %v3810, %v4006
        %v4195 = vadd.f32 %v3811, %v4006
        %v4196 = vadd.f32 %v3812, %v4011
        %v4197 = vadd.f32 %v3813, %v4011
        %v4198 = vadd.f32 %v3814, %v4011
        %v4199 = vadd.f32 %v3815, %v4011
        %v4200 = vadd.f32 %v3816, %v4011
        %v4201 = vadd.f32 %v3817, %v4011
        %v4202 = vadd.f32 %v3818, %v4011
        %v4203 = vadd.f32 %v3819, %v4016
        %v4204 = vadd.f32 %v3820, %v4016
        %v4205 = vadd.f32 %v3821, %v4016
        %v4206 = vadd.f32 %v3822, %v4016
        %v4207 = vadd.f32 %v3823, %v4016
        %v4208 = vadd.f32 %v3824, %v4016
        %v4209 = vadd.f32 %v3825, %v4016
        %v4210 = vadd.f32 %v3826, %v4021
        %v4211 = vadd.f32 %v3827, %v4021
        %v4212 = vadd.f32 %v3828, %v4021
        %v4213 = vadd.f32 %v3829, %v4021
        %v4214 = vadd.f32 %v3830, %v4021
        %v4215 = vadd.f32 %v3831, %v4021
        %v4216 = vadd.f32 %v3832, %v4021
        %v4217 = vadd.f32 %v3833, %v4026
        %v4218 = vadd.f32 %v3834, %v4026
        %v4219 = vadd.f32 %v3835, %v4026
        %v4220 = vadd.f32 %v3836, %v4026
        %v4221 = vadd.f32 %v3837, %v4026
        %v4222 = vadd.f32 %v3838, %v4026
        %v4223 = vadd.f32 %v3839, %v4026
        %v4224 = vadd.f32 %v3840, %v4031
        %v4225 = vadd.f32 %v3841, %v4031
        %v4226 = vadd.f32 %v3842, %v4031
        %v4227 = vadd.f32 %v3843, %v4031
        %v4228 = vadd.f32 %v3844, %v4031
        %v4229 = vadd.f32 %v3845, %v4031
        %v4230 = vadd.f32 %v3846, %v4031
        %v4231 = vadd.f32 %v3847, %v4036
        %v4232 = vadd.f32 %v3848, %v4036
        %v4233 = vadd.f32 %v3849, %v4036
        %v4234 = vadd.f32 %v3850, %v4036
        %v4235 = vadd.f32 %v3851, %v4036
        %v4236 = vadd.f32 %v3852, %v4036
        %v4237 = vadd.f32 %v3853, %v4036
        %v4238 = vadd.f32 %v3854, %v4041
        %v4239 = vadd.f32 %v3855, %v4041
        %v4240 = vadd.f32 %v3856, %v4041
        %v4241 = vadd.f32 %v3857, %v4041
        %v4242 = vadd.f32 %v3858, %v4041
        %v4243 = vadd.f32 %v3859, %v4041
        %v4244 = vadd.f32 %v3860, %v4041
        %v4245 = vadd.f32 %v3861, %v4046
        %v4246 = vadd.f32 %v3862, %v4046
        %v4247 = vadd.f32 %v3863, %v4046
        %v4248 = vadd.f32 %v3864, %v4046
        %v4249 = vadd.f32 %v3865, %v4046
        %v4250 = vadd.f32 %v3866, %v4046
        %v4251 = vadd.f32 %v3867, %v4046
        %v4252 = vadd.f32 %v3868, %v4051
        %v4253 = vadd.f32 %v3869, %v4051
        %v4254 = vadd.f32 %v3870, %v4051
        %v4255 = vadd.f32 %v3871, %v4051
        %v4256 = vadd.f32 %v3872, %v4051
        %v4257 = vadd.f32 %v3873, %v4051
        %v4258 = vadd.f32 %v3874, %v4051
        %v4259 = vadd.f32 %v3875, %v4056
        %v4260 = vadd.f32 %v3876, %v4056
        %v4261 = vadd.f32 %v3877, %v4056
        %v4262 = vadd.f32 %v3878, %v4056
        %v4263 = vadd.f32 %v3879, %v4056
        %v4264 = vadd.f32 %v3880, %v4056
        %v4265 = vadd.f32 %v3881, %v4056
        %v4266 = vadd.f32 %v3882, %v4061
        %v4267 = vadd.f32 %v3883, %v4061
        %v4268 = vadd.f32 %v3884, %v4061
        %v4269 = vadd.f32 %v3885, %v4061
        %v4270 = vadd.f32 %v3886, %v4061
        %v4271 = vadd.f32 %v3887, %v4061
        %v4272 = vadd.f32 %v3888, %v4061
        %v4273 = vadd.f32 %v3889, %v4066
        %v4274 = vadd.f32 %v3890, %v4066
        %v4275 = vadd.f32 %v3891, %v4066
        %v4276 = vadd.f32 %v3892, %v4066
        %v4277 = vadd.f32 %v3893, %v4066
        %v4278 = vadd.f32 %v3894, %v4066
        %v4279 = vadd.f32 %v3895, %v4066
        %v4280 = vadd.f32 %v3896, %v4071
        %v4281 = vadd.f32 %v3897, %v4071
        %v4282 = vadd.f32 %v3898, %v4071
        %v4283 = vadd.f32 %v3899, %v4071
        %v4284 = vadd.f32 %v3900, %v4071
        %v4285 = vadd.f32 %v3901, %v4071
        %v4286 = vadd.f32 %v3902, %v4071
        %v4287 = vadd.f32 %v3903, %v4076
        %v4288 = vadd.f32 %v3904, %v4076
        %v4289 = vadd.f32 %v3905, %v4076
        %v4290 = vadd.f32 %v3906, %v4076
        %v4291 = vadd.f32 %v3907, %v4076
        %v4292 = vadd.f32 %v3908, %v4076
        %v4293 = vadd.f32 %v3909, %v4076
        %v4294 = vadd.f32 %v3910, %v4081
        %v4295 = vadd.f32 %v3911, %v4081
        %v4296 = vadd.f32 %v3912, %v4081
        %v4297 = vadd.f32 %v3913, %v4081
        %v4298 = vadd.f32 %v3914, %v4081
        %v4299 = vadd.f32 %v3915, %v4081
        %v4300 = vadd.f32 %v3916, %v4081
        %v4301 = vadd.f32 %v3917, %v4086
        %v4302 = vadd.f32 %v3918, %v4086
        %v4303 = vadd.f32 %v3919, %v4086
        %v4304 = vadd.f32 %v3920, %v4086
        %v4305 = vadd.f32 %v3921, %v4086
        %v4306 = vadd.f32 %v3922, %v4086
        %v4307 = vadd.f32 %v3923, %v4086
        %v4308 = vadd.f32 %v3924, %v4091
        %v4309 = vadd.f32 %v3925, %v4091
        %v4310 = vadd.f32 %v3926, %v4091
        %v4311 = vadd.f32 %v3927, %v4091
        %v4312 = vadd.f32 %v3928, %v4091
        %v4313 = vadd.f32 %v3929, %v4091
        %v4314 = vadd.f32 %v3930, %v4091
        %v4315 = vadd.f32 %v3931, %v4096
        %v4316 = vadd.f32 %v3932, %v4096
        %v4317 = vadd.f32 %v3933, %v4096
        %v4318 = vadd.f32 %v3934, %v4096
        %v4319 = vadd.f32 %v3935, %v4096
        %v4320 = vadd.f32 %v3936, %v4096
        %v4321 = vadd.f32 %v3937, %v4096
        %4322 = vst [vmem:[%s321] sm:$0xff] %v4098
        %4323 = vst [vmem:[%s321 + $0x8] sm:$0xff] %v4099
        %4324 = vst [vmem:[%s321 + $0x10] sm:$0xff] %v4100
        %4325 = vst [vmem:[%s321 + $0x18] sm:$0xff] %v4101
        %4326 = vst [vmem:[%s321 + $0x20] sm:$0xff] %v4102
        %4327 = vst [vmem:[%s321 + $0x28] sm:$0xff] %v4103
        %4328 = vst.msk [vmem:[%s321 + $0x30] sm:$0xff] %vm2918, %v4104
        %4329 = vst [vmem:[%s321 + $0x38] sm:$0xff] %v4105
        %4330 = vst [vmem:[%s321 + $0x40] sm:$0xff] %v4106
        %4331 = vst [vmem:[%s321 + $0x48] sm:$0xff] %v4107
        %4332 = vst [vmem:[%s321 + $0x50] sm:$0xff] %v4108
        %4333 = vst [vmem:[%s321 + $0x58] sm:$0xff] %v4109
        %4334 = vst [vmem:[%s321 + $0x60] sm:$0xff] %v4110
        %4335 = vst.msk [vmem:[%s321 + $0x68] sm:$0xff] %vm2918, %v4111
        %4336 = vst [vmem:[%s321 + $0x70] sm:$0xff] %v4112
        %4337 = vst [vmem:[%s321 + $0x78] sm:$0xff] %v4113
        %4338 = vst [vmem:[%s321 + $0x80] sm:$0xff] %v4114
        %4339 = vst [vmem:[%s321 + $0x88] sm:$0xff] %v4115
        %4340 = vst [vmem:[%s321 + $0x90] sm:$0xff] %v4116
        %4341 = vst [vmem:[%s321 + $0x98] sm:$0xff] %v4117
        %4342 = vst.msk [vmem:[%s321 + $0xa0] sm:$0xff] %vm2918, %v4118
        %4343 = vst [vmem:[%s321 + $0xa8] sm:$0xff] %v4119
        %4344 = vst [vmem:[%s321 + $0xb0] sm:$0xff] %v4120
        %4345 = vst [vmem:[%s321 + $0xb8] sm:$0xff] %v4121
        %4346 = vst [vmem:[%s321 + $0xc0] sm:$0xff] %v4122
        %4347 = vst [vmem:[%s321 + $0xc8] sm:$0xff] %v4123
        %4348 = vst [vmem:[%s321 + $0xd0] sm:$0xff] %v4124
        %4349 = vst.msk [vmem:[%s321 + $0xd8] sm:$0xff] %vm2918, %v4125
        %4350 = vst [vmem:[%s321 + $0xe0] sm:$0xff] %v4126
        %4351 = vst [vmem:[%s321 + $0xe8] sm:$0xff] %v4127
        %4352 = vst [vmem:[%s321 + $0xf0] sm:$0xff] %v4128
        %4353 = vst [vmem:[%s321 + $0xf8] sm:$0xff] %v4129
        %4354 = vst [vmem:[%s321 + $0x100] sm:$0xff] %v4130
        %4355 = vst [vmem:[%s321 + $0x108] sm:$0xff] %v4131
        %4356 = vst.msk [vmem:[%s321 + $0x110] sm:$0xff] %vm2918, %v4132
        %4357 = vst [vmem:[%s321 + $0x118] sm:$0xff] %v4133
        %4358 = vst [vmem:[%s321 + $0x120] sm:$0xff] %v4134
        %4359 = vst [vmem:[%s321 + $0x128] sm:$0xff] %v4135
        %4360 = vst [vmem:[%s321 + $0x130] sm:$0xff] %v4136
        %4361 = vst [vmem:[%s321 + $0x138] sm:$0xff] %v4137
        %4362 = vst [vmem:[%s321 + $0x140] sm:$0xff] %v4138
        %4363 = vst.msk [vmem:[%s321 + $0x148] sm:$0xff] %vm2918, %v4139
        %4364 = vst [vmem:[%s321 + $0x150] sm:$0xff] %v4140
        %4365 = vst [vmem:[%s321 + $0x158] sm:$0xff] %v4141
        %4366 = vst [vmem:[%s321 + $0x160] sm:$0xff] %v4142
        %4367 = vst [vmem:[%s321 + $0x168] sm:$0xff] %v4143
        %4368 = vst [vmem:[%s321 + $0x170] sm:$0xff] %v4144
        %4369 = vst [vmem:[%s321 + $0x178] sm:$0xff] %v4145
        %4370 = vst.msk [vmem:[%s321 + $0x180] sm:$0xff] %vm2918, %v4146
        %4371 = vst [vmem:[%s321 + $0x188] sm:$0xff] %v4147
        %4372 = vst [vmem:[%s321 + $0x190] sm:$0xff] %v4148
        %4373 = vst [vmem:[%s321 + $0x198] sm:$0xff] %v4149
        %4374 = vst [vmem:[%s321 + $0x1a0] sm:$0xff] %v4150
        %4375 = vst [vmem:[%s321 + $0x1a8] sm:$0xff] %v4151
        %4376 = vst [vmem:[%s321 + $0x1b0] sm:$0xff] %v4152
        %4377 = vst.msk [vmem:[%s321 + $0x1b8] sm:$0xff] %vm2918, %v4153
        %4378 = vst [vmem:[%s321 + $0x1c0] sm:$0xff] %v4154
        %4379 = vst [vmem:[%s321 + $0x1c8] sm:$0xff] %v4155
        %4380 = vst [vmem:[%s321 + $0x1d0] sm:$0xff] %v4156
        %4381 = vst [vmem:[%s321 + $0x1d8] sm:$0xff] %v4157
        %4382 = vst [vmem:[%s321 + $0x1e0] sm:$0xff] %v4158
        %4383 = vst [vmem:[%s321 + $0x1e8] sm:$0xff] %v4159
        %4384 = vst.msk [vmem:[%s321 + $0x1f0] sm:$0xff] %vm2918, %v4160
        %4385 = vst [vmem:[%s321 + $0x1f8] sm:$0xff] %v4161
        %4386 = vst [vmem:[%s321 + $0x200] sm:$0xff] %v4162
        %4387 = vst [vmem:[%s321 + $0x208] sm:$0xff] %v4163
        %4388 = vst [vmem:[%s321 + $0x210] sm:$0xff] %v4164
        %4389 = vst [vmem:[%s321 + $0x218] sm:$0xff] %v4165
        %4390 = vst [vmem:[%s321 + $0x220] sm:$0xff] %v4166
        %4391 = vst.msk [vmem:[%s321 + $0x228] sm:$0xff] %vm2918, %v4167
        %4392 = vst [vmem:[%s321 + $0x230] sm:$0xff] %v4168
        %4393 = vst [vmem:[%s321 + $0x238] sm:$0xff] %v4169
        %4394 = vst [vmem:[%s321 + $0x240] sm:$0xff] %v4170
        %4395 = vst [vmem:[%s321 + $0x248] sm:$0xff] %v4171
        %4396 = vst [vmem:[%s321 + $0x250] sm:$0xff] %v4172
        %4397 = vst [vmem:[%s321 + $0x258] sm:$0xff] %v4173
        %4398 = vst.msk [vmem:[%s321 + $0x260] sm:$0xff] %vm2918, %v4174
        %4399 = vst [vmem:[%s321 + $0x268] sm:$0xff] %v4175
        %4400 = vst [vmem:[%s321 + $0x270] sm:$0xff] %v4176
        %4401 = vst [vmem:[%s321 + $0x278] sm:$0xff] %v4177
        %4402 = vst [vmem:[%s321 + $0x280] sm:$0xff] %v4178
        %4403 = vst [vmem:[%s321 + $0x288] sm:$0xff] %v4179
        %4404 = vst [vmem:[%s321 + $0x290] sm:$0xff] %v4180
        %4405 = vst.msk [vmem:[%s321 + $0x298] sm:$0xff] %vm2918, %v4181
        %4406 = vst [vmem:[%s321 + $0x2a0] sm:$0xff] %v4182
        %4407 = vst [vmem:[%s321 + $0x2a8] sm:$0xff] %v4183
        %4408 = vst [vmem:[%s321 + $0x2b0] sm:$0xff] %v4184
        %4409 = vst [vmem:[%s321 + $0x2b8] sm:$0xff] %v4185
        %4410 = vst [vmem:[%s321 + $0x2c0] sm:$0xff] %v4186
        %4411 = vst [vmem:[%s321 + $0x2c8] sm:$0xff] %v4187
        %4412 = vst.msk [vmem:[%s321 + $0x2d0] sm:$0xff] %vm2918, %v4188
        %4413 = vst [vmem:[%s321 + $0x2d8] sm:$0xff] %v4189
        %4414 = vst [vmem:[%s321 + $0x2e0] sm:$0xff] %v4190
        %4415 = vst [vmem:[%s321 + $0x2e8] sm:$0xff] %v4191
        %4416 = vst [vmem:[%s321 + $0x2f0] sm:$0xff] %v4192
        %4417 = vst [vmem:[%s321 + $0x2f8] sm:$0xff] %v4193
        %4418 = vst [vmem:[%s321 + $0x300] sm:$0xff] %v4194
        %4419 = vst.msk [vmem:[%s321 + $0x308] sm:$0xff] %vm2918, %v4195
        %4420 = vst [vmem:[%s321 + $0x310] sm:$0xff] %v4196
        %4421 = vst [vmem:[%s321 + $0x318] sm:$0xff] %v4197
        %4422 = vst [vmem:[%s321 + $0x320] sm:$0xff] %v4198
        %4423 = vst [vmem:[%s321 + $0x328] sm:$0xff] %v4199
        %4424 = vst [vmem:[%s321 + $0x330] sm:$0xff] %v4200
        %4425 = vst [vmem:[%s321 + $0x338] sm:$0xff] %v4201
        %4426 = vst.msk [vmem:[%s321 + $0x340] sm:$0xff] %vm2918, %v4202
        %4427 = vst [vmem:[%s321 + $0x348] sm:$0xff] %v4203
        %4428 = vst [vmem:[%s321 + $0x350] sm:$0xff] %v4204
        %4429 = vst [vmem:[%s321 + $0x358] sm:$0xff] %v4205
        %4430 = vst [vmem:[%s321 + $0x360] sm:$0xff] %v4206
        %4431 = vst [vmem:[%s321 + $0x368] sm:$0xff] %v4207
        %4432 = vst [vmem:[%s321 + $0x370] sm:$0xff] %v4208
        %4433 = vst.msk [vmem:[%s321 + $0x378] sm:$0xff] %vm2918, %v4209
        %4434 = vst [vmem:[%s321 + $0x380] sm:$0xff] %v4210
        %4435 = vst [vmem:[%s321 + $0x388] sm:$0xff] %v4211
        %4436 = vst [vmem:[%s321 + $0x390] sm:$0xff] %v4212
        %4437 = vst [vmem:[%s321 + $0x398] sm:$0xff] %v4213
        %4438 = vst [vmem:[%s321 + $0x3a0] sm:$0xff] %v4214
        %4439 = vst [vmem:[%s321 + $0x3a8] sm:$0xff] %v4215
        %4440 = vst.msk [vmem:[%s321 + $0x3b0] sm:$0xff] %vm2918, %v4216
        %4441 = vst [vmem:[%s321 + $0x3b8] sm:$0xff] %v4217
        %4442 = vst [vmem:[%s321 + $0x3c0] sm:$0xff] %v4218
        %4443 = vst [vmem:[%s321 + $0x3c8] sm:$0xff] %v4219
        %4444 = vst [vmem:[%s321 + $0x3d0] sm:$0xff] %v4220
        %4445 = vst [vmem:[%s321 + $0x3d8] sm:$0xff] %v4221
        %4446 = vst [vmem:[%s321 + $0x3e0] sm:$0xff] %v4222
        %4447 = vst.msk [vmem:[%s321 + $0x3e8] sm:$0xff] %vm2918, %v4223
        %4448 = vst [vmem:[%s321 + $0x3f0] sm:$0xff] %v4224
        %4449 = vst [vmem:[%s321 + $0x3f8] sm:$0xff] %v4225
        %4450 = vst [vmem:[%s321 + $0x400] sm:$0xff] %v4226
        %4451 = vst [vmem:[%s321 + $0x408] sm:$0xff] %v4227
        %4452 = vst [vmem:[%s321 + $0x410] sm:$0xff] %v4228
        %4453 = vst [vmem:[%s321 + $0x418] sm:$0xff] %v4229
        %4454 = vst.msk [vmem:[%s321 + $0x420] sm:$0xff] %vm2918, %v4230
        %4455 = vst [vmem:[%s321 + $0x428] sm:$0xff] %v4231
        %4456 = vst [vmem:[%s321 + $0x430] sm:$0xff] %v4232
        %4457 = vst [vmem:[%s321 + $0x438] sm:$0xff] %v4233
        %4458 = vst [vmem:[%s321 + $0x440] sm:$0xff] %v4234
        %4459 = vst [vmem:[%s321 + $0x448] sm:$0xff] %v4235
        %4460 = vst [vmem:[%s321 + $0x450] sm:$0xff] %v4236
        %4461 = vst.msk [vmem:[%s321 + $0x458] sm:$0xff] %vm2918, %v4237
        %4462 = vst [vmem:[%s321 + $0x460] sm:$0xff] %v4238
        %4463 = vst [vmem:[%s321 + $0x468] sm:$0xff] %v4239
        %4464 = vst [vmem:[%s321 + $0x470] sm:$0xff] %v4240
        %4465 = vst [vmem:[%s321 + $0x478] sm:$0xff] %v4241
        %4466 = vst [vmem:[%s321 + $0x480] sm:$0xff] %v4242
        %4467 = vst [vmem:[%s321 + $0x488] sm:$0xff] %v4243
        %4468 = vst.msk [vmem:[%s321 + $0x490] sm:$0xff] %vm2918, %v4244
        %4469 = vst [vmem:[%s321 + $0x498] sm:$0xff] %v4245
        %4470 = vst [vmem:[%s321 + $0x4a0] sm:$0xff] %v4246
        %4471 = vst [vmem:[%s321 + $0x4a8] sm:$0xff] %v4247
        %4472 = vst [vmem:[%s321 + $0x4b0] sm:$0xff] %v4248
        %4473 = vst [vmem:[%s321 + $0x4b8] sm:$0xff] %v4249
        %4474 = vst [vmem:[%s321 + $0x4c0] sm:$0xff] %v4250
        %4475 = vst.msk [vmem:[%s321 + $0x4c8] sm:$0xff] %vm2918, %v4251
        %4476 = vst [vmem:[%s321 + $0x4d0] sm:$0xff] %v4252
        %4477 = vst [vmem:[%s321 + $0x4d8] sm:$0xff] %v4253
        %4478 = vst [vmem:[%s321 + $0x4e0] sm:$0xff] %v4254
        %4479 = vst [vmem:[%s321 + $0x4e8] sm:$0xff] %v4255
        %4480 = vst [vmem:[%s321 + $0x4f0] sm:$0xff] %v4256
        %4481 = vst [vmem:[%s321 + $0x4f8] sm:$0xff] %v4257
        %4482 = vst.msk [vmem:[%s321 + $0x500] sm:$0xff] %vm2918, %v4258
        %4483 = vst [vmem:[%s321 + $0x508] sm:$0xff] %v4259
        %4484 = vst [vmem:[%s321 + $0x510] sm:$0xff] %v4260
        %4485 = vst [vmem:[%s321 + $0x518] sm:$0xff] %v4261
        %4486 = vst [vmem:[%s321 + $0x520] sm:$0xff] %v4262
        %4487 = vst [vmem:[%s321 + $0x528] sm:$0xff] %v4263
        %4488 = vst [vmem:[%s321 + $0x530] sm:$0xff] %v4264
        %4489 = vst.msk [vmem:[%s321 + $0x538] sm:$0xff] %vm2918, %v4265
        %4490 = vst [vmem:[%s321 + $0x540] sm:$0xff] %v4266
        %4491 = vst [vmem:[%s321 + $0x548] sm:$0xff] %v4267
        %4492 = vst [vmem:[%s321 + $0x550] sm:$0xff] %v4268
        %4493 = vst [vmem:[%s321 + $0x558] sm:$0xff] %v4269
        %4494 = vst [vmem:[%s321 + $0x560] sm:$0xff] %v4270
        %4495 = vst [vmem:[%s321 + $0x568] sm:$0xff] %v4271
        %4496 = vst.msk [vmem:[%s321 + $0x570] sm:$0xff] %vm2918, %v4272
        %4497 = vst [vmem:[%s321 + $0x578] sm:$0xff] %v4273
        %4498 = vst [vmem:[%s321 + $0x580] sm:$0xff] %v4274
        %4499 = vst [vmem:[%s321 + $0x588] sm:$0xff] %v4275
        %4500 = vst [vmem:[%s321 + $0x590] sm:$0xff] %v4276
        %4501 = vst [vmem:[%s321 + $0x598] sm:$0xff] %v4277
        %4502 = vst [vmem:[%s321 + $0x5a0] sm:$0xff] %v4278
        %4503 = vst.msk [vmem:[%s321 + $0x5a8] sm:$0xff] %vm2918, %v4279
        %4504 = vst [vmem:[%s321 + $0x5b0] sm:$0xff] %v4280
        %4505 = vst [vmem:[%s321 + $0x5b8] sm:$0xff] %v4281
        %4506 = vst [vmem:[%s321 + $0x5c0] sm:$0xff] %v4282
        %4507 = vst [vmem:[%s321 + $0x5c8] sm:$0xff] %v4283
        %4508 = vst [vmem:[%s321 + $0x5d0] sm:$0xff] %v4284
        %4509 = vst [vmem:[%s321 + $0x5d8] sm:$0xff] %v4285
        %4510 = vst.msk [vmem:[%s321 + $0x5e0] sm:$0xff] %vm2918, %v4286
        %4511 = vst [vmem:[%s321 + $0x5e8] sm:$0xff] %v4287
        %4512 = vst [vmem:[%s321 + $0x5f0] sm:$0xff] %v4288
        %4513 = vst [vmem:[%s321 + $0x5f8] sm:$0xff] %v4289
        %4514 = vst [vmem:[%s321 + $0x600] sm:$0xff] %v4290
        %4515 = vst [vmem:[%s321 + $0x608] sm:$0xff] %v4291
        %4516 = vst [vmem:[%s321 + $0x610] sm:$0xff] %v4292
        %4517 = vst.msk [vmem:[%s321 + $0x618] sm:$0xff] %vm2918, %v4293
        %4518 = vst [vmem:[%s321 + $0x620] sm:$0xff] %v4294
        %4519 = vst [vmem:[%s321 + $0x628] sm:$0xff] %v4295
        %4520 = vst [vmem:[%s321 + $0x630] sm:$0xff] %v4296
        %4521 = vst [vmem:[%s321 + $0x638] sm:$0xff] %v4297
        %4522 = vst [vmem:[%s321 + $0x640] sm:$0xff] %v4298
        %4523 = vst [vmem:[%s321 + $0x648] sm:$0xff] %v4299
        %4524 = vst.msk [vmem:[%s321 + $0x650] sm:$0xff] %vm2918, %v4300
        %4525 = vst [vmem:[%s321 + $0x658] sm:$0xff] %v4301
        %4526 = vst [vmem:[%s321 + $0x660] sm:$0xff] %v4302
        %4527 = vst [vmem:[%s321 + $0x668] sm:$0xff] %v4303
        %4528 = vst [vmem:[%s321 + $0x670] sm:$0xff] %v4304
        %4529 = vst [vmem:[%s321 + $0x678] sm:$0xff] %v4305
        %4530 = vst [vmem:[%s321 + $0x680] sm:$0xff] %v4306
        %4531 = vst.msk [vmem:[%s321 + $0x688] sm:$0xff] %vm2918, %v4307
        %4532 = vst [vmem:[%s321 + $0x690] sm:$0xff] %v4308
        %4533 = vst [vmem:[%s321 + $0x698] sm:$0xff] %v4309
        %4534 = vst [vmem:[%s321 + $0x6a0] sm:$0xff] %v4310
        %4535 = vst [vmem:[%s321 + $0x6a8] sm:$0xff] %v4311
        %4536 = vst [vmem:[%s321 + $0x6b0] sm:$0xff] %v4312
        %4537 = vst [vmem:[%s321 + $0x6b8] sm:$0xff] %v4313
        %4538 = vst.msk [vmem:[%s321 + $0x6c0] sm:$0xff] %vm2918, %v4314
        %4539 = vst [vmem:[%s321 + $0x6c8] sm:$0xff] %v4315
        %4540 = vst [vmem:[%s321 + $0x6d0] sm:$0xff] %v4316
        %4541 = vst [vmem:[%s321 + $0x6d8] sm:$0xff] %v4317
        %4542 = vst [vmem:[%s321 + $0x6e0] sm:$0xff] %v4318
        %4543 = vst [vmem:[%s321 + $0x6e8] sm:$0xff] %v4319
        %4544 = vst [vmem:[%s321 + $0x6f0] sm:$0xff] %v4320
        %4545 = vst.msk [vmem:[%s321 + $0x6f8] sm:$0xff] %vm2918, %v4321
        %s4546 = smul.u32 %s22, 2
        %s4547 = sadd.s32 %s4546, %s23
        %s4548 = smul.u32 32, %s4547
        %p4549 = scmp.lt.s32.totalorder %s4548, 127
        %s4550 = scalar_select %p4549, %s4548, 127
        %s4551 = smul.addr %s4550, 7
        %s4552 = smul.addr %s4551, 8
        %s4553 = scalar_lea.vmem %s4, %s4552
        // Predicated region
        $region45: #{tpu_custom_call.1} parent=35 // pred_check
          %p4554 = pneg %p163
        $region46: #{tpu_custom_call.1} parent=35 // pred_check_branch
          %4556 = sbr.rel (%p4554) target = $region48
        $region47: #{tpu_custom_call.1} parent=35 // pred_region
          %s4557 = smul.u32 %s22, 2
          %s4558 = sadd.s32 %s4557, %s23
          %s4559 = smul.u32 32, %s4558
        $region48: #{tpu_custom_call.1} parent=35 // pred_fallthru
          _
      $region36: #{tpu_custom_call.1} parent=5 // pred_fallthru
        _
      %p4560 = scmp.le.s32.totalorder 2, %s13
      // Predicated region
      $region49: #{tpu_custom_call.1} parent=5 // pred_check
        %p4561 = pneg %p4560
      $region50: #{tpu_custom_call.1} parent=5 // pred_check_branch
        %4563 = sbr.rel (%p4561) target = $region52
      $region51: #{tpu_custom_call.1} parent=5 // pred_region
        %s4564 = ssub.s32 %s13, 2
        // Predicated region
        $region53: #{tpu_custom_call.1} parent=51 // pred_check
          %p4565 = pneg %p169
        $region54: #{tpu_custom_call.1} parent=51 // pred_check_branch
          %4567 = sbr.rel (%p4565) target = $region56
        $region55: #{tpu_custom_call.1} parent=51 // pred_region
          %s4568 = smul.u32 %s24, 2
          %s4569 = sadd.s32 %s4568, %s25
          %s4570 = smul.u32 32, %s4569
          %p4571 = scmp.lt.s32.totalorder %s4570, 127
          %s4572 = scalar_select %p4571, %s4570, 127
          %s4573 = smul.addr %s4572, 7
          %s4574 = smul.addr %s4573, 8
          %s4575 = scalar_lea.vmem %s4, %s4574
        $region56: #{tpu_custom_call.1} parent=51 // pred_fallthru
          _
      $region52: #{tpu_custom_call.1} parent=5 // pred_fallthru
        _
    $region6: #{tpu_custom_call.1} parent=1 // loop_footer
      %s17 = sadd.s32 1, %s13
    $region7: #{tpu_custom_call.1} parent=1 // loop_footer_branch
      %12 = sbr.rel target = $region3
    $region8: #{tpu_custom_call.1} parent=1 // loop_exit
      _
    %4576 = vsyncpa [#allocation5], 1
    %s4577 = scalar_lea.sflag [#allocation5], 1
    %4578 = vsyncpa %s4577, 1

</llo_original>
